<compile_context>
chip_gen: v5e
topology: v5e:2x2
jax: 0.10.0
libtpu: 0.0.40
codegen_flags: <defaults>
</compile_context>

<pallas_src>
import functools

import jax
import jax.numpy as jnp
from jax.experimental import pallas as pl
from jax.experimental.pallas import tpu as pltpu


def _up_conv_kernel(x_ref, wf_ref, g_ref, b_ref, o_ref, *, eps):
    N, Hp, Wp, C_in = x_ref.shape            # padded input: Hp = H+2, Wp = W+2
    H, W = Hp - 2, Wp - 2
    _, _, C_out, M = o_ref.shape             # M = N*H*W (multiple of 128 -> lane-dense)
    f32 = jnp.float32
    bf16 = jnp.bfloat16

    # ---- single loads of every operand ----
    x = x_ref[...]                            # (N, H+2, W+2, C_in) f32
    wf = wf_ref[...]                          # (36*C_in, C_out) bf16, phase-folded weights
    gamma = g_ref[...].astype(f32)            # (C_out, 1)
    beta = b_ref[...].astype(f32)             # (C_out, 1)

    # ---- 9 shifted views of the padded input at ORIGINAL resolution ----
    # Leading-dim collapse only (lane dim C_in untouched): no lane-repacking concat.
    # Cast once to bf16 so the MXU gets single-pass bf16 operands (f32 accumulation).
    win = {(a, b): x[:, a:a + H, b:b + W, :].reshape(M, C_in).astype(bf16)
           for a in range(3) for b in range(3)}

    # ---- sub-pixel phase decomposition of upsample(2x nearest) + conv3x3 ----
    # Output parity (py, px) reads only a 2x2 window of the original x; each phase is
    # 4 accumulated MXU matmuls (K = C_in) with pre-folded weights.
    acc_t = []                                # per phase: (C_out, M) f32
    for py in range(2):
        for px in range(2):
            acc = None
            for a in (py, py + 1):
                for b in (px, px + 1):
                    k = ((py * 2 + px) * 3 + a) * 3 + b
                    wk = wf[k * C_in:(k + 1) * C_in, :]            # (C_in, C_out) bf16
                    d = jnp.dot(win[(a, b)], wk,
                                preferred_element_type=f32)        # bf16 in, f32 acc
                    acc = d if acc is None else acc + d
            # One small XLU transpose -> lane-dense (C_out, M) for the BN/ReLU epilogue
            # and unmasked full-lane stores (C_out=4 would otherwise use 4/128 lanes).
            acc_t.append(acc.T)

    # ---- BatchNorm2d (training-mode batch stats over the FULL N*2H*2W extent) ----
    # All four phases together == all output pixels.  Centered variance.
    inv_cnt = 1.0 / (4 * M)
    mean = sum(jnp.sum(a, axis=1, keepdims=True) for a in acc_t) * inv_cnt      # (C_out,1)
    var = sum(jnp.sum(jnp.square(a - mean), axis=1, keepdims=True)
              for a in acc_t) * inv_cnt                                          # (C_out,1)
    scale = gamma * jax.lax.rsqrt(var + eps)                                     # EUP rsqrt
    shift = beta - mean * scale

    # ---- fused affine + ReLU; lane-dense stores (last dim M, multiple of 128) ----
    for p, a in enumerate(acc_t):
        o_ref[p // 2, p % 2] = jnp.maximum(a * scale + shift, 0.0).astype(o_ref.dtype)


def up_conv_pallas(x_nchw, w_oihw, gamma, beta, *, eps=1e-5):
    """Fused Upsample(2x nearest) -> Conv2d(3x3, pad=1) -> BatchNorm2d -> ReLU.

    x_nchw: (N, C_in, H, W) f32; w_oihw: (C_out, C_in, 3, 3); gamma/beta: (C_out,).
    Returns (N, C_out, 2H, 2W) f32.  (The Conv2d bias cancels under training-mode BN.)
    """
    N, C_in, H, W = x_nchw.shape
    C_out = w_oihw.shape[0]
    M = N * H * W

    # NHWC + 1px zero pad (conv padding folded into the phase windows).
    x_nhwc = jnp.transpose(x_nchw, (0, 2, 3, 1)).astype(jnp.float32)
    x_pad = jnp.pad(x_nhwc, ((0, 0), (1, 1), (1, 1), (0, 0)))

    # Phase-fold the 3x3 kernel into per-(phase, 3x3-window-offset) 1x1 kernels.
    # F[p, a, k] = 1 iff original tap ky=k of output parity p lands on window offset a.
    F = jnp.array([[[1., 0., 0.], [0., 1., 1.], [0., 0., 0.]],
                   [[0., 0., 0.], [1., 1., 0.], [0., 0., 1.]]], dtype=jnp.float32)
    wf = jnp.einsum('pak,qbl,oikl->pqabio', F, F, w_oihw.astype(jnp.float32))
    wf2 = wf.reshape(2 * 2 * 3 * 3 * C_in, C_out).astype(jnp.bfloat16)   # (288, C_out)

    g_col = gamma.reshape(C_out, 1).astype(jnp.float32)
    b_col = beta.reshape(C_out, 1).astype(jnp.float32)

    kernel = functools.partial(_up_conv_kernel, eps=eps)
    out_k = pl.pallas_call(
        kernel,
        out_shape=jax.ShapeDtypeStruct((2, 2, C_out, M), jnp.float32),
        in_specs=[pl.BlockSpec(memory_space=pltpu.MemorySpace.VMEM)] * 4,
        out_specs=pl.BlockSpec(memory_space=pltpu.MemorySpace.VMEM),
    )(x_pad, wf2, g_col, b_col)

    # Interleave phases in the wrapper (layout plumbing kept outside the kernel):
    # out[n, co, 2i+py, 2j+px] = out_k[py, px, co, (n, i, j)]
    out = out_k.reshape(2, 2, C_out, N, H, W)
    out = jnp.transpose(out, (3, 2, 4, 0, 5, 1))          # (N, C_out, H, 2, W, 2)
    return out.reshape(N, C_out, 2 * H, 2 * W)


def up_conv_reference(x_nchw, w_oihw, bias, gamma, beta, *, eps=1e-5):
    """Pure-JAX reference mirroring the PyTorch module forward (training-mode BN)."""
    up = jnp.repeat(jnp.repeat(x_nchw, 2, axis=2), 2, axis=3)   # nearest 2x
    y = jax.lax.conv_general_dilated(
        up, w_oihw, window_strides=(1, 1), padding="SAME",
        dimension_numbers=("NCHW", "OIHW", "NCHW"),
        precision=jax.lax.Precision.HIGHEST)
    y = y + bias[None, :, None, None]
    mean = y.mean(axis=(0, 2, 3), keepdims=True)
    var = ((y - mean) ** 2).mean(axis=(0, 2, 3), keepdims=True)
    yn = (y - mean) / jnp.sqrt(var + eps)
    yn = yn * gamma[None, :, None, None] + beta[None, :, None, None]
    return jnp.maximum(yn, 0.0)


if __name__ == "__main__":
    # up_conv(ch_in=8, ch_out=4); input NCHW = (2, 8, 16, 16) -> output (2, 4, 32, 32)
    N, C_in, C_out, H, W = 2, 8, 4, 16, 16

    key = jax.random.PRNGKey(0)
    kx, kw, kb, kg, kbeta = jax.random.split(key, 5)

    x = jax.random.normal(kx, (N, C_in, H, W), dtype=jnp.float32)
    w = jax.random.normal(kw, (C_out, C_in, 3, 3), dtype=jnp.float32) * 0.2
    bias = jax.random.normal(kb, (C_out,), dtype=jnp.float32) * 0.05
    gamma = 1.0 + 0.1 * jax.random.normal(kg, (C_out,), dtype=jnp.float32)
    beta = 0.05 * jax.random.normal(kbeta, (C_out,), dtype=jnp.float32)

    out = jax.block_until_ready(up_conv_pallas(x, w, gamma, beta))
    ref = jax.block_until_ready(up_conv_reference(x, w, bias, gamma, beta))

    assert out.shape == (N, C_out, 2 * H, 2 * W)
    max_err = float(jnp.max(jnp.abs(out - ref)))
    # bf16 MXU operands (f32 accumulation) per the perf review: expected max abs
    # error ~1e-2 vs the f32 HIGHEST reference, so a 2e-2 tolerance is used.
    assert jnp.allclose(out, ref, rtol=2e-2, atol=2e-2), max_err
    print("KERNEL_OK")
</pallas_src>

<mosaic_0001>
module attributes {stable_mosaic.version = 11 : i64} {
  func.func @_up_conv_kernel(%arg0: memref<2x18x18x8xf32, #tpu.memory_space<vmem>>, %arg1: memref<288x4xbf16, #tpu.memory_space<vmem>>, %arg2: memref<4x1xf32, #tpu.memory_space<vmem>>, %arg3: memref<4x1xf32, #tpu.memory_space<vmem>>, %arg4: memref<2x2x4x512xf32, #tpu.memory_space<vmem>>) attributes {dimension_semantics = [], scalar_prefetch = 0 : i64, scratch_operands = 0 : i64, tpu.core_type = #tpu.core_type<tc>} {
    %c0 = arith.constant 0 : index
    %c0_0 = arith.constant 0 : index
    %c0_1 = arith.constant 0 : index
    %c0_2 = arith.constant 0 : index
    %0 = vector.load %arg0[%c0, %c0_0, %c0_1, %c0_2] : memref<2x18x18x8xf32, #tpu.memory_space<vmem>>, vector<2x18x18x8xf32>
    %c0_3 = arith.constant 0 : index
    %c0_4 = arith.constant 0 : index
    %1 = vector.load %arg1[%c0_3, %c0_4] : memref<288x4xbf16, #tpu.memory_space<vmem>>, vector<288x4xbf16>
    %c0_5 = arith.constant 0 : index
    %c0_6 = arith.constant 0 : index
    %2 = vector.load %arg2[%c0_5, %c0_6] : memref<4x1xf32, #tpu.memory_space<vmem>>, vector<4x1xf32>
    %c0_7 = arith.constant 0 : index
    %c0_8 = arith.constant 0 : index
    %3 = vector.load %arg3[%c0_7, %c0_8] : memref<4x1xf32, #tpu.memory_space<vmem>>, vector<4x1xf32>
    %4 = vector.extract_strided_slice %0 {offsets = [0, 0, 0, 0], sizes = [2, 16, 16, 8], strides = [1, 1, 1, 1]} : vector<2x18x18x8xf32> to vector<2x16x16x8xf32>
    %5 = vector.shape_cast %4 : vector<2x16x16x8xf32> to vector<512x8xf32>
    %6 = arith.truncf %5 : vector<512x8xf32> to vector<512x8xbf16>
    %7 = vector.extract_strided_slice %0 {offsets = [0, 0, 1, 0], sizes = [2, 16, 16, 8], strides = [1, 1, 1, 1]} : vector<2x18x18x8xf32> to vector<2x16x16x8xf32>
    %8 = vector.shape_cast %7 : vector<2x16x16x8xf32> to vector<512x8xf32>
    %9 = arith.truncf %8 : vector<512x8xf32> to vector<512x8xbf16>
    %10 = vector.extract_strided_slice %0 {offsets = [0, 0, 2, 0], sizes = [2, 16, 16, 8], strides = [1, 1, 1, 1]} : vector<2x18x18x8xf32> to vector<2x16x16x8xf32>
    %11 = vector.shape_cast %10 : vector<2x16x16x8xf32> to vector<512x8xf32>
    %12 = arith.truncf %11 : vector<512x8xf32> to vector<512x8xbf16>
    %13 = vector.extract_strided_slice %0 {offsets = [0, 1, 0, 0], sizes = [2, 16, 16, 8], strides = [1, 1, 1, 1]} : vector<2x18x18x8xf32> to vector<2x16x16x8xf32>
    %14 = vector.shape_cast %13 : vector<2x16x16x8xf32> to vector<512x8xf32>
    %15 = arith.truncf %14 : vector<512x8xf32> to vector<512x8xbf16>
    %16 = vector.extract_strided_slice %0 {offsets = [0, 1, 1, 0], sizes = [2, 16, 16, 8], strides = [1, 1, 1, 1]} : vector<2x18x18x8xf32> to vector<2x16x16x8xf32>
    %17 = vector.shape_cast %16 : vector<2x16x16x8xf32> to vector<512x8xf32>
    %18 = arith.truncf %17 : vector<512x8xf32> to vector<512x8xbf16>
    %19 = vector.extract_strided_slice %0 {offsets = [0, 1, 2, 0], sizes = [2, 16, 16, 8], strides = [1, 1, 1, 1]} : vector<2x18x18x8xf32> to vector<2x16x16x8xf32>
    %20 = vector.shape_cast %19 : vector<2x16x16x8xf32> to vector<512x8xf32>
    %21 = arith.truncf %20 : vector<512x8xf32> to vector<512x8xbf16>
    %22 = vector.extract_strided_slice %0 {offsets = [0, 2, 0, 0], sizes = [2, 16, 16, 8], strides = [1, 1, 1, 1]} : vector<2x18x18x8xf32> to vector<2x16x16x8xf32>
    %23 = vector.shape_cast %22 : vector<2x16x16x8xf32> to vector<512x8xf32>
    %24 = arith.truncf %23 : vector<512x8xf32> to vector<512x8xbf16>
    %25 = vector.extract_strided_slice %0 {offsets = [0, 2, 1, 0], sizes = [2, 16, 16, 8], strides = [1, 1, 1, 1]} : vector<2x18x18x8xf32> to vector<2x16x16x8xf32>
    %26 = vector.shape_cast %25 : vector<2x16x16x8xf32> to vector<512x8xf32>
    %27 = arith.truncf %26 : vector<512x8xf32> to vector<512x8xbf16>
    %28 = vector.extract_strided_slice %0 {offsets = [0, 2, 2, 0], sizes = [2, 16, 16, 8], strides = [1, 1, 1, 1]} : vector<2x18x18x8xf32> to vector<2x16x16x8xf32>
    %29 = vector.shape_cast %28 : vector<2x16x16x8xf32> to vector<512x8xf32>
    %30 = arith.truncf %29 : vector<512x8xf32> to vector<512x8xbf16>
    %31 = vector.extract_strided_slice %1 {offsets = [0, 0], sizes = [8, 4], strides = [1, 1]} : vector<288x4xbf16> to vector<8x4xbf16>
    %cst = arith.constant dense<0.000000e+00> : vector<512x4xf32>
    %32 = tpu.matmul %6, %31, %cst {dimension_numbers = #tpu.dot_dimension_numbers<[1], [0], [0], [1], [0, 0, 1, 1], [], []>} : vector<512x8xbf16>, vector<8x4xbf16>, vector<512x4xf32> -> vector<512x4xf32>
    %33 = vector.extract_strided_slice %1 {offsets = [8, 0], sizes = [8, 4], strides = [1, 1]} : vector<288x4xbf16> to vector<8x4xbf16>
    %cst_9 = arith.constant dense<0.000000e+00> : vector<512x4xf32>
    %34 = tpu.matmul %9, %33, %cst_9 {dimension_numbers = #tpu.dot_dimension_numbers<[1], [0], [0], [1], [0, 0, 1, 1], [], []>} : vector<512x8xbf16>, vector<8x4xbf16>, vector<512x4xf32> -> vector<512x4xf32>
    %35 = arith.addf %32, %34 : vector<512x4xf32>
    %36 = vector.extract_strided_slice %1 {offsets = [24, 0], sizes = [8, 4], strides = [1, 1]} : vector<288x4xbf16> to vector<8x4xbf16>
    %cst_10 = arith.constant dense<0.000000e+00> : vector<512x4xf32>
    %37 = tpu.matmul %15, %36, %cst_10 {dimension_numbers = #tpu.dot_dimension_numbers<[1], [0], [0], [1], [0, 0, 1, 1], [], []>} : vector<512x8xbf16>, vector<8x4xbf16>, vector<512x4xf32> -> vector<512x4xf32>
    %38 = arith.addf %35, %37 : vector<512x4xf32>
    %39 = vector.extract_strided_slice %1 {offsets = [32, 0], sizes = [8, 4], strides = [1, 1]} : vector<288x4xbf16> to vector<8x4xbf16>
    %cst_11 = arith.constant dense<0.000000e+00> : vector<512x4xf32>
    %40 = tpu.matmul %18, %39, %cst_11 {dimension_numbers = #tpu.dot_dimension_numbers<[1], [0], [0], [1], [0, 0, 1, 1], [], []>} : vector<512x8xbf16>, vector<8x4xbf16>, vector<512x4xf32> -> vector<512x4xf32>
    %41 = arith.addf %38, %40 : vector<512x4xf32>
    %42 = tpu.transpose %41, [1, 0] : vector<512x4xf32> -> vector<4x512xf32>
    %43 = vector.extract_strided_slice %1 {offsets = [80, 0], sizes = [8, 4], strides = [1, 1]} : vector<288x4xbf16> to vector<8x4xbf16>
    %cst_12 = arith.constant dense<0.000000e+00> : vector<512x4xf32>
    %44 = tpu.matmul %9, %43, %cst_12 {dimension_numbers = #tpu.dot_dimension_numbers<[1], [0], [0], [1], [0, 0, 1, 1], [], []>} : vector<512x8xbf16>, vector<8x4xbf16>, vector<512x4xf32> -> vector<512x4xf32>
    %45 = vector.extract_strided_slice %1 {offsets = [88, 0], sizes = [8, 4], strides = [1, 1]} : vector<288x4xbf16> to vector<8x4xbf16>
    %cst_13 = arith.constant dense<0.000000e+00> : vector<512x4xf32>
    %46 = tpu.matmul %12, %45, %cst_13 {dimension_numbers = #tpu.dot_dimension_numbers<[1], [0], [0], [1], [0, 0, 1, 1], [], []>} : vector<512x8xbf16>, vector<8x4xbf16>, vector<512x4xf32> -> vector<512x4xf32>
    %47 = arith.addf %44, %46 : vector<512x4xf32>
    %48 = vector.extract_strided_slice %1 {offsets = [104, 0], sizes = [8, 4], strides = [1, 1]} : vector<288x4xbf16> to vector<8x4xbf16>
    %cst_14 = arith.constant dense<0.000000e+00> : vector<512x4xf32>
    %49 = tpu.matmul %18, %48, %cst_14 {dimension_numbers = #tpu.dot_dimension_numbers<[1], [0], [0], [1], [0, 0, 1, 1], [], []>} : vector<512x8xbf16>, vector<8x4xbf16>, vector<512x4xf32> -> vector<512x4xf32>
    %50 = arith.addf %47, %49 : vector<512x4xf32>
    %51 = vector.extract_strided_slice %1 {offsets = [112, 0], sizes = [8, 4], strides = [1, 1]} : vector<288x4xbf16> to vector<8x4xbf16>
    %cst_15 = arith.constant dense<0.000000e+00> : vector<512x4xf32>
    %52 = tpu.matmul %21, %51, %cst_15 {dimension_numbers = #tpu.dot_dimension_numbers<[1], [0], [0], [1], [0, 0, 1, 1], [], []>} : vector<512x8xbf16>, vector<8x4xbf16>, vector<512x4xf32> -> vector<512x4xf32>
    %53 = arith.addf %50, %52 : vector<512x4xf32>
    %54 = tpu.transpose %53, [1, 0] : vector<512x4xf32> -> vector<4x512xf32>
    %55 = vector.extract_strided_slice %1 {offsets = [168, 0], sizes = [8, 4], strides = [1, 1]} : vector<288x4xbf16> to vector<8x4xbf16>
    %cst_16 = arith.constant dense<0.000000e+00> : vector<512x4xf32>
    %56 = tpu.matmul %15, %55, %cst_16 {dimension_numbers = #tpu.dot_dimension_numbers<[1], [0], [0], [1], [0, 0, 1, 1], [], []>} : vector<512x8xbf16>, vector<8x4xbf16>, vector<512x4xf32> -> vector<512x4xf32>
    %57 = vector.extract_strided_slice %1 {offsets = [176, 0], sizes = [8, 4], strides = [1, 1]} : vector<288x4xbf16> to vector<8x4xbf16>
    %cst_17 = arith.constant dense<0.000000e+00> : vector<512x4xf32>
    %58 = tpu.matmul %18, %57, %cst_17 {dimension_numbers = #tpu.dot_dimension_numbers<[1], [0], [0], [1], [0, 0, 1, 1], [], []>} : vector<512x8xbf16>, vector<8x4xbf16>, vector<512x4xf32> -> vector<512x4xf32>
    %59 = arith.addf %56, %58 : vector<512x4xf32>
    %60 = vector.extract_strided_slice %1 {offsets = [192, 0], sizes = [8, 4], strides = [1, 1]} : vector<288x4xbf16> to vector<8x4xbf16>
    %cst_18 = arith.constant dense<0.000000e+00> : vector<512x4xf32>
    %61 = tpu.matmul %24, %60, %cst_18 {dimension_numbers = #tpu.dot_dimension_numbers<[1], [0], [0], [1], [0, 0, 1, 1], [], []>} : vector<512x8xbf16>, vector<8x4xbf16>, vector<512x4xf32> -> vector<512x4xf32>
    %62 = arith.addf %59, %61 : vector<512x4xf32>
    %63 = vector.extract_strided_slice %1 {offsets = [200, 0], sizes = [8, 4], strides = [1, 1]} : vector<288x4xbf16> to vector<8x4xbf16>
    %cst_19 = arith.constant dense<0.000000e+00> : vector<512x4xf32>
    %64 = tpu.matmul %27, %63, %cst_19 {dimension_numbers = #tpu.dot_dimension_numbers<[1], [0], [0], [1], [0, 0, 1, 1], [], []>} : vector<512x8xbf16>, vector<8x4xbf16>, vector<512x4xf32> -> vector<512x4xf32>
    %65 = arith.addf %62, %64 : vector<512x4xf32>
    %66 = tpu.transpose %65, [1, 0] : vector<512x4xf32> -> vector<4x512xf32>
    %67 = vector.extract_strided_slice %1 {offsets = [248, 0], sizes = [8, 4], strides = [1, 1]} : vector<288x4xbf16> to vector<8x4xbf16>
    %cst_20 = arith.constant dense<0.000000e+00> : vector<512x4xf32>
    %68 = tpu.matmul %18, %67, %cst_20 {dimension_numbers = #tpu.dot_dimension_numbers<[1], [0], [0], [1], [0, 0, 1, 1], [], []>} : vector<512x8xbf16>, vector<8x4xbf16>, vector<512x4xf32> -> vector<512x4xf32>
    %69 = vector.extract_strided_slice %1 {offsets = [256, 0], sizes = [8, 4], strides = [1, 1]} : vector<288x4xbf16> to vector<8x4xbf16>
    %cst_21 = arith.constant dense<0.000000e+00> : vector<512x4xf32>
    %70 = tpu.matmul %21, %69, %cst_21 {dimension_numbers = #tpu.dot_dimension_numbers<[1], [0], [0], [1], [0, 0, 1, 1], [], []>} : vector<512x8xbf16>, vector<8x4xbf16>, vector<512x4xf32> -> vector<512x4xf32>
    %71 = arith.addf %68, %70 : vector<512x4xf32>
    %72 = vector.extract_strided_slice %1 {offsets = [272, 0], sizes = [8, 4], strides = [1, 1]} : vector<288x4xbf16> to vector<8x4xbf16>
    %cst_22 = arith.constant dense<0.000000e+00> : vector<512x4xf32>
    %73 = tpu.matmul %27, %72, %cst_22 {dimension_numbers = #tpu.dot_dimension_numbers<[1], [0], [0], [1], [0, 0, 1, 1], [], []>} : vector<512x8xbf16>, vector<8x4xbf16>, vector<512x4xf32> -> vector<512x4xf32>
    %74 = arith.addf %71, %73 : vector<512x4xf32>
    %75 = vector.extract_strided_slice %1 {offsets = [280, 0], sizes = [8, 4], strides = [1, 1]} : vector<288x4xbf16> to vector<8x4xbf16>
    %cst_23 = arith.constant dense<0.000000e+00> : vector<512x4xf32>
    %76 = tpu.matmul %30, %75, %cst_23 {dimension_numbers = #tpu.dot_dimension_numbers<[1], [0], [0], [1], [0, 0, 1, 1], [], []>} : vector<512x8xbf16>, vector<8x4xbf16>, vector<512x4xf32> -> vector<512x4xf32>
    %77 = arith.addf %74, %76 : vector<512x4xf32>
    %78 = tpu.transpose %77, [1, 0] : vector<512x4xf32> -> vector<4x512xf32>
    %cst_24 = arith.constant dense<0.000000e+00> : vector<4xf32>
    %79 = vector.multi_reduction <add>, %42, %cst_24 [1] : vector<4x512xf32> to vector<4xf32>
    %80 = vector.shape_cast %79 : vector<4xf32> to vector<4x1xf32>
    %cst_25 = arith.constant 0.000000e+00 : f32
    %81 = vector.broadcast %cst_25 : f32 to vector<4x1xf32>
    %82 = arith.addf %81, %80 : vector<4x1xf32>
    %cst_26 = arith.constant dense<0.000000e+00> : vector<4xf32>
    %83 = vector.multi_reduction <add>, %54, %cst_26 [1] : vector<4x512xf32> to vector<4xf32>
    %84 = vector.shape_cast %83 : vector<4xf32> to vector<4x1xf32>
    %85 = arith.addf %82, %84 : vector<4x1xf32>
    %cst_27 = arith.constant dense<0.000000e+00> : vector<4xf32>
    %86 = vector.multi_reduction <add>, %66, %cst_27 [1] : vector<4x512xf32> to vector<4xf32>
    %87 = vector.shape_cast %86 : vector<4xf32> to vector<4x1xf32>
    %88 = arith.addf %85, %87 : vector<4x1xf32>
    %cst_28 = arith.constant dense<0.000000e+00> : vector<4xf32>
    %89 = vector.multi_reduction <add>, %78, %cst_28 [1] : vector<4x512xf32> to vector<4xf32>
    %90 = vector.shape_cast %89 : vector<4xf32> to vector<4x1xf32>
    %91 = arith.addf %88, %90 : vector<4x1xf32>
    %cst_29 = arith.constant 4.8828125E-4 : f32
    %92 = vector.broadcast %cst_29 : f32 to vector<4x1xf32>
    %93 = arith.mulf %91, %92 : vector<4x1xf32>
    %94 = vector.broadcast %93 : vector<4x1xf32> to vector<4x512xf32>
    %95 = arith.subf %42, %94 : vector<4x512xf32>
    %96 = arith.mulf %95, %95 : vector<4x512xf32>
    %cst_30 = arith.constant dense<0.000000e+00> : vector<4xf32>
    %97 = vector.multi_reduction <add>, %96, %cst_30 [1] : vector<4x512xf32> to vector<4xf32>
    %98 = vector.shape_cast %97 : vector<4xf32> to vector<4x1xf32>
    %cst_31 = arith.constant 0.000000e+00 : f32
    %99 = vector.broadcast %cst_31 : f32 to vector<4x1xf32>
    %100 = arith.addf %99, %98 : vector<4x1xf32>
    %101 = vector.broadcast %93 : vector<4x1xf32> to vector<4x512xf32>
    %102 = arith.subf %54, %101 : vector<4x512xf32>
    %103 = arith.mulf %102, %102 : vector<4x512xf32>
    %cst_32 = arith.constant dense<0.000000e+00> : vector<4xf32>
    %104 = vector.multi_reduction <add>, %103, %cst_32 [1] : vector<4x512xf32> to vector<4xf32>
    %105 = vector.shape_cast %104 : vector<4xf32> to vector<4x1xf32>
    %106 = arith.addf %100, %105 : vector<4x1xf32>
    %107 = vector.broadcast %93 : vector<4x1xf32> to vector<4x512xf32>
    %108 = arith.subf %66, %107 : vector<4x512xf32>
    %109 = arith.mulf %108, %108 : vector<4x512xf32>
    %cst_33 = arith.constant dense<0.000000e+00> : vector<4xf32>
    %110 = vector.multi_reduction <add>, %109, %cst_33 [1] : vector<4x512xf32> to vector<4xf32>
    %111 = vector.shape_cast %110 : vector<4xf32> to vector<4x1xf32>
    %112 = arith.addf %106, %111 : vector<4x1xf32>
    %113 = vector.broadcast %93 : vector<4x1xf32> to vector<4x512xf32>
    %114 = arith.subf %78, %113 : vector<4x512xf32>
    %115 = arith.mulf %114, %114 : vector<4x512xf32>
    %cst_34 = arith.constant dense<0.000000e+00> : vector<4xf32>
    %116 = vector.multi_reduction <add>, %115, %cst_34 [1] : vector<4x512xf32> to vector<4xf32>
    %117 = vector.shape_cast %116 : vector<4xf32> to vector<4x1xf32>
    %118 = arith.addf %112, %117 : vector<4x1xf32>
    %cst_35 = arith.constant 4.8828125E-4 : f32
    %119 = vector.broadcast %cst_35 : f32 to vector<4x1xf32>
    %120 = arith.mulf %118, %119 : vector<4x1xf32>
    %cst_36 = arith.constant 9.99999974E-6 : f32
    %121 = vector.broadcast %cst_36 : f32 to vector<4x1xf32>
    %122 = arith.addf %120, %121 : vector<4x1xf32>
    %123 = math.rsqrt %122 : vector<4x1xf32>
    %124 = arith.mulf %2, %123 : vector<4x1xf32>
    %125 = arith.mulf %93, %124 : vector<4x1xf32>
    %126 = arith.subf %3, %125 : vector<4x1xf32>
    %127 = vector.broadcast %124 : vector<4x1xf32> to vector<4x512xf32>
    %128 = arith.mulf %42, %127 : vector<4x512xf32>
    %129 = vector.broadcast %126 : vector<4x1xf32> to vector<4x512xf32>
    %130 = arith.addf %128, %129 : vector<4x512xf32>
    %cst_37 = arith.constant 0.000000e+00 : f32
    %131 = vector.broadcast %cst_37 : f32 to vector<4x512xf32>
    %132 = arith.maximumf %130, %131 : vector<4x512xf32>
    %c0_38 = arith.constant 0 : index
    %c0_39 = arith.constant 0 : index
    %c0_40 = arith.constant 0 : index
    %c0_41 = arith.constant 0 : index
    %133 = vector.load %arg4[%c0_38, %c0_39, %c0_40, %c0_41] : memref<2x2x4x512xf32, #tpu.memory_space<vmem>>, vector<1x1x4x512xf32>
    %134 = vector.shape_cast %133 : vector<1x1x4x512xf32> to vector<4x512xf32>
    %135 = vector.shape_cast %132 : vector<4x512xf32> to vector<1x1x4x512xf32>
    tpu.vector_store %arg4[%c0_38, %c0_39, %c0_40, %c0_41], %135 {strides = array<i32>} : memref<2x2x4x512xf32, #tpu.memory_space<vmem>>, vector<1x1x4x512xf32>,
    %136 = vector.broadcast %124 : vector<4x1xf32> to vector<4x512xf32>
    %137 = arith.mulf %54, %136 : vector<4x512xf32>
    %138 = vector.broadcast %126 : vector<4x1xf32> to vector<4x512xf32>
    %139 = arith.addf %137, %138 : vector<4x512xf32>
    %cst_42 = arith.constant 0.000000e+00 : f32
    %140 = vector.broadcast %cst_42 : f32 to vector<4x512xf32>
    %141 = arith.maximumf %139, %140 : vector<4x512xf32>
    %c0_43 = arith.constant 0 : index
    %c1 = arith.constant 1 : index
    %c0_44 = arith.constant 0 : index
    %c0_45 = arith.constant 0 : index
    %142 = vector.load %arg4[%c0_43, %c1, %c0_44, %c0_45] : memref<2x2x4x512xf32, #tpu.memory_space<vmem>>, vector<1x1x4x512xf32>
    %143 = vector.shape_cast %142 : vector<1x1x4x512xf32> to vector<4x512xf32>
    %144 = vector.shape_cast %141 : vector<4x512xf32> to vector<1x1x4x512xf32>
    tpu.vector_store %arg4[%c0_43, %c1, %c0_44, %c0_45], %144 {strides = array<i32>} : memref<2x2x4x512xf32, #tpu.memory_space<vmem>>, vector<1x1x4x512xf32>,
    %145 = vector.broadcast %124 : vector<4x1xf32> to vector<4x512xf32>
    %146 = arith.mulf %66, %145 : vector<4x512xf32>
    %147 = vector.broadcast %126 : vector<4x1xf32> to vector<4x512xf32>
    %148 = arith.addf %146, %147 : vector<4x512xf32>
    %cst_46 = arith.constant 0.000000e+00 : f32
    %149 = vector.broadcast %cst_46 : f32 to vector<4x512xf32>
    %150 = arith.maximumf %148, %149 : vector<4x512xf32>
    %c1_47 = arith.constant 1 : index
    %c0_48 = arith.constant 0 : index
    %c0_49 = arith.constant 0 : index
    %c0_50 = arith.constant 0 : index
    %151 = vector.load %arg4[%c1_47, %c0_48, %c0_49, %c0_50] : memref<2x2x4x512xf32, #tpu.memory_space<vmem>>, vector<1x1x4x512xf32>
    %152 = vector.shape_cast %151 : vector<1x1x4x512xf32> to vector<4x512xf32>
    %153 = vector.shape_cast %150 : vector<4x512xf32> to vector<1x1x4x512xf32>
    tpu.vector_store %arg4[%c1_47, %c0_48, %c0_49, %c0_50], %153 {strides = array<i32>} : memref<2x2x4x512xf32, #tpu.memory_space<vmem>>, vector<1x1x4x512xf32>,
    %154 = vector.broadcast %124 : vector<4x1xf32> to vector<4x512xf32>
    %155 = arith.mulf %78, %154 : vector<4x512xf32>
    %156 = vector.broadcast %126 : vector<4x1xf32> to vector<4x512xf32>
    %157 = arith.addf %155, %156 : vector<4x512xf32>
    %cst_51 = arith.constant 0.000000e+00 : f32
    %158 = vector.broadcast %cst_51 : f32 to vector<4x512xf32>
    %159 = arith.maximumf %157, %158 : vector<4x512xf32>
    %c1_52 = arith.constant 1 : index
    %c1_53 = arith.constant 1 : index
    %c0_54 = arith.constant 0 : index
    %c0_55 = arith.constant 0 : index
    %160 = vector.load %arg4[%c1_52, %c1_53, %c0_54, %c0_55] : memref<2x2x4x512xf32, #tpu.memory_space<vmem>>, vector<1x1x4x512xf32>
    %161 = vector.shape_cast %160 : vector<1x1x4x512xf32> to vector<4x512xf32>
    %162 = vector.shape_cast %159 : vector<4x512xf32> to vector<1x1x4x512xf32>
    tpu.vector_store %arg4[%c1_52, %c1_53, %c0_54, %c0_55], %162 {strides = array<i32>} : memref<2x2x4x512xf32, #tpu.memory_space<vmem>>, vector<1x1x4x512xf32>,
    return
  }
}

</mosaic_0001>

<llo_original>
// kernel: tpu_custom_call.1
$region0: #{tpu_custom_call.1}
  #allocation0 [shape = 'u32[]', space=smem, size = 0x4, offset = 0x4, fixed_abs, tag = 'smem constant byte address 0x4 - core index']
  #allocation1 [shape = 'u32[72,128]{1,0:T(1,128)}', space=vmem, size = 0x9000, scoped, tag = 'internal scratch']
  %s0 = inlined_call_operand.vmem [shape: f32[2,18,18,8], index: 0, kind: input, shape index: {}]
  %s1 = inlined_call_operand.vmem [shape: bf16[288,4], index: 1, kind: input, shape index: {}]
  %s2 = inlined_call_operand.vmem [shape: f32[4,1], index: 2, kind: input, shape index: {}]
  %s3 = inlined_call_operand.vmem [shape: f32[4,1], index: 3, kind: input, shape index: {}]
  %s4 = inlined_call_operand.hbm [shape: f32[2,2,4,512], index: 4, kind: output, shape index: {}]
  %s5 = sld [smem:[#allocation0]]
  $region26: #{tpu_custom_call.1} parent=0
    _
  %s7 = ssub.s32 1, %s5
  %s8 = scalar_select 0, %s7, %s5
  $region1: #{tpu_custom_call.1} parent=0
    #allocation2 [shape = 'u8[32768]{0}', space=vmem, size = 0x8000, scoped, tag = 'output window, operand 0, single buffered']
    #allocation3 [shape = 's32[1]{0}', space=sflag, size = 0x4, scoped, tag = 'scoped memory for tpu_custom_call.1']
    %9 = vsyncpa [#allocation3], 0
    // Predicated region
    $region2: #{tpu_custom_call.1} parent=1 // pred_check
      _
    $region3: #{tpu_custom_call.1} parent=1 // pred_check_branch
      %11 = sbr.rel (0) target = $region5
    $region4: #{tpu_custom_call.1} parent=1 // pred_region
      _
    $region5: #{tpu_custom_call.1} parent=1 // pred_fallthru
      _
    // Predicated region
    $region6: #{tpu_custom_call.1} parent=1 // pred_check
      _
    $region7: #{tpu_custom_call.1} parent=1 // pred_check_branch
      %13 = sbr.rel (0) target = $region9
    $region8: #{tpu_custom_call.1} parent=1 // pred_region
      _
    $region9: #{tpu_custom_call.1} parent=1 // pred_fallthru
      _
    // Predicated region
    $region10: #{tpu_custom_call.1} parent=1 // pred_check
      _
    $region11: #{tpu_custom_call.1} parent=1 // pred_check_branch
      %15 = sbr.rel (0) target = $region13
    $region12: #{tpu_custom_call.1} parent=1 // pred_region
      _
    $region13: #{tpu_custom_call.1} parent=1 // pred_fallthru
      _
    // Predicated region
    $region14: #{tpu_custom_call.1} parent=1 // pred_check
      _
    $region15: #{tpu_custom_call.1} parent=1 // pred_check_branch
      %17 = sbr.rel (0) target = $region17
    $region16: #{tpu_custom_call.1} parent=1 // pred_region
      _
    $region17: #{tpu_custom_call.1} parent=1 // pred_fallthru
      _
    %v19 = vld [vmem:[%s0] sm:$0xff]
    %v20 = vld [vmem:[%s0 + $0x8] sm:$0xff]
    %v21 = vld [vmem:[%s0 + $0x10] sm:$0x3]
    %v22 = vld [vmem:[%s0 + $0x18] sm:$0xff]
    %v23 = vld [vmem:[%s0 + $0x20] sm:$0xff]
    %v24 = vld [vmem:[%s0 + $0x28] sm:$0x3]
    %v25 = vld [vmem:[%s0 + $0x30] sm:$0xff]
    %v26 = vld [vmem:[%s0 + $0x38] sm:$0xff]
    %v27 = vld [vmem:[%s0 + $0x40] sm:$0x3]
    %v28 = vld [vmem:[%s0 + $0x48] sm:$0xff]
    %v29 = vld [vmem:[%s0 + $0x50] sm:$0xff]
    %v30 = vld [vmem:[%s0 + $0x58] sm:$0x3]
    %v31 = vld [vmem:[%s0 + $0x60] sm:$0xff]
    %v32 = vld [vmem:[%s0 + $0x68] sm:$0xff]
    %v33 = vld [vmem:[%s0 + $0x70] sm:$0x3]
    %v34 = vld [vmem:[%s0 + $0x78] sm:$0xff]
    %v35 = vld [vmem:[%s0 + $0x80] sm:$0xff]
    %v36 = vld [vmem:[%s0 + $0x88] sm:$0x3]
    %v37 = vld [vmem:[%s0 + $0x90] sm:$0xff]
    %v38 = vld [vmem:[%s0 + $0x98] sm:$0xff]
    %v39 = vld [vmem:[%s0 + $0xa0] sm:$0x3]
    %v40 = vld [vmem:[%s0 + $0xa8] sm:$0xff]
    %v41 = vld [vmem:[%s0 + $0xb0] sm:$0xff]
    %v42 = vld [vmem:[%s0 + $0xb8] sm:$0x3]
    %v43 = vld [vmem:[%s0 + $0xc0] sm:$0xff]
    %v44 = vld [vmem:[%s0 + $0xc8] sm:$0xff]
    %v45 = vld [vmem:[%s0 + $0xd0] sm:$0x3]
    %v46 = vld [vmem:[%s0 + $0xd8] sm:$0xff]
    %v47 = vld [vmem:[%s0 + $0xe0] sm:$0xff]
    %v48 = vld [vmem:[%s0 + $0xe8] sm:$0x3]
    %v49 = vld [vmem:[%s0 + $0xf0] sm:$0xff]
    %v50 = vld [vmem:[%s0 + $0xf8] sm:$0xff]
    %v51 = vld [vmem:[%s0 + $0x100] sm:$0x3]
    %v52 = vld [vmem:[%s0 + $0x108] sm:$0xff]
    %v53 = vld [vmem:[%s0 + $0x110] sm:$0xff]
    %v54 = vld [vmem:[%s0 + $0x118] sm:$0x3]
    %v55 = vld [vmem:[%s0 + $0x120] sm:$0xff]
    %v56 = vld [vmem:[%s0 + $0x128] sm:$0xff]
    %v57 = vld [vmem:[%s0 + $0x130] sm:$0x3]
    %v58 = vld [vmem:[%s0 + $0x138] sm:$0xff]
    %v59 = vld [vmem:[%s0 + $0x140] sm:$0xff]
    %v60 = vld [vmem:[%s0 + $0x148] sm:$0x3]
    %v61 = vld [vmem:[%s0 + $0x150] sm:$0xff]
    %v62 = vld [vmem:[%s0 + $0x158] sm:$0xff]
    %v63 = vld [vmem:[%s0 + $0x160] sm:$0x3]
    %v64 = vld [vmem:[%s0 + $0x168] sm:$0xff]
    %v65 = vld [vmem:[%s0 + $0x170] sm:$0xff]
    %v66 = vld [vmem:[%s0 + $0x178] sm:$0x3]
    %v67 = vld [vmem:[%s0 + $0x180] sm:$0xff]
    %v68 = vld [vmem:[%s0 + $0x188] sm:$0xff]
    %v69 = vld [vmem:[%s0 + $0x190] sm:$0x3]
    %v70 = vld [vmem:[%s0 + $0x198] sm:$0xff]
    %v71 = vld [vmem:[%s0 + $0x1a0] sm:$0xff]
    %v72 = vld [vmem:[%s0 + $0x1a8] sm:$0x3]
    %v73 = vld [vmem:[%s0 + $0x1b0] sm:$0xff]
    %v74 = vld [vmem:[%s0 + $0x1b8] sm:$0xff]
    %v75 = vld [vmem:[%s0 + $0x1c0] sm:$0x3]
    %v76 = vld [vmem:[%s0 + $0x1c8] sm:$0xff]
    %v77 = vld [vmem:[%s0 + $0x1d0] sm:$0xff]
    %v78 = vld [vmem:[%s0 + $0x1d8] sm:$0x3]
    %v79 = vld [vmem:[%s0 + $0x1e0] sm:$0xff]
    %v80 = vld [vmem:[%s0 + $0x1e8] sm:$0xff]
    %v81 = vld [vmem:[%s0 + $0x1f0] sm:$0x3]
    %v82 = vld [vmem:[%s0 + $0x1f8] sm:$0xff]
    %v83 = vld [vmem:[%s0 + $0x200] sm:$0xff]
    %v84 = vld [vmem:[%s0 + $0x208] sm:$0x3]
    %v85 = vld [vmem:[%s0 + $0x210] sm:$0xff]
    %v86 = vld [vmem:[%s0 + $0x218] sm:$0xff]
    %v87 = vld [vmem:[%s0 + $0x220] sm:$0x3]
    %v88 = vld [vmem:[%s0 + $0x228] sm:$0xff]
    %v89 = vld [vmem:[%s0 + $0x230] sm:$0xff]
    %v90 = vld [vmem:[%s0 + $0x238] sm:$0x3]
    %v91 = vld [vmem:[%s0 + $0x240] sm:$0xff]
    %v92 = vld [vmem:[%s0 + $0x248] sm:$0xff]
    %v93 = vld [vmem:[%s0 + $0x250] sm:$0x3]
    %v94 = vld [vmem:[%s0 + $0x258] sm:$0xff]
    %v95 = vld [vmem:[%s0 + $0x260] sm:$0xff]
    %v96 = vld [vmem:[%s0 + $0x268] sm:$0x3]
    %v97 = vld [vmem:[%s0 + $0x270] sm:$0xff]
    %v98 = vld [vmem:[%s0 + $0x278] sm:$0xff]
    %v99 = vld [vmem:[%s0 + $0x280] sm:$0x3]
    %v100 = vld [vmem:[%s0 + $0x288] sm:$0xff]
    %v101 = vld [vmem:[%s0 + $0x290] sm:$0xff]
    %v102 = vld [vmem:[%s0 + $0x298] sm:$0x3]
    %v103 = vld [vmem:[%s0 + $0x2a0] sm:$0xff]
    %v104 = vld [vmem:[%s0 + $0x2a8] sm:$0xff]
    %v105 = vld [vmem:[%s0 + $0x2b0] sm:$0x3]
    %v106 = vld [vmem:[%s0 + $0x2b8] sm:$0xff]
    %v107 = vld [vmem:[%s0 + $0x2c0] sm:$0xff]
    %v108 = vld [vmem:[%s0 + $0x2c8] sm:$0x3]
    %v109 = vld [vmem:[%s0 + $0x2d0] sm:$0xff]
    %v110 = vld [vmem:[%s0 + $0x2d8] sm:$0xff]
    %v111 = vld [vmem:[%s0 + $0x2e0] sm:$0x3]
    %v112 = vld [vmem:[%s0 + $0x2e8] sm:$0xff]
    %v113 = vld [vmem:[%s0 + $0x2f0] sm:$0xff]
    %v114 = vld [vmem:[%s0 + $0x2f8] sm:$0x3]
    %v115 = vld [vmem:[%s0 + $0x300] sm:$0xff]
    %v116 = vld [vmem:[%s0 + $0x308] sm:$0xff]
    %v117 = vld [vmem:[%s0 + $0x310] sm:$0x3]
    %v118 = vld [vmem:[%s0 + $0x318] sm:$0xff]
    %v119 = vld [vmem:[%s0 + $0x320] sm:$0xff]
    %v120 = vld [vmem:[%s0 + $0x328] sm:$0x3]
    %v121 = vld [vmem:[%s0 + $0x330] sm:$0xff]
    %v122 = vld [vmem:[%s0 + $0x338] sm:$0xff]
    %v123 = vld [vmem:[%s0 + $0x340] sm:$0x3]
    %v124 = vld [vmem:[%s0 + $0x348] sm:$0xff]
    %v125 = vld [vmem:[%s0 + $0x350] sm:$0xff]
    %v126 = vld [vmem:[%s0 + $0x358] sm:$0x3]
    %v127 = vld [vmem:[%s1] sm:$0xf]
    %v128 = vld [vmem:[%s1 + $0x4] sm:$0xf]
    %v129 = vld [vmem:[%s1 + $0xc] sm:$0xf]
    %v130 = vld [vmem:[%s1 + $0x10] sm:$0xf]
    %v131 = vld [vmem:[%s1 + $0x28] sm:$0xf]
    %v132 = vld [vmem:[%s1 + $0x2c] sm:$0xf]
    %v133 = vld [vmem:[%s1 + $0x34] sm:$0xf]
    %v134 = vld [vmem:[%s1 + $0x38] sm:$0xf]
    %v135 = vld [vmem:[%s1 + $0x54] sm:$0xf]
    %v136 = vld [vmem:[%s1 + $0x58] sm:$0xf]
    %v137 = vld [vmem:[%s1 + $0x60] sm:$0xf]
    %v138 = vld [vmem:[%s1 + $0x64] sm:$0xf]
    %v139 = vld [vmem:[%s1 + $0x7c] sm:$0xf]
    %v140 = vld [vmem:[%s1 + $0x80] sm:$0xf]
    %v141 = vld [vmem:[%s1 + $0x88] sm:$0xf]
    %v142 = vld [vmem:[%s1 + $0x8c] sm:$0xf]
    %v143 = vld [vmem:[%s2] sm:$0xf]
    %v144 = vld [vmem:[%s3] sm:$0xf]
    %v145 = vpack.c.bf16 %v20, %v19
    %v146 = vpack.c.bf16 %v23, %v22
    %v147 = vpack.c.bf16 %v26, %v25
    %v148 = vpack.c.bf16 %v29, %v28
    %v149 = vpack.c.bf16 %v32, %v31
    %v150 = vpack.c.bf16 %v35, %v34
    %v151 = vpack.c.bf16 %v38, %v37
    %v152 = vpack.c.bf16 %v41, %v40
    %v153 = vpack.c.bf16 %v44, %v43
    %v154 = vpack.c.bf16 %v47, %v46
    %v155 = vpack.c.bf16 %v50, %v49
    %v156 = vpack.c.bf16 %v53, %v52
    %v157 = vpack.c.bf16 %v56, %v55
    %v158 = vpack.c.bf16 %v59, %v58
    %v159 = vpack.c.bf16 %v62, %v61
    %v160 = vpack.c.bf16 %v65, %v64
    %v161 = vpack.c.bf16 %v74, %v73
    %v162 = vpack.c.bf16 %v77, %v76
    %v163 = vpack.c.bf16 %v80, %v79
    %v164 = vpack.c.bf16 %v83, %v82
    %v165 = vpack.c.bf16 %v86, %v85
    %v166 = vpack.c.bf16 %v89, %v88
    %v167 = vpack.c.bf16 %v92, %v91
    %v168 = vpack.c.bf16 %v95, %v94
    %v169 = vpack.c.bf16 %v98, %v97
    %v170 = vpack.c.bf16 %v101, %v100
    %v171 = vpack.c.bf16 %v104, %v103
    %v172 = vpack.c.bf16 %v107, %v106
    %v173 = vpack.c.bf16 %v110, %v109
    %v174 = vpack.c.bf16 %v113, %v112
    %v175 = vpack.c.bf16 %v116, %v115
    %v176 = vpack.c.bf16 %v119, %v118
    %vm273 = vcmask 1046528
    %v274 = vrot.slane %v19, 1
    %v275 = vrot.slane %v20, 1
    %v276 = vsel %vm273, %v274, %v275
    %v277 = vrot.slane %v21, 1
    %v278 = vsel %vm273, %v275, %v277
    %v279 = vrot.slane %v22, 1
    %v280 = vrot.slane %v23, 1
    %v281 = vsel %vm273, %v279, %v280
    %v282 = vrot.slane %v24, 1
    %v283 = vsel %vm273, %v280, %v282
    %v284 = vrot.slane %v25, 1
    %v285 = vrot.slane %v26, 1
    %v286 = vsel %vm273, %v284, %v285
    %v287 = vrot.slane %v27, 1
    %v288 = vsel %vm273, %v285, %v287
    %v289 = vrot.slane %v28, 1
    %v290 = vrot.slane %v29, 1
    %v291 = vsel %vm273, %v289, %v290
    %v292 = vrot.slane %v30, 1
    %v293 = vsel %vm273, %v290, %v292
    %v294 = vrot.slane %v31, 1
    %v295 = vrot.slane %v32, 1
    %v296 = vsel %vm273, %v294, %v295
    %v297 = vrot.slane %v33, 1
    %v298 = vsel %vm273, %v295, %v297
    %v299 = vrot.slane %v34, 1
    %v300 = vrot.slane %v35, 1
    %v301 = vsel %vm273, %v299, %v300
    %v302 = vrot.slane %v36, 1
    %v303 = vsel %vm273, %v300, %v302
    %v304 = vrot.slane %v37, 1
    %v305 = vrot.slane %v38, 1
    %v306 = vsel %vm273, %v304, %v305
    %v307 = vrot.slane %v39, 1
    %v308 = vsel %vm273, %v305, %v307
    %v309 = vrot.slane %v40, 1
    %v310 = vrot.slane %v41, 1
    %v311 = vsel %vm273, %v309, %v310
    %v312 = vrot.slane %v42, 1
    %v313 = vsel %vm273, %v310, %v312
    %v314 = vrot.slane %v43, 1
    %v315 = vrot.slane %v44, 1
    %v316 = vsel %vm273, %v314, %v315
    %v317 = vrot.slane %v45, 1
    %v318 = vsel %vm273, %v315, %v317
    %v319 = vrot.slane %v46, 1
    %v320 = vrot.slane %v47, 1
    %v321 = vsel %vm273, %v319, %v320
    %v322 = vrot.slane %v48, 1
    %v323 = vsel %vm273, %v320, %v322
    %v324 = vrot.slane %v49, 1
    %v325 = vrot.slane %v50, 1
    %v326 = vsel %vm273, %v324, %v325
    %v327 = vrot.slane %v51, 1
    %v328 = vsel %vm273, %v325, %v327
    %v329 = vrot.slane %v52, 1
    %v330 = vrot.slane %v53, 1
    %v331 = vsel %vm273, %v329, %v330
    %v332 = vrot.slane %v54, 1
    %v333 = vsel %vm273, %v330, %v332
    %v334 = vrot.slane %v55, 1
    %v335 = vrot.slane %v56, 1
    %v336 = vsel %vm273, %v334, %v335
    %v337 = vrot.slane %v57, 1
    %v338 = vsel %vm273, %v335, %v337
    %v339 = vrot.slane %v58, 1
    %v340 = vrot.slane %v59, 1
    %v341 = vsel %vm273, %v339, %v340
    %v342 = vrot.slane %v60, 1
    %v343 = vsel %vm273, %v340, %v342
    %v344 = vrot.slane %v61, 1
    %v345 = vrot.slane %v62, 1
    %v346 = vsel %vm273, %v344, %v345
    %v347 = vrot.slane %v63, 1
    %v348 = vsel %vm273, %v345, %v347
    %v349 = vrot.slane %v64, 1
    %v350 = vrot.slane %v65, 1
    %v351 = vsel %vm273, %v349, %v350
    %v352 = vrot.slane %v66, 1
    %v353 = vsel %vm273, %v350, %v352
    %v354 = vrot.slane %v73, 1
    %v355 = vrot.slane %v74, 1
    %v356 = vsel %vm273, %v354, %v355
    %v357 = vrot.slane %v75, 1
    %v358 = vsel %vm273, %v355, %v357
    %v359 = vrot.slane %v76, 1
    %v360 = vrot.slane %v77, 1
    %v361 = vsel %vm273, %v359, %v360
    %v362 = vrot.slane %v78, 1
    %v363 = vsel %vm273, %v360, %v362
    %v364 = vrot.slane %v79, 1
    %v365 = vrot.slane %v80, 1
    %v366 = vsel %vm273, %v364, %v365
    %v367 = vrot.slane %v81, 1
    %v368 = vsel %vm273, %v365, %v367
    %v369 = vrot.slane %v82, 1
    %v370 = vrot.slane %v83, 1
    %v371 = vsel %vm273, %v369, %v370
    %v372 = vrot.slane %v84, 1
    %v373 = vsel %vm273, %v370, %v372
    %v374 = vrot.slane %v85, 1
    %v375 = vrot.slane %v86, 1
    %v376 = vsel %vm273, %v374, %v375
    %v377 = vrot.slane %v87, 1
    %v378 = vsel %vm273, %v375, %v377
    %v379 = vrot.slane %v88, 1
    %v380 = vrot.slane %v89, 1
    %v381 = vsel %vm273, %v379, %v380
    %v382 = vrot.slane %v90, 1
    %v383 = vsel %vm273, %v380, %v382
    %v384 = vrot.slane %v91, 1
    %v385 = vrot.slane %v92, 1
    %v386 = vsel %vm273, %v384, %v385
    %v387 = vrot.slane %v93, 1
    %v388 = vsel %vm273, %v385, %v387
    %v389 = vrot.slane %v94, 1
    %v390 = vrot.slane %v95, 1
    %v391 = vsel %vm273, %v389, %v390
    %v392 = vrot.slane %v96, 1
    %v393 = vsel %vm273, %v390, %v392
    %v394 = vrot.slane %v97, 1
    %v395 = vrot.slane %v98, 1
    %v396 = vsel %vm273, %v394, %v395
    %v397 = vrot.slane %v99, 1
    %v398 = vsel %vm273, %v395, %v397
    %v399 = vrot.slane %v100, 1
    %v400 = vrot.slane %v101, 1
    %v401 = vsel %vm273, %v399, %v400
    %v402 = vrot.slane %v102, 1
    %v403 = vsel %vm273, %v400, %v402
    %v404 = vrot.slane %v103, 1
    %v405 = vrot.slane %v104, 1
    %v406 = vsel %vm273, %v404, %v405
    %v407 = vrot.slane %v105, 1
    %v408 = vsel %vm273, %v405, %v407
    %v409 = vrot.slane %v106, 1
    %v410 = vrot.slane %v107, 1
    %v411 = vsel %vm273, %v409, %v410
    %v412 = vrot.slane %v108, 1
    %v413 = vsel %vm273, %v410, %v412
    %v414 = vrot.slane %v109, 1
    %v415 = vrot.slane %v110, 1
    %v416 = vsel %vm273, %v414, %v415
    %v417 = vrot.slane %v111, 1
    %v418 = vsel %vm273, %v415, %v417
    %v419 = vrot.slane %v112, 1
    %v420 = vrot.slane %v113, 1
    %v421 = vsel %vm273, %v419, %v420
    %v422 = vrot.slane %v114, 1
    %v423 = vsel %vm273, %v420, %v422
    %v424 = vrot.slane %v115, 1
    %v425 = vrot.slane %v116, 1
    %v426 = vsel %vm273, %v424, %v425
    %v427 = vrot.slane %v117, 1
    %v428 = vsel %vm273, %v425, %v427
    %v429 = vrot.slane %v118, 1
    %v430 = vrot.slane %v119, 1
    %v431 = vsel %vm273, %v429, %v430
    %v432 = vrot.slane %v120, 1
    %v433 = vsel %vm273, %v430, %v432
    %v498 = vpack.c.bf16 %v278, %v276
    %v499 = vpack.c.bf16 %v283, %v281
    %v500 = vpack.c.bf16 %v288, %v286
    %v501 = vpack.c.bf16 %v293, %v291
    %v502 = vpack.c.bf16 %v298, %v296
    %v503 = vpack.c.bf16 %v303, %v301
    %v504 = vpack.c.bf16 %v308, %v306
    %v505 = vpack.c.bf16 %v313, %v311
    %v506 = vpack.c.bf16 %v318, %v316
    %v507 = vpack.c.bf16 %v323, %v321
    %v508 = vpack.c.bf16 %v328, %v326
    %v509 = vpack.c.bf16 %v333, %v331
    %v510 = vpack.c.bf16 %v338, %v336
    %v511 = vpack.c.bf16 %v343, %v341
    %v512 = vpack.c.bf16 %v348, %v346
    %v513 = vpack.c.bf16 %v353, %v351
    %v514 = vpack.c.bf16 %v358, %v356
    %v515 = vpack.c.bf16 %v363, %v361
    %v516 = vpack.c.bf16 %v368, %v366
    %v517 = vpack.c.bf16 %v373, %v371
    %v518 = vpack.c.bf16 %v378, %v376
    %v519 = vpack.c.bf16 %v383, %v381
    %v520 = vpack.c.bf16 %v388, %v386
    %v521 = vpack.c.bf16 %v393, %v391
    %v522 = vpack.c.bf16 %v398, %v396
    %v523 = vpack.c.bf16 %v403, %v401
    %v524 = vpack.c.bf16 %v408, %v406
    %v525 = vpack.c.bf16 %v413, %v411
    %v526 = vpack.c.bf16 %v418, %v416
    %v527 = vpack.c.bf16 %v423, %v421
    %v528 = vpack.c.bf16 %v428, %v426
    %v529 = vpack.c.bf16 %v433, %v431
    %vm530 = vcmask 1045504
    %v531 = vrot.slane %v19, 2
    %v532 = vrot.slane %v20, 2
    %v533 = vsel %vm530, %v531, %v532
    %v534 = vrot.slane %v21, 2
    %v535 = vsel %vm530, %v532, %v534
    %v536 = vrot.slane %v22, 2
    %v537 = vrot.slane %v23, 2
    %v538 = vsel %vm530, %v536, %v537
    %v539 = vrot.slane %v24, 2
    %v540 = vsel %vm530, %v537, %v539
    %v541 = vrot.slane %v25, 2
    %v542 = vrot.slane %v26, 2
    %v543 = vsel %vm530, %v541, %v542
    %v544 = vrot.slane %v27, 2
    %v545 = vsel %vm530, %v542, %v544
    %v546 = vrot.slane %v28, 2
    %v547 = vrot.slane %v29, 2
    %v548 = vsel %vm530, %v546, %v547
    %v549 = vrot.slane %v30, 2
    %v550 = vsel %vm530, %v547, %v549
    %v551 = vrot.slane %v31, 2
    %v552 = vrot.slane %v32, 2
    %v553 = vsel %vm530, %v551, %v552
    %v554 = vrot.slane %v33, 2
    %v555 = vsel %vm530, %v552, %v554
    %v556 = vrot.slane %v34, 2
    %v557 = vrot.slane %v35, 2
    %v558 = vsel %vm530, %v556, %v557
    %v559 = vrot.slane %v36, 2
    %v560 = vsel %vm530, %v557, %v559
    %v561 = vrot.slane %v37, 2
    %v562 = vrot.slane %v38, 2
    %v563 = vsel %vm530, %v561, %v562
    %v564 = vrot.slane %v39, 2
    %v565 = vsel %vm530, %v562, %v564
    %v566 = vrot.slane %v40, 2
    %v567 = vrot.slane %v41, 2
    %v568 = vsel %vm530, %v566, %v567
    %v569 = vrot.slane %v42, 2
    %v570 = vsel %vm530, %v567, %v569
    %v571 = vrot.slane %v43, 2
    %v572 = vrot.slane %v44, 2
    %v573 = vsel %vm530, %v571, %v572
    %v574 = vrot.slane %v45, 2
    %v575 = vsel %vm530, %v572, %v574
    %v576 = vrot.slane %v46, 2
    %v577 = vrot.slane %v47, 2
    %v578 = vsel %vm530, %v576, %v577
    %v579 = vrot.slane %v48, 2
    %v580 = vsel %vm530, %v577, %v579
    %v581 = vrot.slane %v49, 2
    %v582 = vrot.slane %v50, 2
    %v583 = vsel %vm530, %v581, %v582
    %v584 = vrot.slane %v51, 2
    %v585 = vsel %vm530, %v582, %v584
    %v586 = vrot.slane %v52, 2
    %v587 = vrot.slane %v53, 2
    %v588 = vsel %vm530, %v586, %v587
    %v589 = vrot.slane %v54, 2
    %v590 = vsel %vm530, %v587, %v589
    %v591 = vrot.slane %v55, 2
    %v592 = vrot.slane %v56, 2
    %v593 = vsel %vm530, %v591, %v592
    %v594 = vrot.slane %v57, 2
    %v595 = vsel %vm530, %v592, %v594
    %v596 = vrot.slane %v58, 2
    %v597 = vrot.slane %v59, 2
    %v598 = vsel %vm530, %v596, %v597
    %v599 = vrot.slane %v60, 2
    %v600 = vsel %vm530, %v597, %v599
    %v601 = vrot.slane %v61, 2
    %v602 = vrot.slane %v62, 2
    %v603 = vsel %vm530, %v601, %v602
    %v604 = vrot.slane %v63, 2
    %v605 = vsel %vm530, %v602, %v604
    %v606 = vrot.slane %v64, 2
    %v607 = vrot.slane %v65, 2
    %v608 = vsel %vm530, %v606, %v607
    %v609 = vrot.slane %v66, 2
    %v610 = vsel %vm530, %v607, %v609
    %v611 = vrot.slane %v73, 2
    %v612 = vrot.slane %v74, 2
    %v613 = vsel %vm530, %v611, %v612
    %v614 = vrot.slane %v75, 2
    %v615 = vsel %vm530, %v612, %v614
    %v616 = vrot.slane %v76, 2
    %v617 = vrot.slane %v77, 2
    %v618 = vsel %vm530, %v616, %v617
    %v619 = vrot.slane %v78, 2
    %v620 = vsel %vm530, %v617, %v619
    %v621 = vrot.slane %v79, 2
    %v622 = vrot.slane %v80, 2
    %v623 = vsel %vm530, %v621, %v622
    %v624 = vrot.slane %v81, 2
    %v625 = vsel %vm530, %v622, %v624
    %v626 = vrot.slane %v82, 2
    %v627 = vrot.slane %v83, 2
    %v628 = vsel %vm530, %v626, %v627
    %v629 = vrot.slane %v84, 2
    %v630 = vsel %vm530, %v627, %v629
    %v631 = vrot.slane %v85, 2
    %v632 = vrot.slane %v86, 2
    %v633 = vsel %vm530, %v631, %v632
    %v634 = vrot.slane %v87, 2
    %v635 = vsel %vm530, %v632, %v634
    %v636 = vrot.slane %v88, 2
    %v637 = vrot.slane %v89, 2
    %v638 = vsel %vm530, %v636, %v637
    %v639 = vrot.slane %v90, 2
    %v640 = vsel %vm530, %v637, %v639
    %v641 = vrot.slane %v91, 2
    %v642 = vrot.slane %v92, 2
    %v643 = vsel %vm530, %v641, %v642
    %v644 = vrot.slane %v93, 2
    %v645 = vsel %vm530, %v642, %v644
    %v646 = vrot.slane %v94, 2
    %v647 = vrot.slane %v95, 2
    %v648 = vsel %vm530, %v646, %v647
    %v649 = vrot.slane %v96, 2
    %v650 = vsel %vm530, %v647, %v649
    %v651 = vrot.slane %v97, 2
    %v652 = vrot.slane %v98, 2
    %v653 = vsel %vm530, %v651, %v652
    %v654 = vrot.slane %v99, 2
    %v655 = vsel %vm530, %v652, %v654
    %v656 = vrot.slane %v100, 2
    %v657 = vrot.slane %v101, 2
    %v658 = vsel %vm530, %v656, %v657
    %v659 = vrot.slane %v102, 2
    %v660 = vsel %vm530, %v657, %v659
    %v661 = vrot.slane %v103, 2
    %v662 = vrot.slane %v104, 2
    %v663 = vsel %vm530, %v661, %v662
    %v664 = vrot.slane %v105, 2
    %v665 = vsel %vm530, %v662, %v664
    %v666 = vrot.slane %v106, 2
    %v667 = vrot.slane %v107, 2
    %v668 = vsel %vm530, %v666, %v667
    %v669 = vrot.slane %v108, 2
    %v670 = vsel %vm530, %v667, %v669
    %v671 = vrot.slane %v109, 2
    %v672 = vrot.slane %v110, 2
    %v673 = vsel %vm530, %v671, %v672
    %v674 = vrot.slane %v111, 2
    %v675 = vsel %vm530, %v672, %v674
    %v676 = vrot.slane %v112, 2
    %v677 = vrot.slane %v113, 2
    %v678 = vsel %vm530, %v676, %v677
    %v679 = vrot.slane %v114, 2
    %v680 = vsel %vm530, %v677, %v679
    %v681 = vrot.slane %v115, 2
    %v682 = vrot.slane %v116, 2
    %v683 = vsel %vm530, %v681, %v682
    %v684 = vrot.slane %v117, 2
    %v685 = vsel %vm530, %v682, %v684
    %v686 = vrot.slane %v118, 2
    %v687 = vrot.slane %v119, 2
    %v688 = vsel %vm530, %v686, %v687
    %v689 = vrot.slane %v120, 2
    %v690 = vsel %vm530, %v687, %v689
    %v755 = vpack.c.bf16 %v535, %v533
    %v756 = vpack.c.bf16 %v540, %v538
    %v757 = vpack.c.bf16 %v545, %v543
    %v758 = vpack.c.bf16 %v550, %v548
    %v759 = vpack.c.bf16 %v555, %v553
    %v760 = vpack.c.bf16 %v560, %v558
    %v761 = vpack.c.bf16 %v565, %v563
    %v762 = vpack.c.bf16 %v570, %v568
    %v763 = vpack.c.bf16 %v575, %v573
    %v764 = vpack.c.bf16 %v580, %v578
    %v765 = vpack.c.bf16 %v585, %v583
    %v766 = vpack.c.bf16 %v590, %v588
    %v767 = vpack.c.bf16 %v595, %v593
    %v768 = vpack.c.bf16 %v600, %v598
    %v769 = vpack.c.bf16 %v605, %v603
    %v770 = vpack.c.bf16 %v610, %v608
    %v771 = vpack.c.bf16 %v615, %v613
    %v772 = vpack.c.bf16 %v620, %v618
    %v773 = vpack.c.bf16 %v625, %v623
    %v774 = vpack.c.bf16 %v630, %v628
    %v775 = vpack.c.bf16 %v635, %v633
    %v776 = vpack.c.bf16 %v640, %v638
    %v777 = vpack.c.bf16 %v645, %v643
    %v778 = vpack.c.bf16 %v650, %v648
    %v779 = vpack.c.bf16 %v655, %v653
    %v780 = vpack.c.bf16 %v660, %v658
    %v781 = vpack.c.bf16 %v665, %v663
    %v782 = vpack.c.bf16 %v670, %v668
    %v783 = vpack.c.bf16 %v675, %v673
    %v784 = vpack.c.bf16 %v680, %v678
    %v785 = vpack.c.bf16 %v685, %v683
    %v786 = vpack.c.bf16 %v690, %v688
    %v787 = vpack.c.bf16 %v68, %v67
    %v788 = vpack.c.bf16 %v122, %v121
    %v795 = vrot.slane %v67, 1
    %v796 = vrot.slane %v68, 1
    %v797 = vsel %vm273, %v795, %v796
    %v798 = vrot.slane %v69, 1
    %v799 = vsel %vm273, %v796, %v798
    %v800 = vrot.slane %v121, 1
    %v801 = vrot.slane %v122, 1
    %v802 = vsel %vm273, %v800, %v801
    %v803 = vrot.slane %v123, 1
    %v804 = vsel %vm273, %v801, %v803
    %v809 = vpack.c.bf16 %v799, %v797
    %v810 = vpack.c.bf16 %v804, %v802
    %v811 = vrot.slane %v67, 2
    %v812 = vrot.slane %v68, 2
    %v813 = vsel %vm530, %v811, %v812
    %v814 = vrot.slane %v69, 2
    %v815 = vsel %vm530, %v812, %v814
    %v816 = vrot.slane %v121, 2
    %v817 = vrot.slane %v122, 2
    %v818 = vsel %vm530, %v816, %v817
    %v819 = vrot.slane %v123, 2
    %v820 = vsel %vm530, %v817, %v819
    %v825 = vpack.c.bf16 %v815, %v813
    %v826 = vpack.c.bf16 %v820, %v818
    %v827 = vpack.c.bf16 %v71, %v70
    %v828 = vpack.c.bf16 %v125, %v124
    %v835 = vrot.slane %v70, 1
    %v836 = vrot.slane %v71, 1
    %v837 = vsel %vm273, %v835, %v836
    %v838 = vrot.slane %v72, 1
    %v839 = vsel %vm273, %v836, %v838
    %v840 = vrot.slane %v124, 1
    %v841 = vrot.slane %v125, 1
    %v842 = vsel %vm273, %v840, %v841
    %v843 = vrot.slane %v126, 1
    %v844 = vsel %vm273, %v841, %v843
    %v849 = vpack.c.bf16 %v839, %v837
    %v850 = vpack.c.bf16 %v844, %v842
    %v851 = vrot.slane %v70, 2
    %v852 = vrot.slane %v71, 2
    %v853 = vsel %vm530, %v851, %v852
    %v854 = vrot.slane %v72, 2
    %v855 = vsel %vm530, %v852, %v854
    %v856 = vrot.slane %v124, 2
    %v857 = vrot.slane %v125, 2
    %v858 = vsel %vm530, %v856, %v857
    %v859 = vrot.slane %v126, 2
    %v860 = vsel %vm530, %v857, %v859
    %v865 = vpack.c.bf16 %v855, %v853
    %v866 = vpack.c.bf16 %v860, %v858
    %vm867 = vcmask 64512
    %v869 = vsel %vm867, %v498, 0
    %v872 = vsel %vm867, %v499, 0
    %v875 = vsel %vm867, %v500, 0
    %v878 = vsel %vm867, %v501, 0
    %v881 = vsel %vm867, %v502, 0
    %v884 = vsel %vm867, %v503, 0
    %v887 = vsel %vm867, %v504, 0
    %v890 = vsel %vm867, %v505, 0
    %v893 = vsel %vm867, %v506, 0
    %v896 = vsel %vm867, %v507, 0
    %v899 = vsel %vm867, %v508, 0
    %v902 = vsel %vm867, %v509, 0
    %v905 = vsel %vm867, %v510, 0
    %v908 = vsel %vm867, %v511, 0
    %v911 = vsel %vm867, %v512, 0
    %v914 = vsel %vm867, %v513, 0
    %v917 = vsel %vm867, %v514, 0
    %v920 = vsel %vm867, %v515, 0
    %v923 = vsel %vm867, %v516, 0
    %v926 = vsel %vm867, %v517, 0
    %v929 = vsel %vm867, %v518, 0
    %v932 = vsel %vm867, %v519, 0
    %v935 = vsel %vm867, %v520, 0
    %v938 = vsel %vm867, %v521, 0
    %v941 = vsel %vm867, %v522, 0
    %v944 = vsel %vm867, %v523, 0
    %v947 = vsel %vm867, %v524, 0
    %v950 = vsel %vm867, %v525, 0
    %v953 = vsel %vm867, %v526, 0
    %v956 = vsel %vm867, %v527, 0
    %v959 = vsel %vm867, %v528, 0
    %v962 = vsel %vm867, %v529, 0
    %vm964 = vcmask 1043456
    %v966 = vsel %vm964, %v128, 0
    %968 = vmatpush.bf16.msra.mxu0 0
    %969 = vmatpush.bf16.msra.mxu0 0
    %970 = vmatpush.bf16.msra.mxu0 0
    %971 = vmatpush.bf16.msra.mxu0 0
    %972 = vmatpush.bf16.msra.mxu0 0
    %973 = vmatpush.bf16.msra.mxu0 0
    %974 = vmatpush.bf16.msra.mxu0 0
    %975 = vmatpush.bf16.msra.mxu0 %v966
    %976 = vmatmul.bf16.gmra.mxu0 %v869
    %v977 = vpop.f32.mrf.mxu0
    %v978 = vadd.f32 0.0, %v977
    %v979 = vpop.f32.mrf.mxu0
    %v980 = vadd.f32 0.0, %v979
    %981 = vmatmul.bf16.gmra.mxu0 %v872
    %v982 = vpop.f32.mrf.mxu0
    %v983 = vadd.f32 0.0, %v982
    %v984 = vpop.f32.mrf.mxu0
    %v985 = vadd.f32 0.0, %v984
    %986 = vmatmul.bf16.gmra.mxu0 %v875
    %v987 = vpop.f32.mrf.mxu0
    %v988 = vadd.f32 0.0, %v987
    %v989 = vpop.f32.mrf.mxu0
    %v990 = vadd.f32 0.0, %v989
    %991 = vmatmul.bf16.gmra.mxu0 %v878
    %v992 = vpop.f32.mrf.mxu0
    %v993 = vadd.f32 0.0, %v992
    %v994 = vpop.f32.mrf.mxu0
    %v995 = vadd.f32 0.0, %v994
    %996 = vmatmul.bf16.gmra.mxu0 %v881
    %v997 = vpop.f32.mrf.mxu0
    %v998 = vadd.f32 0.0, %v997
    %v999 = vpop.f32.mrf.mxu0
    %v1000 = vadd.f32 0.0, %v999
    %1001 = vmatmul.bf16.gmra.mxu0 %v884
    %v1002 = vpop.f32.mrf.mxu0
    %v1003 = vadd.f32 0.0, %v1002
    %v1004 = vpop.f32.mrf.mxu0
    %v1005 = vadd.f32 0.0, %v1004
    %1006 = vmatmul.bf16.gmra.mxu0 %v887
    %v1007 = vpop.f32.mrf.mxu0
    %v1008 = vadd.f32 0.0, %v1007
    %v1009 = vpop.f32.mrf.mxu0
    %v1010 = vadd.f32 0.0, %v1009
    %1011 = vmatmul.bf16.gmra.mxu0 %v890
    %v1012 = vpop.f32.mrf.mxu0
    %v1013 = vadd.f32 0.0, %v1012
    %v1014 = vpop.f32.mrf.mxu0
    %v1015 = vadd.f32 0.0, %v1014
    %1016 = vmatmul.bf16.gmra.mxu0 %v893
    %v1017 = vpop.f32.mrf.mxu0
    %v1018 = vadd.f32 0.0, %v1017
    %v1019 = vpop.f32.mrf.mxu0
    %v1020 = vadd.f32 0.0, %v1019
    %1021 = vmatmul.bf16.gmra.mxu0 %v896
    %v1022 = vpop.f32.mrf.mxu0
    %v1023 = vadd.f32 0.0, %v1022
    %v1024 = vpop.f32.mrf.mxu0
    %v1025 = vadd.f32 0.0, %v1024
    %1026 = vmatmul.bf16.gmra.mxu0 %v899
    %v1027 = vpop.f32.mrf.mxu0
    %v1028 = vadd.f32 0.0, %v1027
    %v1029 = vpop.f32.mrf.mxu0
    %v1030 = vadd.f32 0.0, %v1029
    %1031 = vmatmul.bf16.gmra.mxu0 %v902
    %v1032 = vpop.f32.mrf.mxu0
    %v1033 = vadd.f32 0.0, %v1032
    %v1034 = vpop.f32.mrf.mxu0
    %v1035 = vadd.f32 0.0, %v1034
    %1036 = vmatmul.bf16.gmra.mxu0 %v905
    %v1037 = vpop.f32.mrf.mxu0
    %v1038 = vadd.f32 0.0, %v1037
    %v1039 = vpop.f32.mrf.mxu0
    %v1040 = vadd.f32 0.0, %v1039
    %1041 = vmatmul.bf16.gmra.mxu0 %v908
    %v1042 = vpop.f32.mrf.mxu0
    %v1043 = vadd.f32 0.0, %v1042
    %v1044 = vpop.f32.mrf.mxu0
    %v1045 = vadd.f32 0.0, %v1044
    %1046 = vmatmul.bf16.gmra.mxu0 %v911
    %v1047 = vpop.f32.mrf.mxu0
    %v1048 = vadd.f32 0.0, %v1047
    %v1049 = vpop.f32.mrf.mxu0
    %v1050 = vadd.f32 0.0, %v1049
    %1051 = vmatmul.bf16.gmra.mxu0 %v914
    %v1052 = vpop.f32.mrf.mxu0
    %v1053 = vadd.f32 0.0, %v1052
    %v1054 = vpop.f32.mrf.mxu0
    %v1055 = vadd.f32 0.0, %v1054
    %1056 = vmatmul.bf16.gmra.mxu0 %v917
    %v1057 = vpop.f32.mrf.mxu0
    %v1058 = vadd.f32 0.0, %v1057
    %v1059 = vpop.f32.mrf.mxu0
    %v1060 = vadd.f32 0.0, %v1059
    %1061 = vmatmul.bf16.gmra.mxu0 %v920
    %v1062 = vpop.f32.mrf.mxu0
    %v1063 = vadd.f32 0.0, %v1062
    %v1064 = vpop.f32.mrf.mxu0
    %v1065 = vadd.f32 0.0, %v1064
    %1066 = vmatmul.bf16.gmra.mxu0 %v923
    %v1067 = vpop.f32.mrf.mxu0
    %v1068 = vadd.f32 0.0, %v1067
    %v1069 = vpop.f32.mrf.mxu0
    %v1070 = vadd.f32 0.0, %v1069
    %1071 = vmatmul.bf16.gmra.mxu0 %v926
    %v1072 = vpop.f32.mrf.mxu0
    %v1073 = vadd.f32 0.0, %v1072
    %v1074 = vpop.f32.mrf.mxu0
    %v1075 = vadd.f32 0.0, %v1074
    %1076 = vmatmul.bf16.gmra.mxu0 %v929
    %v1077 = vpop.f32.mrf.mxu0
    %v1078 = vadd.f32 0.0, %v1077
    %v1079 = vpop.f32.mrf.mxu0
    %v1080 = vadd.f32 0.0, %v1079
    %1081 = vmatmul.bf16.gmra.mxu0 %v932
    %v1082 = vpop.f32.mrf.mxu0
    %v1083 = vadd.f32 0.0, %v1082
    %v1084 = vpop.f32.mrf.mxu0
    %v1085 = vadd.f32 0.0, %v1084
    %1086 = vmatmul.bf16.gmra.mxu0 %v935
    %v1087 = vpop.f32.mrf.mxu0
    %v1088 = vadd.f32 0.0, %v1087
    %v1089 = vpop.f32.mrf.mxu0
    %v1090 = vadd.f32 0.0, %v1089
    %1091 = vmatmul.bf16.gmra.mxu0 %v938
    %v1092 = vpop.f32.mrf.mxu0
    %v1093 = vadd.f32 0.0, %v1092
    %v1094 = vpop.f32.mrf.mxu0
    %v1095 = vadd.f32 0.0, %v1094
    %1096 = vmatmul.bf16.gmra.mxu0 %v941
    %v1097 = vpop.f32.mrf.mxu0
    %v1098 = vadd.f32 0.0, %v1097
    %v1099 = vpop.f32.mrf.mxu0
    %v1100 = vadd.f32 0.0, %v1099
    %1101 = vmatmul.bf16.gmra.mxu0 %v944
    %v1102 = vpop.f32.mrf.mxu0
    %v1103 = vadd.f32 0.0, %v1102
    %v1104 = vpop.f32.mrf.mxu0
    %v1105 = vadd.f32 0.0, %v1104
    %1106 = vmatmul.bf16.gmra.mxu0 %v947
    %v1107 = vpop.f32.mrf.mxu0
    %v1108 = vadd.f32 0.0, %v1107
    %v1109 = vpop.f32.mrf.mxu0
    %v1110 = vadd.f32 0.0, %v1109
    %1111 = vmatmul.bf16.gmra.mxu0 %v950
    %v1112 = vpop.f32.mrf.mxu0
    %v1113 = vadd.f32 0.0, %v1112
    %v1114 = vpop.f32.mrf.mxu0
    %v1115 = vadd.f32 0.0, %v1114
    %1116 = vmatmul.bf16.gmra.mxu0 %v953
    %v1117 = vpop.f32.mrf.mxu0
    %v1118 = vadd.f32 0.0, %v1117
    %v1119 = vpop.f32.mrf.mxu0
    %v1120 = vadd.f32 0.0, %v1119
    %1121 = vmatmul.bf16.gmra.mxu0 %v956
    %v1122 = vpop.f32.mrf.mxu0
    %v1123 = vadd.f32 0.0, %v1122
    %v1124 = vpop.f32.mrf.mxu0
    %v1125 = vadd.f32 0.0, %v1124
    %1126 = vmatmul.bf16.gmra.mxu0 %v959
    %v1127 = vpop.f32.mrf.mxu0
    %v1128 = vadd.f32 0.0, %v1127
    %v1129 = vpop.f32.mrf.mxu0
    %v1130 = vadd.f32 0.0, %v1129
    %1131 = vmatmul.bf16.gmra.mxu0 %v962
    %v1132 = vpop.f32.mrf.mxu0
    %v1133 = vadd.f32 0.0, %v1132
    %v1134 = vpop.f32.mrf.mxu0
    %v1135 = vadd.f32 0.0, %v1134
    %1136 = vdwg.mxu0
    %v1138 = vsel %vm867, %v145, 0
    %v1141 = vsel %vm867, %v146, 0
    %v1144 = vsel %vm867, %v147, 0
    %v1147 = vsel %vm867, %v148, 0
    %v1150 = vsel %vm867, %v149, 0
    %v1153 = vsel %vm867, %v150, 0
    %v1156 = vsel %vm867, %v151, 0
    %v1159 = vsel %vm867, %v152, 0
    %v1162 = vsel %vm867, %v153, 0
    %v1165 = vsel %vm867, %v154, 0
    %v1168 = vsel %vm867, %v155, 0
    %v1171 = vsel %vm867, %v156, 0
    %v1174 = vsel %vm867, %v157, 0
    %v1177 = vsel %vm867, %v158, 0
    %v1180 = vsel %vm867, %v159, 0
    %v1183 = vsel %vm867, %v160, 0
    %v1186 = vsel %vm867, %v161, 0
    %v1189 = vsel %vm867, %v162, 0
    %v1192 = vsel %vm867, %v163, 0
    %v1195 = vsel %vm867, %v164, 0
    %v1198 = vsel %vm867, %v165, 0
    %v1201 = vsel %vm867, %v166, 0
    %v1204 = vsel %vm867, %v167, 0
    %v1207 = vsel %vm867, %v168, 0
    %v1210 = vsel %vm867, %v169, 0
    %v1213 = vsel %vm867, %v170, 0
    %v1216 = vsel %vm867, %v171, 0
    %v1219 = vsel %vm867, %v172, 0
    %v1222 = vsel %vm867, %v173, 0
    %v1225 = vsel %vm867, %v174, 0
    %v1228 = vsel %vm867, %v175, 0
    %v1231 = vsel %vm867, %v176, 0
    %v1234 = vsel %vm964, %v127, 0
    %1236 = vmatpush.bf16.msra.mxu0 0
    %1237 = vmatpush.bf16.msra.mxu0 0
    %1238 = vmatpush.bf16.msra.mxu0 0
    %1239 = vmatpush.bf16.msra.mxu0 0
    %1240 = vmatpush.bf16.msra.mxu0 0
    %1241 = vmatpush.bf16.msra.mxu0 0
    %1242 = vmatpush.bf16.msra.mxu0 0
    %1243 = vmatpush.bf16.msra.mxu0 %v1234
    %1244 = vmatmul.bf16.gmra.mxu0 %v1138
    %v1245 = vpop.f32.mrf.mxu0
    %v1246 = vadd.f32 %v978, %v1245
    %v1247 = vpop.f32.mrf.mxu0
    %v1248 = vadd.f32 %v980, %v1247
    %1249 = vmatmul.bf16.gmra.mxu0 %v1141
    %v1250 = vpop.f32.mrf.mxu0
    %v1251 = vadd.f32 %v983, %v1250
    %v1252 = vpop.f32.mrf.mxu0
    %v1253 = vadd.f32 %v985, %v1252
    %1254 = vmatmul.bf16.gmra.mxu0 %v1144
    %v1255 = vpop.f32.mrf.mxu0
    %v1256 = vadd.f32 %v988, %v1255
    %v1257 = vpop.f32.mrf.mxu0
    %v1258 = vadd.f32 %v990, %v1257
    %1259 = vmatmul.bf16.gmra.mxu0 %v1147
    %v1260 = vpop.f32.mrf.mxu0
    %v1261 = vadd.f32 %v993, %v1260
    %v1262 = vpop.f32.mrf.mxu0
    %v1263 = vadd.f32 %v995, %v1262
    %1264 = vmatmul.bf16.gmra.mxu0 %v1150
    %v1265 = vpop.f32.mrf.mxu0
    %v1266 = vadd.f32 %v998, %v1265
    %v1267 = vpop.f32.mrf.mxu0
    %v1268 = vadd.f32 %v1000, %v1267
    %1269 = vmatmul.bf16.gmra.mxu0 %v1153
    %v1270 = vpop.f32.mrf.mxu0
    %v1271 = vadd.f32 %v1003, %v1270
    %v1272 = vpop.f32.mrf.mxu0
    %v1273 = vadd.f32 %v1005, %v1272
    %1274 = vmatmul.bf16.gmra.mxu0 %v1156
    %v1275 = vpop.f32.mrf.mxu0
    %v1276 = vadd.f32 %v1008, %v1275
    %v1277 = vpop.f32.mrf.mxu0
    %v1278 = vadd.f32 %v1010, %v1277
    %1279 = vmatmul.bf16.gmra.mxu0 %v1159
    %v1280 = vpop.f32.mrf.mxu0
    %v1281 = vadd.f32 %v1013, %v1280
    %v1282 = vpop.f32.mrf.mxu0
    %v1283 = vadd.f32 %v1015, %v1282
    %1284 = vmatmul.bf16.gmra.mxu0 %v1162
    %v1285 = vpop.f32.mrf.mxu0
    %v1286 = vadd.f32 %v1018, %v1285
    %v1287 = vpop.f32.mrf.mxu0
    %v1288 = vadd.f32 %v1020, %v1287
    %1289 = vmatmul.bf16.gmra.mxu0 %v1165
    %v1290 = vpop.f32.mrf.mxu0
    %v1291 = vadd.f32 %v1023, %v1290
    %v1292 = vpop.f32.mrf.mxu0
    %v1293 = vadd.f32 %v1025, %v1292
    %1294 = vmatmul.bf16.gmra.mxu0 %v1168
    %v1295 = vpop.f32.mrf.mxu0
    %v1296 = vadd.f32 %v1028, %v1295
    %v1297 = vpop.f32.mrf.mxu0
    %v1298 = vadd.f32 %v1030, %v1297
    %1299 = vmatmul.bf16.gmra.mxu0 %v1171
    %v1300 = vpop.f32.mrf.mxu0
    %v1301 = vadd.f32 %v1033, %v1300
    %v1302 = vpop.f32.mrf.mxu0
    %v1303 = vadd.f32 %v1035, %v1302
    %1304 = vmatmul.bf16.gmra.mxu0 %v1174
    %v1305 = vpop.f32.mrf.mxu0
    %v1306 = vadd.f32 %v1038, %v1305
    %v1307 = vpop.f32.mrf.mxu0
    %v1308 = vadd.f32 %v1040, %v1307
    %1309 = vmatmul.bf16.gmra.mxu0 %v1177
    %v1310 = vpop.f32.mrf.mxu0
    %v1311 = vadd.f32 %v1043, %v1310
    %v1312 = vpop.f32.mrf.mxu0
    %v1313 = vadd.f32 %v1045, %v1312
    %1314 = vmatmul.bf16.gmra.mxu0 %v1180
    %v1315 = vpop.f32.mrf.mxu0
    %v1316 = vadd.f32 %v1048, %v1315
    %v1317 = vpop.f32.mrf.mxu0
    %v1318 = vadd.f32 %v1050, %v1317
    %1319 = vmatmul.bf16.gmra.mxu0 %v1183
    %v1320 = vpop.f32.mrf.mxu0
    %v1321 = vadd.f32 %v1053, %v1320
    %v1322 = vpop.f32.mrf.mxu0
    %v1323 = vadd.f32 %v1055, %v1322
    %1324 = vmatmul.bf16.gmra.mxu0 %v1186
    %v1325 = vpop.f32.mrf.mxu0
    %v1326 = vadd.f32 %v1058, %v1325
    %v1327 = vpop.f32.mrf.mxu0
    %v1328 = vadd.f32 %v1060, %v1327
    %1329 = vmatmul.bf16.gmra.mxu0 %v1189
    %v1330 = vpop.f32.mrf.mxu0
    %v1331 = vadd.f32 %v1063, %v1330
    %v1332 = vpop.f32.mrf.mxu0
    %v1333 = vadd.f32 %v1065, %v1332
    %1334 = vmatmul.bf16.gmra.mxu0 %v1192
    %v1335 = vpop.f32.mrf.mxu0
    %v1336 = vadd.f32 %v1068, %v1335
    %v1337 = vpop.f32.mrf.mxu0
    %v1338 = vadd.f32 %v1070, %v1337
    %1339 = vmatmul.bf16.gmra.mxu0 %v1195
    %v1340 = vpop.f32.mrf.mxu0
    %v1341 = vadd.f32 %v1073, %v1340
    %v1342 = vpop.f32.mrf.mxu0
    %v1343 = vadd.f32 %v1075, %v1342
    %1344 = vmatmul.bf16.gmra.mxu0 %v1198
    %v1345 = vpop.f32.mrf.mxu0
    %v1346 = vadd.f32 %v1078, %v1345
    %v1347 = vpop.f32.mrf.mxu0
    %v1348 = vadd.f32 %v1080, %v1347
    %1349 = vmatmul.bf16.gmra.mxu0 %v1201
    %v1350 = vpop.f32.mrf.mxu0
    %v1351 = vadd.f32 %v1083, %v1350
    %v1352 = vpop.f32.mrf.mxu0
    %v1353 = vadd.f32 %v1085, %v1352
    %1354 = vmatmul.bf16.gmra.mxu0 %v1204
    %v1355 = vpop.f32.mrf.mxu0
    %v1356 = vadd.f32 %v1088, %v1355
    %v1357 = vpop.f32.mrf.mxu0
    %v1358 = vadd.f32 %v1090, %v1357
    %1359 = vmatmul.bf16.gmra.mxu0 %v1207
    %v1360 = vpop.f32.mrf.mxu0
    %v1361 = vadd.f32 %v1093, %v1360
    %v1362 = vpop.f32.mrf.mxu0
    %v1363 = vadd.f32 %v1095, %v1362
    %1364 = vmatmul.bf16.gmra.mxu0 %v1210
    %v1365 = vpop.f32.mrf.mxu0
    %v1366 = vadd.f32 %v1098, %v1365
    %v1367 = vpop.f32.mrf.mxu0
    %v1368 = vadd.f32 %v1100, %v1367
    %1369 = vmatmul.bf16.gmra.mxu0 %v1213
    %v1370 = vpop.f32.mrf.mxu0
    %v1371 = vadd.f32 %v1103, %v1370
    %v1372 = vpop.f32.mrf.mxu0
    %v1373 = vadd.f32 %v1105, %v1372
    %1374 = vmatmul.bf16.gmra.mxu0 %v1216
    %v1375 = vpop.f32.mrf.mxu0
    %v1376 = vadd.f32 %v1108, %v1375
    %v1377 = vpop.f32.mrf.mxu0
    %v1378 = vadd.f32 %v1110, %v1377
    %1379 = vmatmul.bf16.gmra.mxu0 %v1219
    %v1380 = vpop.f32.mrf.mxu0
    %v1381 = vadd.f32 %v1113, %v1380
    %v1382 = vpop.f32.mrf.mxu0
    %v1383 = vadd.f32 %v1115, %v1382
    %1384 = vmatmul.bf16.gmra.mxu0 %v1222
    %v1385 = vpop.f32.mrf.mxu0
    %v1386 = vadd.f32 %v1118, %v1385
    %v1387 = vpop.f32.mrf.mxu0
    %v1388 = vadd.f32 %v1120, %v1387
    %1389 = vmatmul.bf16.gmra.mxu0 %v1225
    %v1390 = vpop.f32.mrf.mxu0
    %v1391 = vadd.f32 %v1123, %v1390
    %v1392 = vpop.f32.mrf.mxu0
    %v1393 = vadd.f32 %v1125, %v1392
    %1394 = vmatmul.bf16.gmra.mxu0 %v1228
    %v1395 = vpop.f32.mrf.mxu0
    %v1396 = vadd.f32 %v1128, %v1395
    %v1397 = vpop.f32.mrf.mxu0
    %v1398 = vadd.f32 %v1130, %v1397
    %1399 = vmatmul.bf16.gmra.mxu0 %v1231
    %v1400 = vpop.f32.mrf.mxu0
    %v1401 = vadd.f32 %v1133, %v1400
    %v1402 = vpop.f32.mrf.mxu0
    %v1403 = vadd.f32 %v1135, %v1402
    %1404 = vdwg.mxu0
    %v1406 = vsel %vm867, %v787, 0
    %v1409 = vsel %vm867, %v788, 0
    %v1412 = vsel %vm964, %v129, 0
    %1414 = vmatpush.bf16.msra.mxu0 0
    %1415 = vmatpush.bf16.msra.mxu0 0
    %1416 = vmatpush.bf16.msra.mxu0 0
    %1417 = vmatpush.bf16.msra.mxu0 0
    %1418 = vmatpush.bf16.msra.mxu0 0
    %1419 = vmatpush.bf16.msra.mxu0 0
    %1420 = vmatpush.bf16.msra.mxu0 0
    %1421 = vmatpush.bf16.msra.mxu0 %v1412
    %1422 = vmatmul.bf16.gmra.mxu0 %v1141
    %v1423 = vpop.f32.mrf.mxu0
    %v1424 = vadd.f32 0.0, %v1423
    %v1425 = vpop.f32.mrf.mxu0
    %v1426 = vadd.f32 0.0, %v1425
    %1427 = vmatmul.bf16.gmra.mxu0 %v1144
    %v1428 = vpop.f32.mrf.mxu0
    %v1429 = vadd.f32 0.0, %v1428
    %v1430 = vpop.f32.mrf.mxu0
    %v1431 = vadd.f32 0.0, %v1430
    %1432 = vmatmul.bf16.gmra.mxu0 %v1147
    %v1433 = vpop.f32.mrf.mxu0
    %v1434 = vadd.f32 0.0, %v1433
    %v1435 = vpop.f32.mrf.mxu0
    %v1436 = vadd.f32 0.0, %v1435
    %1437 = vmatmul.bf16.gmra.mxu0 %v1150
    %v1438 = vpop.f32.mrf.mxu0
    %v1439 = vadd.f32 0.0, %v1438
    %v1440 = vpop.f32.mrf.mxu0
    %v1441 = vadd.f32 0.0, %v1440
    %1442 = vmatmul.bf16.gmra.mxu0 %v1153
    %v1443 = vpop.f32.mrf.mxu0
    %v1444 = vadd.f32 0.0, %v1443
    %v1445 = vpop.f32.mrf.mxu0
    %v1446 = vadd.f32 0.0, %v1445
    %1447 = vmatmul.bf16.gmra.mxu0 %v1156
    %v1448 = vpop.f32.mrf.mxu0
    %v1449 = vadd.f32 0.0, %v1448
    %v1450 = vpop.f32.mrf.mxu0
    %v1451 = vadd.f32 0.0, %v1450
    %1452 = vmatmul.bf16.gmra.mxu0 %v1159
    %v1453 = vpop.f32.mrf.mxu0
    %v1454 = vadd.f32 0.0, %v1453
    %v1455 = vpop.f32.mrf.mxu0
    %v1456 = vadd.f32 0.0, %v1455
    %1457 = vmatmul.bf16.gmra.mxu0 %v1162
    %v1458 = vpop.f32.mrf.mxu0
    %v1459 = vadd.f32 0.0, %v1458
    %v1460 = vpop.f32.mrf.mxu0
    %v1461 = vadd.f32 0.0, %v1460
    %1462 = vmatmul.bf16.gmra.mxu0 %v1165
    %v1463 = vpop.f32.mrf.mxu0
    %v1464 = vadd.f32 0.0, %v1463
    %v1465 = vpop.f32.mrf.mxu0
    %v1466 = vadd.f32 0.0, %v1465
    %1467 = vmatmul.bf16.gmra.mxu0 %v1168
    %v1468 = vpop.f32.mrf.mxu0
    %v1469 = vadd.f32 0.0, %v1468
    %v1470 = vpop.f32.mrf.mxu0
    %v1471 = vadd.f32 0.0, %v1470
    %1472 = vmatmul.bf16.gmra.mxu0 %v1171
    %v1473 = vpop.f32.mrf.mxu0
    %v1474 = vadd.f32 0.0, %v1473
    %v1475 = vpop.f32.mrf.mxu0
    %v1476 = vadd.f32 0.0, %v1475
    %1477 = vmatmul.bf16.gmra.mxu0 %v1174
    %v1478 = vpop.f32.mrf.mxu0
    %v1479 = vadd.f32 0.0, %v1478
    %v1480 = vpop.f32.mrf.mxu0
    %v1481 = vadd.f32 0.0, %v1480
    %1482 = vmatmul.bf16.gmra.mxu0 %v1177
    %v1483 = vpop.f32.mrf.mxu0
    %v1484 = vadd.f32 0.0, %v1483
    %v1485 = vpop.f32.mrf.mxu0
    %v1486 = vadd.f32 0.0, %v1485
    %1487 = vmatmul.bf16.gmra.mxu0 %v1180
    %v1488 = vpop.f32.mrf.mxu0
    %v1489 = vadd.f32 0.0, %v1488
    %v1490 = vpop.f32.mrf.mxu0
    %v1491 = vadd.f32 0.0, %v1490
    %1492 = vmatmul.bf16.gmra.mxu0 %v1183
    %v1493 = vpop.f32.mrf.mxu0
    %v1494 = vadd.f32 0.0, %v1493
    %v1495 = vpop.f32.mrf.mxu0
    %v1496 = vadd.f32 0.0, %v1495
    %1497 = vmatmul.bf16.gmra.mxu0 %v1406
    %v1498 = vpop.f32.mrf.mxu0
    %v1499 = vadd.f32 0.0, %v1498
    %v1500 = vpop.f32.mrf.mxu0
    %v1501 = vadd.f32 0.0, %v1500
    %1502 = vmatmul.bf16.gmra.mxu0 %v1189
    %v1503 = vpop.f32.mrf.mxu0
    %v1504 = vadd.f32 0.0, %v1503
    %v1505 = vpop.f32.mrf.mxu0
    %v1506 = vadd.f32 0.0, %v1505
    %1507 = vmatmul.bf16.gmra.mxu0 %v1192
    %v1508 = vpop.f32.mrf.mxu0
    %v1509 = vadd.f32 0.0, %v1508
    %v1510 = vpop.f32.mrf.mxu0
    %v1511 = vadd.f32 0.0, %v1510
    %1512 = vmatmul.bf16.gmra.mxu0 %v1195
    %v1513 = vpop.f32.mrf.mxu0
    %v1514 = vadd.f32 0.0, %v1513
    %v1515 = vpop.f32.mrf.mxu0
    %v1516 = vadd.f32 0.0, %v1515
    %1517 = vmatmul.bf16.gmra.mxu0 %v1198
    %v1518 = vpop.f32.mrf.mxu0
    %v1519 = vadd.f32 0.0, %v1518
    %v1520 = vpop.f32.mrf.mxu0
    %v1521 = vadd.f32 0.0, %v1520
    %1522 = vmatmul.bf16.gmra.mxu0 %v1201
    %v1523 = vpop.f32.mrf.mxu0
    %v1524 = vadd.f32 0.0, %v1523
    %v1525 = vpop.f32.mrf.mxu0
    %v1526 = vadd.f32 0.0, %v1525
    %1527 = vmatmul.bf16.gmra.mxu0 %v1204
    %v1528 = vpop.f32.mrf.mxu0
    %v1529 = vadd.f32 0.0, %v1528
    %v1530 = vpop.f32.mrf.mxu0
    %v1531 = vadd.f32 0.0, %v1530
    %1532 = vmatmul.bf16.gmra.mxu0 %v1207
    %v1533 = vpop.f32.mrf.mxu0
    %v1534 = vadd.f32 0.0, %v1533
    %v1535 = vpop.f32.mrf.mxu0
    %v1536 = vadd.f32 0.0, %v1535
    %1537 = vmatmul.bf16.gmra.mxu0 %v1210
    %v1538 = vpop.f32.mrf.mxu0
    %v1539 = vadd.f32 0.0, %v1538
    %v1540 = vpop.f32.mrf.mxu0
    %v1541 = vadd.f32 0.0, %v1540
    %1542 = vmatmul.bf16.gmra.mxu0 %v1213
    %v1543 = vpop.f32.mrf.mxu0
    %v1544 = vadd.f32 0.0, %v1543
    %v1545 = vpop.f32.mrf.mxu0
    %v1546 = vadd.f32 0.0, %v1545
    %1547 = vmatmul.bf16.gmra.mxu0 %v1216
    %v1548 = vpop.f32.mrf.mxu0
    %v1549 = vadd.f32 0.0, %v1548
    %v1550 = vpop.f32.mrf.mxu0
    %v1551 = vadd.f32 0.0, %v1550
    %1552 = vmatmul.bf16.gmra.mxu0 %v1219
    %v1553 = vpop.f32.mrf.mxu0
    %v1554 = vadd.f32 0.0, %v1553
    %v1555 = vpop.f32.mrf.mxu0
    %v1556 = vadd.f32 0.0, %v1555
    %1557 = vmatmul.bf16.gmra.mxu0 %v1222
    %v1558 = vpop.f32.mrf.mxu0
    %v1559 = vadd.f32 0.0, %v1558
    %v1560 = vpop.f32.mrf.mxu0
    %v1561 = vadd.f32 0.0, %v1560
    %1562 = vmatmul.bf16.gmra.mxu0 %v1225
    %v1563 = vpop.f32.mrf.mxu0
    %v1564 = vadd.f32 0.0, %v1563
    %v1565 = vpop.f32.mrf.mxu0
    %v1566 = vadd.f32 0.0, %v1565
    %1567 = vmatmul.bf16.gmra.mxu0 %v1228
    %v1568 = vpop.f32.mrf.mxu0
    %v1569 = vadd.f32 0.0, %v1568
    %v1570 = vpop.f32.mrf.mxu0
    %v1571 = vadd.f32 0.0, %v1570
    %1572 = vmatmul.bf16.gmra.mxu0 %v1231
    %v1573 = vpop.f32.mrf.mxu0
    %v1574 = vadd.f32 0.0, %v1573
    %v1575 = vpop.f32.mrf.mxu0
    %v1576 = vadd.f32 0.0, %v1575
    %1577 = vmatmul.bf16.gmra.mxu0 %v1409
    %v1578 = vpop.f32.mrf.mxu0
    %v1579 = vadd.f32 0.0, %v1578
    %v1580 = vpop.f32.mrf.mxu0
    %v1581 = vadd.f32 0.0, %v1580
    %1582 = vdwg.mxu0
    %v1583 = vadd.f32 %v1246, %v1424
    %v1584 = vadd.f32 %v1248, %v1426
    %v1585 = vadd.f32 %v1251, %v1429
    %v1586 = vadd.f32 %v1253, %v1431
    %v1587 = vadd.f32 %v1256, %v1434
    %v1588 = vadd.f32 %v1258, %v1436
    %v1589 = vadd.f32 %v1261, %v1439
    %v1590 = vadd.f32 %v1263, %v1441
    %v1591 = vadd.f32 %v1266, %v1444
    %v1592 = vadd.f32 %v1268, %v1446
    %v1593 = vadd.f32 %v1271, %v1449
    %v1594 = vadd.f32 %v1273, %v1451
    %v1595 = vadd.f32 %v1276, %v1454
    %v1596 = vadd.f32 %v1278, %v1456
    %v1597 = vadd.f32 %v1281, %v1459
    %v1598 = vadd.f32 %v1283, %v1461
    %v1599 = vadd.f32 %v1286, %v1464
    %v1600 = vadd.f32 %v1288, %v1466
    %v1601 = vadd.f32 %v1291, %v1469
    %v1602 = vadd.f32 %v1293, %v1471
    %v1603 = vadd.f32 %v1296, %v1474
    %v1604 = vadd.f32 %v1298, %v1476
    %v1605 = vadd.f32 %v1301, %v1479
    %v1606 = vadd.f32 %v1303, %v1481
    %v1607 = vadd.f32 %v1306, %v1484
    %v1608 = vadd.f32 %v1308, %v1486
    %v1609 = vadd.f32 %v1311, %v1489
    %v1610 = vadd.f32 %v1313, %v1491
    %v1611 = vadd.f32 %v1316, %v1494
    %v1612 = vadd.f32 %v1318, %v1496
    %v1613 = vadd.f32 %v1321, %v1499
    %v1614 = vadd.f32 %v1323, %v1501
    %v1615 = vadd.f32 %v1326, %v1504
    %v1616 = vadd.f32 %v1328, %v1506
    %v1617 = vadd.f32 %v1331, %v1509
    %v1618 = vadd.f32 %v1333, %v1511
    %v1619 = vadd.f32 %v1336, %v1514
    %v1620 = vadd.f32 %v1338, %v1516
    %v1621 = vadd.f32 %v1341, %v1519
    %v1622 = vadd.f32 %v1343, %v1521
    %v1623 = vadd.f32 %v1346, %v1524
    %v1624 = vadd.f32 %v1348, %v1526
    %v1625 = vadd.f32 %v1351, %v1529
    %v1626 = vadd.f32 %v1353, %v1531
    %v1627 = vadd.f32 %v1356, %v1534
    %v1628 = vadd.f32 %v1358, %v1536
    %v1629 = vadd.f32 %v1361, %v1539
    %v1630 = vadd.f32 %v1363, %v1541
    %v1631 = vadd.f32 %v1366, %v1544
    %v1632 = vadd.f32 %v1368, %v1546
    %v1633 = vadd.f32 %v1371, %v1549
    %v1634 = vadd.f32 %v1373, %v1551
    %v1635 = vadd.f32 %v1376, %v1554
    %v1636 = vadd.f32 %v1378, %v1556
    %v1637 = vadd.f32 %v1381, %v1559
    %v1638 = vadd.f32 %v1383, %v1561
    %v1639 = vadd.f32 %v1386, %v1564
    %v1640 = vadd.f32 %v1388, %v1566
    %v1641 = vadd.f32 %v1391, %v1569
    %v1642 = vadd.f32 %v1393, %v1571
    %v1643 = vadd.f32 %v1396, %v1574
    %v1644 = vadd.f32 %v1398, %v1576
    %v1645 = vadd.f32 %v1401, %v1579
    %v1646 = vadd.f32 %v1403, %v1581
    %v1648 = vsel %vm867, %v809, 0
    %v1651 = vsel %vm867, %v810, 0
    %v1654 = vsel %vm964, %v130, 0
    %1656 = vmatpush.bf16.msra.mxu0 0
    %1657 = vmatpush.bf16.msra.mxu0 0
    %1658 = vmatpush.bf16.msra.mxu0 0
    %1659 = vmatpush.bf16.msra.mxu0 0
    %1660 = vmatpush.bf16.msra.mxu0 0
    %1661 = vmatpush.bf16.msra.mxu0 0
    %1662 = vmatpush.bf16.msra.mxu0 0
    %1663 = vmatpush.bf16.msra.mxu0 %v1654
    %1664 = vmatmul.bf16.gmra.mxu0 %v872
    %v1665 = vpop.f32.mrf.mxu0
    %v1666 = vadd.f32 0.0, %v1665
    %v1667 = vpop.f32.mrf.mxu0
    %v1668 = vadd.f32 0.0, %v1667
    %1669 = vmatmul.bf16.gmra.mxu0 %v875
    %v1670 = vpop.f32.mrf.mxu0
    %v1671 = vadd.f32 0.0, %v1670
    %v1672 = vpop.f32.mrf.mxu0
    %v1673 = vadd.f32 0.0, %v1672
    %1674 = vmatmul.bf16.gmra.mxu0 %v878
    %v1675 = vpop.f32.mrf.mxu0
    %v1676 = vadd.f32 0.0, %v1675
    %v1677 = vpop.f32.mrf.mxu0
    %v1678 = vadd.f32 0.0, %v1677
    %1679 = vmatmul.bf16.gmra.mxu0 %v881
    %v1680 = vpop.f32.mrf.mxu0
    %v1681 = vadd.f32 0.0, %v1680
    %v1682 = vpop.f32.mrf.mxu0
    %v1683 = vadd.f32 0.0, %v1682
    %1684 = vmatmul.bf16.gmra.mxu0 %v884
    %v1685 = vpop.f32.mrf.mxu0
    %v1686 = vadd.f32 0.0, %v1685
    %v1687 = vpop.f32.mrf.mxu0
    %v1688 = vadd.f32 0.0, %v1687
    %1689 = vmatmul.bf16.gmra.mxu0 %v887
    %v1690 = vpop.f32.mrf.mxu0
    %v1691 = vadd.f32 0.0, %v1690
    %v1692 = vpop.f32.mrf.mxu0
    %v1693 = vadd.f32 0.0, %v1692
    %1694 = vmatmul.bf16.gmra.mxu0 %v890
    %v1695 = vpop.f32.mrf.mxu0
    %v1696 = vadd.f32 0.0, %v1695
    %v1697 = vpop.f32.mrf.mxu0
    %v1698 = vadd.f32 0.0, %v1697
    %1699 = vmatmul.bf16.gmra.mxu0 %v893
    %v1700 = vpop.f32.mrf.mxu0
    %v1701 = vadd.f32 0.0, %v1700
    %v1702 = vpop.f32.mrf.mxu0
    %v1703 = vadd.f32 0.0, %v1702
    %1704 = vmatmul.bf16.gmra.mxu0 %v896
    %v1705 = vpop.f32.mrf.mxu0
    %v1706 = vadd.f32 0.0, %v1705
    %v1707 = vpop.f32.mrf.mxu0
    %v1708 = vadd.f32 0.0, %v1707
    %1709 = vmatmul.bf16.gmra.mxu0 %v899
    %v1710 = vpop.f32.mrf.mxu0
    %v1711 = vadd.f32 0.0, %v1710
    %v1712 = vpop.f32.mrf.mxu0
    %v1713 = vadd.f32 0.0, %v1712
    %1714 = vmatmul.bf16.gmra.mxu0 %v902
    %v1715 = vpop.f32.mrf.mxu0
    %v1716 = vadd.f32 0.0, %v1715
    %v1717 = vpop.f32.mrf.mxu0
    %v1718 = vadd.f32 0.0, %v1717
    %1719 = vmatmul.bf16.gmra.mxu0 %v905
    %v1720 = vpop.f32.mrf.mxu0
    %v1721 = vadd.f32 0.0, %v1720
    %v1722 = vpop.f32.mrf.mxu0
    %v1723 = vadd.f32 0.0, %v1722
    %1724 = vmatmul.bf16.gmra.mxu0 %v908
    %v1725 = vpop.f32.mrf.mxu0
    %v1726 = vadd.f32 0.0, %v1725
    %v1727 = vpop.f32.mrf.mxu0
    %v1728 = vadd.f32 0.0, %v1727
    %1729 = vmatmul.bf16.gmra.mxu0 %v911
    %v1730 = vpop.f32.mrf.mxu0
    %v1731 = vadd.f32 0.0, %v1730
    %v1732 = vpop.f32.mrf.mxu0
    %v1733 = vadd.f32 0.0, %v1732
    %1734 = vmatmul.bf16.gmra.mxu0 %v914
    %v1735 = vpop.f32.mrf.mxu0
    %v1736 = vadd.f32 0.0, %v1735
    %v1737 = vpop.f32.mrf.mxu0
    %v1738 = vadd.f32 0.0, %v1737
    %1739 = vmatmul.bf16.gmra.mxu0 %v1648
    %v1740 = vpop.f32.mrf.mxu0
    %v1741 = vadd.f32 0.0, %v1740
    %v1742 = vpop.f32.mrf.mxu0
    %v1743 = vadd.f32 0.0, %v1742
    %1744 = vmatmul.bf16.gmra.mxu0 %v920
    %v1745 = vpop.f32.mrf.mxu0
    %v1746 = vadd.f32 0.0, %v1745
    %v1747 = vpop.f32.mrf.mxu0
    %v1748 = vadd.f32 0.0, %v1747
    %1749 = vmatmul.bf16.gmra.mxu0 %v923
    %v1750 = vpop.f32.mrf.mxu0
    %v1751 = vadd.f32 0.0, %v1750
    %v1752 = vpop.f32.mrf.mxu0
    %v1753 = vadd.f32 0.0, %v1752
    %1754 = vmatmul.bf16.gmra.mxu0 %v926
    %v1755 = vpop.f32.mrf.mxu0
    %v1756 = vadd.f32 0.0, %v1755
    %v1757 = vpop.f32.mrf.mxu0
    %v1758 = vadd.f32 0.0, %v1757
    %1759 = vmatmul.bf16.gmra.mxu0 %v929
    %v1760 = vpop.f32.mrf.mxu0
    %v1761 = vadd.f32 0.0, %v1760
    %v1762 = vpop.f32.mrf.mxu0
    %v1763 = vadd.f32 0.0, %v1762
    %1764 = vmatmul.bf16.gmra.mxu0 %v932
    %v1765 = vpop.f32.mrf.mxu0
    %v1766 = vadd.f32 0.0, %v1765
    %v1767 = vpop.f32.mrf.mxu0
    %v1768 = vadd.f32 0.0, %v1767
    %1769 = vmatmul.bf16.gmra.mxu0 %v935
    %v1770 = vpop.f32.mrf.mxu0
    %v1771 = vadd.f32 0.0, %v1770
    %v1772 = vpop.f32.mrf.mxu0
    %v1773 = vadd.f32 0.0, %v1772
    %1774 = vmatmul.bf16.gmra.mxu0 %v938
    %v1775 = vpop.f32.mrf.mxu0
    %v1776 = vadd.f32 0.0, %v1775
    %v1777 = vpop.f32.mrf.mxu0
    %v1778 = vadd.f32 0.0, %v1777
    %1779 = vmatmul.bf16.gmra.mxu0 %v941
    %v1780 = vpop.f32.mrf.mxu0
    %v1781 = vadd.f32 0.0, %v1780
    %v1782 = vpop.f32.mrf.mxu0
    %v1783 = vadd.f32 0.0, %v1782
    %1784 = vmatmul.bf16.gmra.mxu0 %v944
    %v1785 = vpop.f32.mrf.mxu0
    %v1786 = vadd.f32 0.0, %v1785
    %v1787 = vpop.f32.mrf.mxu0
    %v1788 = vadd.f32 0.0, %v1787
    %1789 = vmatmul.bf16.gmra.mxu0 %v947
    %v1790 = vpop.f32.mrf.mxu0
    %v1791 = vadd.f32 0.0, %v1790
    %v1792 = vpop.f32.mrf.mxu0
    %v1793 = vadd.f32 0.0, %v1792
    %1794 = vmatmul.bf16.gmra.mxu0 %v950
    %v1795 = vpop.f32.mrf.mxu0
    %v1796 = vadd.f32 0.0, %v1795
    %v1797 = vpop.f32.mrf.mxu0
    %v1798 = vadd.f32 0.0, %v1797
    %1799 = vmatmul.bf16.gmra.mxu0 %v953
    %v1800 = vpop.f32.mrf.mxu0
    %v1801 = vadd.f32 0.0, %v1800
    %v1802 = vpop.f32.mrf.mxu0
    %v1803 = vadd.f32 0.0, %v1802
    %1804 = vmatmul.bf16.gmra.mxu0 %v956
    %v1805 = vpop.f32.mrf.mxu0
    %v1806 = vadd.f32 0.0, %v1805
    %v1807 = vpop.f32.mrf.mxu0
    %v1808 = vadd.f32 0.0, %v1807
    %1809 = vmatmul.bf16.gmra.mxu0 %v959
    %v1810 = vpop.f32.mrf.mxu0
    %v1811 = vadd.f32 0.0, %v1810
    %v1812 = vpop.f32.mrf.mxu0
    %v1813 = vadd.f32 0.0, %v1812
    %1814 = vmatmul.bf16.gmra.mxu0 %v962
    %v1815 = vpop.f32.mrf.mxu0
    %v1816 = vadd.f32 0.0, %v1815
    %v1817 = vpop.f32.mrf.mxu0
    %v1818 = vadd.f32 0.0, %v1817
    %1819 = vmatmul.bf16.gmra.mxu0 %v1651
    %v1820 = vpop.f32.mrf.mxu0
    %v1821 = vadd.f32 0.0, %v1820
    %v1822 = vpop.f32.mrf.mxu0
    %v1823 = vadd.f32 0.0, %v1822
    %1824 = vdwg.mxu0
    %v1825 = vadd.f32 %v1583, %v1666
    %v1826 = vadd.f32 %v1584, %v1668
    %v1827 = vadd.f32 %v1585, %v1671
    %v1828 = vadd.f32 %v1586, %v1673
    %v1829 = vadd.f32 %v1587, %v1676
    %v1830 = vadd.f32 %v1588, %v1678
    %v1831 = vadd.f32 %v1589, %v1681
    %v1832 = vadd.f32 %v1590, %v1683
    %v1833 = vadd.f32 %v1591, %v1686
    %v1834 = vadd.f32 %v1592, %v1688
    %v1835 = vadd.f32 %v1593, %v1691
    %v1836 = vadd.f32 %v1594, %v1693
    %v1837 = vadd.f32 %v1595, %v1696
    %v1838 = vadd.f32 %v1596, %v1698
    %v1839 = vadd.f32 %v1597, %v1701
    %v1840 = vadd.f32 %v1598, %v1703
    %v1841 = vadd.f32 %v1599, %v1706
    %v1842 = vadd.f32 %v1600, %v1708
    %v1843 = vadd.f32 %v1601, %v1711
    %v1844 = vadd.f32 %v1602, %v1713
    %v1845 = vadd.f32 %v1603, %v1716
    %v1846 = vadd.f32 %v1604, %v1718
    %v1847 = vadd.f32 %v1605, %v1721
    %v1848 = vadd.f32 %v1606, %v1723
    %v1849 = vadd.f32 %v1607, %v1726
    %v1850 = vadd.f32 %v1608, %v1728
    %v1851 = vadd.f32 %v1609, %v1731
    %v1852 = vadd.f32 %v1610, %v1733
    %v1853 = vadd.f32 %v1611, %v1736
    %v1854 = vadd.f32 %v1612, %v1738
    %v1855 = vadd.f32 %v1613, %v1741
    %v1856 = vadd.f32 %v1614, %v1743
    %v1857 = vadd.f32 %v1615, %v1746
    %v1858 = vadd.f32 %v1616, %v1748
    %v1859 = vadd.f32 %v1617, %v1751
    %v1860 = vadd.f32 %v1618, %v1753
    %v1861 = vadd.f32 %v1619, %v1756
    %v1862 = vadd.f32 %v1620, %v1758
    %v1863 = vadd.f32 %v1621, %v1761
    %v1864 = vadd.f32 %v1622, %v1763
    %v1865 = vadd.f32 %v1623, %v1766
    %v1866 = vadd.f32 %v1624, %v1768
    %v1867 = vadd.f32 %v1625, %v1771
    %v1868 = vadd.f32 %v1626, %v1773
    %v1869 = vadd.f32 %v1627, %v1776
    %v1870 = vadd.f32 %v1628, %v1778
    %v1871 = vadd.f32 %v1629, %v1781
    %v1872 = vadd.f32 %v1630, %v1783
    %v1873 = vadd.f32 %v1631, %v1786
    %v1874 = vadd.f32 %v1632, %v1788
    %v1875 = vadd.f32 %v1633, %v1791
    %v1876 = vadd.f32 %v1634, %v1793
    %v1877 = vadd.f32 %v1635, %v1796
    %v1878 = vadd.f32 %v1636, %v1798
    %v1879 = vadd.f32 %v1637, %v1801
    %v1880 = vadd.f32 %v1638, %v1803
    %v1881 = vadd.f32 %v1639, %v1806
    %v1882 = vadd.f32 %v1640, %v1808
    %v1883 = vadd.f32 %v1641, %v1811
    %v1884 = vadd.f32 %v1642, %v1813
    %v1885 = vadd.f32 %v1643, %v1816
    %v1886 = vadd.f32 %v1644, %v1818
    %v1887 = vadd.f32 %v1645, %v1821
    %v1888 = vadd.f32 %v1646, %v1823
    %1889 = vxpose.xlu0.b32.start [1/16] %v1825, 128
    %1890 = vxpose.xlu0.b32.cont [2/16] %v1826, 128
    %1891 = vxpose.xlu0.b32.cont [3/16] %v1827, 128
    %1892 = vxpose.xlu0.b32.cont [4/16] %v1828, 128
    %1893 = vxpose.xlu0.b32.cont [5/16] %v1829, 128
    %1894 = vxpose.xlu0.b32.cont [6/16] %v1830, 128
    %1895 = vxpose.xlu0.b32.cont [7/16] %v1831, 128
    %1896 = vxpose.xlu0.b32.cont [8/16] %v1832, 128
    %1897 = vxpose.xlu0.b32.cont [9/16] %v1833, 128
    %1898 = vxpose.xlu0.b32.cont [10/16] %v1834, 128
    %1899 = vxpose.xlu0.b32.cont [11/16] %v1835, 128
    %1900 = vxpose.xlu0.b32.cont [12/16] %v1836, 128
    %1901 = vxpose.xlu0.b32.cont [13/16] %v1837, 128
    %1902 = vxpose.xlu0.b32.cont [14/16] %v1838, 128
    %1903 = vxpose.xlu0.b32.cont [15/16] %v1839, 128
    %1904 = vxpose.xlu0.b32.end [16/16] %v1840, 128
    %v1905 = vpop.trf.xlu0
    %v1906 = vpop.trf.xlu0
    %v1907 = vpop.trf.xlu0
    %v1908 = vpop.trf.xlu0
    %v1909 = vpop.trf.xlu0
    %v1910 = vpop.trf.xlu0
    %v1911 = vpop.trf.xlu0
    %v1912 = vpop.trf.xlu0
    %v1913 = vpop.trf.xlu0
    %v1914 = vpop.trf.xlu0
    %v1915 = vpop.trf.xlu0
    %v1916 = vpop.trf.xlu0
    %v1917 = vpop.trf.xlu0
    %v1918 = vpop.trf.xlu0
    %v1919 = vpop.trf.xlu0
    %v1920 = vpop.trf.xlu0
    %1921 = vxpose.xlu0.b32.start [1/16] %v1841, 128
    %1922 = vxpose.xlu0.b32.cont [2/16] %v1842, 128
    %1923 = vxpose.xlu0.b32.cont [3/16] %v1843, 128
    %1924 = vxpose.xlu0.b32.cont [4/16] %v1844, 128
    %1925 = vxpose.xlu0.b32.cont [5/16] %v1845, 128
    %1926 = vxpose.xlu0.b32.cont [6/16] %v1846, 128
    %1927 = vxpose.xlu0.b32.cont [7/16] %v1847, 128
    %1928 = vxpose.xlu0.b32.cont [8/16] %v1848, 128
    %1929 = vxpose.xlu0.b32.cont [9/16] %v1849, 128
    %1930 = vxpose.xlu0.b32.cont [10/16] %v1850, 128
    %1931 = vxpose.xlu0.b32.cont [11/16] %v1851, 128
    %1932 = vxpose.xlu0.b32.cont [12/16] %v1852, 128
    %1933 = vxpose.xlu0.b32.cont [13/16] %v1853, 128
    %1934 = vxpose.xlu0.b32.cont [14/16] %v1854, 128
    %1935 = vxpose.xlu0.b32.cont [15/16] %v1855, 128
    %1936 = vxpose.xlu0.b32.end [16/16] %v1856, 128
    %v1937 = vpop.trf.xlu0
    %v1938 = vpop.trf.xlu0
    %v1939 = vpop.trf.xlu0
    %v1940 = vpop.trf.xlu0
    %v1941 = vpop.trf.xlu0
    %v1942 = vpop.trf.xlu0
    %v1943 = vpop.trf.xlu0
    %v1944 = vpop.trf.xlu0
    %v1945 = vpop.trf.xlu0
    %v1946 = vpop.trf.xlu0
    %v1947 = vpop.trf.xlu0
    %v1948 = vpop.trf.xlu0
    %v1949 = vpop.trf.xlu0
    %v1950 = vpop.trf.xlu0
    %v1951 = vpop.trf.xlu0
    %v1952 = vpop.trf.xlu0
    %1953 = vxpose.xlu0.b32.start [1/16] %v1857, 128
    %1954 = vxpose.xlu0.b32.cont [2/16] %v1858, 128
    %1955 = vxpose.xlu0.b32.cont [3/16] %v1859, 128
    %1956 = vxpose.xlu0.b32.cont [4/16] %v1860, 128
    %1957 = vxpose.xlu0.b32.cont [5/16] %v1861, 128
    %1958 = vxpose.xlu0.b32.cont [6/16] %v1862, 128
    %1959 = vxpose.xlu0.b32.cont [7/16] %v1863, 128
    %1960 = vxpose.xlu0.b32.cont [8/16] %v1864, 128
    %1961 = vxpose.xlu0.b32.cont [9/16] %v1865, 128
    %1962 = vxpose.xlu0.b32.cont [10/16] %v1866, 128
    %1963 = vxpose.xlu0.b32.cont [11/16] %v1867, 128
    %1964 = vxpose.xlu0.b32.cont [12/16] %v1868, 128
    %1965 = vxpose.xlu0.b32.cont [13/16] %v1869, 128
    %1966 = vxpose.xlu0.b32.cont [14/16] %v1870, 128
    %1967 = vxpose.xlu0.b32.cont [15/16] %v1871, 128
    %1968 = vxpose.xlu0.b32.end [16/16] %v1872, 128
    %v1969 = vpop.trf.xlu0
    %v1970 = vpop.trf.xlu0
    %v1971 = vpop.trf.xlu0
    %v1972 = vpop.trf.xlu0
    %v1973 = vpop.trf.xlu0
    %v1974 = vpop.trf.xlu0
    %v1975 = vpop.trf.xlu0
    %v1976 = vpop.trf.xlu0
    %v1977 = vpop.trf.xlu0
    %v1978 = vpop.trf.xlu0
    %v1979 = vpop.trf.xlu0
    %v1980 = vpop.trf.xlu0
    %v1981 = vpop.trf.xlu0
    %v1982 = vpop.trf.xlu0
    %v1983 = vpop.trf.xlu0
    %v1984 = vpop.trf.xlu0
    %1985 = vxpose.xlu0.b32.start [1/16] %v1873, 128
    %1986 = vxpose.xlu0.b32.cont [2/16] %v1874, 128
    %1987 = vxpose.xlu0.b32.cont [3/16] %v1875, 128
    %1988 = vxpose.xlu0.b32.cont [4/16] %v1876, 128
    %1989 = vxpose.xlu0.b32.cont [5/16] %v1877, 128
    %1990 = vxpose.xlu0.b32.cont [6/16] %v1878, 128
    %1991 = vxpose.xlu0.b32.cont [7/16] %v1879, 128
    %1992 = vxpose.xlu0.b32.cont [8/16] %v1880, 128
    %1993 = vxpose.xlu0.b32.cont [9/16] %v1881, 128
    %1994 = vxpose.xlu0.b32.cont [10/16] %v1882, 128
    %1995 = vxpose.xlu0.b32.cont [11/16] %v1883, 128
    %1996 = vxpose.xlu0.b32.cont [12/16] %v1884, 128
    %1997 = vxpose.xlu0.b32.cont [13/16] %v1885, 128
    %1998 = vxpose.xlu0.b32.cont [14/16] %v1886, 128
    %1999 = vxpose.xlu0.b32.cont [15/16] %v1887, 128
    %2000 = vxpose.xlu0.b32.end [16/16] %v1888, 128
    %v2001 = vpop.trf.xlu0
    %v2002 = vpop.trf.xlu0
    %v2003 = vpop.trf.xlu0
    %v2004 = vpop.trf.xlu0
    %v2005 = vpop.trf.xlu0
    %v2006 = vpop.trf.xlu0
    %v2007 = vpop.trf.xlu0
    %v2008 = vpop.trf.xlu0
    %v2009 = vpop.trf.xlu0
    %v2010 = vpop.trf.xlu0
    %v2011 = vpop.trf.xlu0
    %v2012 = vpop.trf.xlu0
    %v2013 = vpop.trf.xlu0
    %v2014 = vpop.trf.xlu0
    %v2015 = vpop.trf.xlu0
    %v2016 = vpop.trf.xlu0
    %v2018 = vsel %vm867, %v755, 0
    %v2021 = vsel %vm867, %v756, 0
    %v2024 = vsel %vm867, %v757, 0
    %v2027 = vsel %vm867, %v758, 0
    %v2030 = vsel %vm867, %v759, 0
    %v2033 = vsel %vm867, %v760, 0
    %v2036 = vsel %vm867, %v761, 0
    %v2039 = vsel %vm867, %v762, 0
    %v2042 = vsel %vm867, %v763, 0
    %v2045 = vsel %vm867, %v764, 0
    %v2048 = vsel %vm867, %v765, 0
    %v2051 = vsel %vm867, %v766, 0
    %v2054 = vsel %vm867, %v767, 0
    %v2057 = vsel %vm867, %v768, 0
    %v2060 = vsel %vm867, %v769, 0
    %v2063 = vsel %vm867, %v770, 0
    %v2066 = vsel %vm867, %v771, 0
    %v2069 = vsel %vm867, %v772, 0
    %v2072 = vsel %vm867, %v773, 0
    %v2075 = vsel %vm867, %v774, 0
    %v2078 = vsel %vm867, %v775, 0
    %v2081 = vsel %vm867, %v776, 0
    %v2084 = vsel %vm867, %v777, 0
    %v2087 = vsel %vm867, %v778, 0
    %v2090 = vsel %vm867, %v779, 0
    %v2093 = vsel %vm867, %v780, 0
    %v2096 = vsel %vm867, %v781, 0
    %v2099 = vsel %vm867, %v782, 0
    %v2102 = vsel %vm867, %v783, 0
    %v2105 = vsel %vm867, %v784, 0
    %v2108 = vsel %vm867, %v785, 0
    %v2111 = vsel %vm867, %v786, 0
    %v2114 = vsel %vm964, %v132, 0
    %2116 = vmatpush.bf16.msra.mxu0 0
    %2117 = vmatpush.bf16.msra.mxu0 0
    %2118 = vmatpush.bf16.msra.mxu0 0
    %2119 = vmatpush.bf16.msra.mxu0 0
    %2120 = vmatpush.bf16.msra.mxu0 0
    %2121 = vmatpush.bf16.msra.mxu0 0
    %2122 = vmatpush.bf16.msra.mxu0 0
    %2123 = vmatpush.bf16.msra.mxu0 %v2114
    %2124 = vmatmul.bf16.gmra.mxu0 %v2018
    %v2125 = vpop.f32.mrf.mxu0
    %v2126 = vadd.f32 0.0, %v2125
    %v2127 = vpop.f32.mrf.mxu0
    %v2128 = vadd.f32 0.0, %v2127
    %2129 = vmatmul.bf16.gmra.mxu0 %v2021
    %v2130 = vpop.f32.mrf.mxu0
    %v2131 = vadd.f32 0.0, %v2130
    %v2132 = vpop.f32.mrf.mxu0
    %v2133 = vadd.f32 0.0, %v2132
    %2134 = vmatmul.bf16.gmra.mxu0 %v2024
    %v2135 = vpop.f32.mrf.mxu0
    %v2136 = vadd.f32 0.0, %v2135
    %v2137 = vpop.f32.mrf.mxu0
    %v2138 = vadd.f32 0.0, %v2137
    %2139 = vmatmul.bf16.gmra.mxu0 %v2027
    %v2140 = vpop.f32.mrf.mxu0
    %v2141 = vadd.f32 0.0, %v2140
    %v2142 = vpop.f32.mrf.mxu0
    %v2143 = vadd.f32 0.0, %v2142
    %2144 = vmatmul.bf16.gmra.mxu0 %v2030
    %v2145 = vpop.f32.mrf.mxu0
    %v2146 = vadd.f32 0.0, %v2145
    %v2147 = vpop.f32.mrf.mxu0
    %v2148 = vadd.f32 0.0, %v2147
    %2149 = vmatmul.bf16.gmra.mxu0 %v2033
    %v2150 = vpop.f32.mrf.mxu0
    %v2151 = vadd.f32 0.0, %v2150
    %v2152 = vpop.f32.mrf.mxu0
    %v2153 = vadd.f32 0.0, %v2152
    %2154 = vmatmul.bf16.gmra.mxu0 %v2036
    %v2155 = vpop.f32.mrf.mxu0
    %v2156 = vadd.f32 0.0, %v2155
    %v2157 = vpop.f32.mrf.mxu0
    %v2158 = vadd.f32 0.0, %v2157
    %2159 = vmatmul.bf16.gmra.mxu0 %v2039
    %v2160 = vpop.f32.mrf.mxu0
    %v2161 = vadd.f32 0.0, %v2160
    %v2162 = vpop.f32.mrf.mxu0
    %v2163 = vadd.f32 0.0, %v2162
    %2164 = vmatmul.bf16.gmra.mxu0 %v2042
    %v2165 = vpop.f32.mrf.mxu0
    %v2166 = vadd.f32 0.0, %v2165
    %v2167 = vpop.f32.mrf.mxu0
    %v2168 = vadd.f32 0.0, %v2167
    %2169 = vmatmul.bf16.gmra.mxu0 %v2045
    %v2170 = vpop.f32.mrf.mxu0
    %v2171 = vadd.f32 0.0, %v2170
    %v2172 = vpop.f32.mrf.mxu0
    %v2173 = vadd.f32 0.0, %v2172
    %2174 = vmatmul.bf16.gmra.mxu0 %v2048
    %v2175 = vpop.f32.mrf.mxu0
    %v2176 = vadd.f32 0.0, %v2175
    %v2177 = vpop.f32.mrf.mxu0
    %v2178 = vadd.f32 0.0, %v2177
    %2179 = vmatmul.bf16.gmra.mxu0 %v2051
    %v2180 = vpop.f32.mrf.mxu0
    %v2181 = vadd.f32 0.0, %v2180
    %v2182 = vpop.f32.mrf.mxu0
    %v2183 = vadd.f32 0.0, %v2182
    %2184 = vmatmul.bf16.gmra.mxu0 %v2054
    %v2185 = vpop.f32.mrf.mxu0
    %v2186 = vadd.f32 0.0, %v2185
    %v2187 = vpop.f32.mrf.mxu0
    %v2188 = vadd.f32 0.0, %v2187
    %2189 = vmatmul.bf16.gmra.mxu0 %v2057
    %v2190 = vpop.f32.mrf.mxu0
    %v2191 = vadd.f32 0.0, %v2190
    %v2192 = vpop.f32.mrf.mxu0
    %v2193 = vadd.f32 0.0, %v2192
    %2194 = vmatmul.bf16.gmra.mxu0 %v2060
    %v2195 = vpop.f32.mrf.mxu0
    %v2196 = vadd.f32 0.0, %v2195
    %v2197 = vpop.f32.mrf.mxu0
    %v2198 = vadd.f32 0.0, %v2197
    %2199 = vmatmul.bf16.gmra.mxu0 %v2063
    %v2200 = vpop.f32.mrf.mxu0
    %v2201 = vadd.f32 0.0, %v2200
    %v2202 = vpop.f32.mrf.mxu0
    %v2203 = vadd.f32 0.0, %v2202
    %2204 = vmatmul.bf16.gmra.mxu0 %v2066
    %v2205 = vpop.f32.mrf.mxu0
    %v2206 = vadd.f32 0.0, %v2205
    %v2207 = vpop.f32.mrf.mxu0
    %v2208 = vadd.f32 0.0, %v2207
    %2209 = vmatmul.bf16.gmra.mxu0 %v2069
    %v2210 = vpop.f32.mrf.mxu0
    %v2211 = vadd.f32 0.0, %v2210
    %v2212 = vpop.f32.mrf.mxu0
    %v2213 = vadd.f32 0.0, %v2212
    %2214 = vmatmul.bf16.gmra.mxu0 %v2072
    %v2215 = vpop.f32.mrf.mxu0
    %v2216 = vadd.f32 0.0, %v2215
    %v2217 = vpop.f32.mrf.mxu0
    %v2218 = vadd.f32 0.0, %v2217
    %2219 = vmatmul.bf16.gmra.mxu0 %v2075
    %v2220 = vpop.f32.mrf.mxu0
    %v2221 = vadd.f32 0.0, %v2220
    %v2222 = vpop.f32.mrf.mxu0
    %v2223 = vadd.f32 0.0, %v2222
    %2224 = vmatmul.bf16.gmra.mxu0 %v2078
    %v2225 = vpop.f32.mrf.mxu0
    %v2226 = vadd.f32 0.0, %v2225
    %v2227 = vpop.f32.mrf.mxu0
    %v2228 = vadd.f32 0.0, %v2227
    %2229 = vmatmul.bf16.gmra.mxu0 %v2081
    %v2230 = vpop.f32.mrf.mxu0
    %v2231 = vadd.f32 0.0, %v2230
    %v2232 = vpop.f32.mrf.mxu0
    %v2233 = vadd.f32 0.0, %v2232
    %2234 = vmatmul.bf16.gmra.mxu0 %v2084
    %v2235 = vpop.f32.mrf.mxu0
    %v2236 = vadd.f32 0.0, %v2235
    %v2237 = vpop.f32.mrf.mxu0
    %v2238 = vadd.f32 0.0, %v2237
    %2239 = vmatmul.bf16.gmra.mxu0 %v2087
    %v2240 = vpop.f32.mrf.mxu0
    %v2241 = vadd.f32 0.0, %v2240
    %v2242 = vpop.f32.mrf.mxu0
    %v2243 = vadd.f32 0.0, %v2242
    %2244 = vmatmul.bf16.gmra.mxu0 %v2090
    %v2245 = vpop.f32.mrf.mxu0
    %v2246 = vadd.f32 0.0, %v2245
    %v2247 = vpop.f32.mrf.mxu0
    %v2248 = vadd.f32 0.0, %v2247
    %2249 = vmatmul.bf16.gmra.mxu0 %v2093
    %v2250 = vpop.f32.mrf.mxu0
    %v2251 = vadd.f32 0.0, %v2250
    %v2252 = vpop.f32.mrf.mxu0
    %v2253 = vadd.f32 0.0, %v2252
    %2254 = vmatmul.bf16.gmra.mxu0 %v2096
    %v2255 = vpop.f32.mrf.mxu0
    %v2256 = vadd.f32 0.0, %v2255
    %v2257 = vpop.f32.mrf.mxu0
    %v2258 = vadd.f32 0.0, %v2257
    %2259 = vmatmul.bf16.gmra.mxu0 %v2099
    %v2260 = vpop.f32.mrf.mxu0
    %v2261 = vadd.f32 0.0, %v2260
    %v2262 = vpop.f32.mrf.mxu0
    %v2263 = vadd.f32 0.0, %v2262
    %2264 = vmatmul.bf16.gmra.mxu0 %v2102
    %v2265 = vpop.f32.mrf.mxu0
    %v2266 = vadd.f32 0.0, %v2265
    %v2267 = vpop.f32.mrf.mxu0
    %v2268 = vadd.f32 0.0, %v2267
    %2269 = vmatmul.bf16.gmra.mxu0 %v2105
    %v2270 = vpop.f32.mrf.mxu0
    %v2271 = vadd.f32 0.0, %v2270
    %v2272 = vpop.f32.mrf.mxu0
    %v2273 = vadd.f32 0.0, %v2272
    %2274 = vmatmul.bf16.gmra.mxu0 %v2108
    %v2275 = vpop.f32.mrf.mxu0
    %v2276 = vadd.f32 0.0, %v2275
    %v2277 = vpop.f32.mrf.mxu0
    %v2278 = vadd.f32 0.0, %v2277
    %2279 = vmatmul.bf16.gmra.mxu0 %v2111
    %v2280 = vpop.f32.mrf.mxu0
    %v2281 = vadd.f32 0.0, %v2280
    %v2282 = vpop.f32.mrf.mxu0
    %v2283 = vadd.f32 0.0, %v2282
    %2284 = vdwg.mxu0
    %v2286 = vsel %vm964, %v131, 0
    %2288 = vmatpush.bf16.msra.mxu0 0
    %2289 = vmatpush.bf16.msra.mxu0 0
    %2290 = vmatpush.bf16.msra.mxu0 0
    %2291 = vmatpush.bf16.msra.mxu0 0
    %2292 = vmatpush.bf16.msra.mxu0 0
    %2293 = vmatpush.bf16.msra.mxu0 0
    %2294 = vmatpush.bf16.msra.mxu0 0
    %2295 = vmatpush.bf16.msra.mxu0 %v2286
    %2296 = vmatmul.bf16.gmra.mxu0 %v869
    %v2297 = vpop.f32.mrf.mxu0
    %v2298 = vadd.f32 %v2126, %v2297
    %v2299 = vpop.f32.mrf.mxu0
    %v2300 = vadd.f32 %v2128, %v2299
    %2301 = vmatmul.bf16.gmra.mxu0 %v872
    %v2302 = vpop.f32.mrf.mxu0
    %v2303 = vadd.f32 %v2131, %v2302
    %v2304 = vpop.f32.mrf.mxu0
    %v2305 = vadd.f32 %v2133, %v2304
    %2306 = vmatmul.bf16.gmra.mxu0 %v875
    %v2307 = vpop.f32.mrf.mxu0
    %v2308 = vadd.f32 %v2136, %v2307
    %v2309 = vpop.f32.mrf.mxu0
    %v2310 = vadd.f32 %v2138, %v2309
    %2311 = vmatmul.bf16.gmra.mxu0 %v878
    %v2312 = vpop.f32.mrf.mxu0
    %v2313 = vadd.f32 %v2141, %v2312
    %v2314 = vpop.f32.mrf.mxu0
    %v2315 = vadd.f32 %v2143, %v2314
    %2316 = vmatmul.bf16.gmra.mxu0 %v881
    %v2317 = vpop.f32.mrf.mxu0
    %v2318 = vadd.f32 %v2146, %v2317
    %v2319 = vpop.f32.mrf.mxu0
    %v2320 = vadd.f32 %v2148, %v2319
    %2321 = vmatmul.bf16.gmra.mxu0 %v884
    %v2322 = vpop.f32.mrf.mxu0
    %v2323 = vadd.f32 %v2151, %v2322
    %v2324 = vpop.f32.mrf.mxu0
    %v2325 = vadd.f32 %v2153, %v2324
    %2326 = vmatmul.bf16.gmra.mxu0 %v887
    %v2327 = vpop.f32.mrf.mxu0
    %v2328 = vadd.f32 %v2156, %v2327
    %v2329 = vpop.f32.mrf.mxu0
    %v2330 = vadd.f32 %v2158, %v2329
    %2331 = vmatmul.bf16.gmra.mxu0 %v890
    %v2332 = vpop.f32.mrf.mxu0
    %v2333 = vadd.f32 %v2161, %v2332
    %v2334 = vpop.f32.mrf.mxu0
    %v2335 = vadd.f32 %v2163, %v2334
    %2336 = vmatmul.bf16.gmra.mxu0 %v893
    %v2337 = vpop.f32.mrf.mxu0
    %v2338 = vadd.f32 %v2166, %v2337
    %v2339 = vpop.f32.mrf.mxu0
    %v2340 = vadd.f32 %v2168, %v2339
    %2341 = vmatmul.bf16.gmra.mxu0 %v896
    %v2342 = vpop.f32.mrf.mxu0
    %v2343 = vadd.f32 %v2171, %v2342
    %v2344 = vpop.f32.mrf.mxu0
    %v2345 = vadd.f32 %v2173, %v2344
    %2346 = vmatmul.bf16.gmra.mxu0 %v899
    %v2347 = vpop.f32.mrf.mxu0
    %v2348 = vadd.f32 %v2176, %v2347
    %v2349 = vpop.f32.mrf.mxu0
    %v2350 = vadd.f32 %v2178, %v2349
    %2351 = vmatmul.bf16.gmra.mxu0 %v902
    %v2352 = vpop.f32.mrf.mxu0
    %v2353 = vadd.f32 %v2181, %v2352
    %v2354 = vpop.f32.mrf.mxu0
    %v2355 = vadd.f32 %v2183, %v2354
    %2356 = vmatmul.bf16.gmra.mxu0 %v905
    %v2357 = vpop.f32.mrf.mxu0
    %v2358 = vadd.f32 %v2186, %v2357
    %v2359 = vpop.f32.mrf.mxu0
    %v2360 = vadd.f32 %v2188, %v2359
    %2361 = vmatmul.bf16.gmra.mxu0 %v908
    %v2362 = vpop.f32.mrf.mxu0
    %v2363 = vadd.f32 %v2191, %v2362
    %v2364 = vpop.f32.mrf.mxu0
    %v2365 = vadd.f32 %v2193, %v2364
    %2366 = vmatmul.bf16.gmra.mxu0 %v911
    %v2367 = vpop.f32.mrf.mxu0
    %v2368 = vadd.f32 %v2196, %v2367
    %v2369 = vpop.f32.mrf.mxu0
    %v2370 = vadd.f32 %v2198, %v2369
    %2371 = vmatmul.bf16.gmra.mxu0 %v914
    %v2372 = vpop.f32.mrf.mxu0
    %v2373 = vadd.f32 %v2201, %v2372
    %v2374 = vpop.f32.mrf.mxu0
    %v2375 = vadd.f32 %v2203, %v2374
    %2376 = vmatmul.bf16.gmra.mxu0 %v917
    %v2377 = vpop.f32.mrf.mxu0
    %v2378 = vadd.f32 %v2206, %v2377
    %v2379 = vpop.f32.mrf.mxu0
    %v2380 = vadd.f32 %v2208, %v2379
    %2381 = vmatmul.bf16.gmra.mxu0 %v920
    %v2382 = vpop.f32.mrf.mxu0
    %v2383 = vadd.f32 %v2211, %v2382
    %v2384 = vpop.f32.mrf.mxu0
    %v2385 = vadd.f32 %v2213, %v2384
    %2386 = vmatmul.bf16.gmra.mxu0 %v923
    %v2387 = vpop.f32.mrf.mxu0
    %v2388 = vadd.f32 %v2216, %v2387
    %v2389 = vpop.f32.mrf.mxu0
    %v2390 = vadd.f32 %v2218, %v2389
    %2391 = vmatmul.bf16.gmra.mxu0 %v926
    %v2392 = vpop.f32.mrf.mxu0
    %v2393 = vadd.f32 %v2221, %v2392
    %v2394 = vpop.f32.mrf.mxu0
    %v2395 = vadd.f32 %v2223, %v2394
    %2396 = vmatmul.bf16.gmra.mxu0 %v929
    %v2397 = vpop.f32.mrf.mxu0
    %v2398 = vadd.f32 %v2226, %v2397
    %v2399 = vpop.f32.mrf.mxu0
    %v2400 = vadd.f32 %v2228, %v2399
    %2401 = vmatmul.bf16.gmra.mxu0 %v932
    %v2402 = vpop.f32.mrf.mxu0
    %v2403 = vadd.f32 %v2231, %v2402
    %v2404 = vpop.f32.mrf.mxu0
    %v2405 = vadd.f32 %v2233, %v2404
    %2406 = vmatmul.bf16.gmra.mxu0 %v935
    %v2407 = vpop.f32.mrf.mxu0
    %v2408 = vadd.f32 %v2236, %v2407
    %v2409 = vpop.f32.mrf.mxu0
    %v2410 = vadd.f32 %v2238, %v2409
    %2411 = vmatmul.bf16.gmra.mxu0 %v938
    %v2412 = vpop.f32.mrf.mxu0
    %v2413 = vadd.f32 %v2241, %v2412
    %v2414 = vpop.f32.mrf.mxu0
    %v2415 = vadd.f32 %v2243, %v2414
    %2416 = vmatmul.bf16.gmra.mxu0 %v941
    %v2417 = vpop.f32.mrf.mxu0
    %v2418 = vadd.f32 %v2246, %v2417
    %v2419 = vpop.f32.mrf.mxu0
    %v2420 = vadd.f32 %v2248, %v2419
    %2421 = vmatmul.bf16.gmra.mxu0 %v944
    %v2422 = vpop.f32.mrf.mxu0
    %v2423 = vadd.f32 %v2251, %v2422
    %v2424 = vpop.f32.mrf.mxu0
    %v2425 = vadd.f32 %v2253, %v2424
    %2426 = vmatmul.bf16.gmra.mxu0 %v947
    %v2427 = vpop.f32.mrf.mxu0
    %v2428 = vadd.f32 %v2256, %v2427
    %v2429 = vpop.f32.mrf.mxu0
    %v2430 = vadd.f32 %v2258, %v2429
    %2431 = vmatmul.bf16.gmra.mxu0 %v950
    %v2432 = vpop.f32.mrf.mxu0
    %v2433 = vadd.f32 %v2261, %v2432
    %v2434 = vpop.f32.mrf.mxu0
    %v2435 = vadd.f32 %v2263, %v2434
    %2436 = vmatmul.bf16.gmra.mxu0 %v953
    %v2437 = vpop.f32.mrf.mxu0
    %v2438 = vadd.f32 %v2266, %v2437
    %v2439 = vpop.f32.mrf.mxu0
    %v2440 = vadd.f32 %v2268, %v2439
    %2441 = vmatmul.bf16.gmra.mxu0 %v956
    %v2442 = vpop.f32.mrf.mxu0
    %v2443 = vadd.f32 %v2271, %v2442
    %v2444 = vpop.f32.mrf.mxu0
    %v2445 = vadd.f32 %v2273, %v2444
    %2446 = vmatmul.bf16.gmra.mxu0 %v959
    %v2447 = vpop.f32.mrf.mxu0
    %v2448 = vadd.f32 %v2276, %v2447
    %v2449 = vpop.f32.mrf.mxu0
    %v2450 = vadd.f32 %v2278, %v2449
    %2451 = vmatmul.bf16.gmra.mxu0 %v962
    %v2452 = vpop.f32.mrf.mxu0
    %v2453 = vadd.f32 %v2281, %v2452
    %v2454 = vpop.f32.mrf.mxu0
    %v2455 = vadd.f32 %v2283, %v2454
    %2456 = vdwg.mxu0
    %v2458 = vsel %vm964, %v133, 0
    %2460 = vmatpush.bf16.msra.mxu0 0
    %2461 = vmatpush.bf16.msra.mxu0 0
    %2462 = vmatpush.bf16.msra.mxu0 0
    %2463 = vmatpush.bf16.msra.mxu0 0
    %2464 = vmatpush.bf16.msra.mxu0 0
    %2465 = vmatpush.bf16.msra.mxu0 0
    %2466 = vmatpush.bf16.msra.mxu0 0
    %2467 = vmatpush.bf16.msra.mxu0 %v2458
    %2468 = vmatmul.bf16.gmra.mxu0 %v872
    %v2469 = vpop.f32.mrf.mxu0
    %v2470 = vadd.f32 0.0, %v2469
    %v2471 = vpop.f32.mrf.mxu0
    %v2472 = vadd.f32 0.0, %v2471
    %2473 = vmatmul.bf16.gmra.mxu0 %v875
    %v2474 = vpop.f32.mrf.mxu0
    %v2475 = vadd.f32 0.0, %v2474
    %v2476 = vpop.f32.mrf.mxu0
    %v2477 = vadd.f32 0.0, %v2476
    %2478 = vmatmul.bf16.gmra.mxu0 %v878
    %v2479 = vpop.f32.mrf.mxu0
    %v2480 = vadd.f32 0.0, %v2479
    %v2481 = vpop.f32.mrf.mxu0
    %v2482 = vadd.f32 0.0, %v2481
    %2483 = vmatmul.bf16.gmra.mxu0 %v881
    %v2484 = vpop.f32.mrf.mxu0
    %v2485 = vadd.f32 0.0, %v2484
    %v2486 = vpop.f32.mrf.mxu0
    %v2487 = vadd.f32 0.0, %v2486
    %2488 = vmatmul.bf16.gmra.mxu0 %v884
    %v2489 = vpop.f32.mrf.mxu0
    %v2490 = vadd.f32 0.0, %v2489
    %v2491 = vpop.f32.mrf.mxu0
    %v2492 = vadd.f32 0.0, %v2491
    %2493 = vmatmul.bf16.gmra.mxu0 %v887
    %v2494 = vpop.f32.mrf.mxu0
    %v2495 = vadd.f32 0.0, %v2494
    %v2496 = vpop.f32.mrf.mxu0
    %v2497 = vadd.f32 0.0, %v2496
    %2498 = vmatmul.bf16.gmra.mxu0 %v890
    %v2499 = vpop.f32.mrf.mxu0
    %v2500 = vadd.f32 0.0, %v2499
    %v2501 = vpop.f32.mrf.mxu0
    %v2502 = vadd.f32 0.0, %v2501
    %2503 = vmatmul.bf16.gmra.mxu0 %v893
    %v2504 = vpop.f32.mrf.mxu0
    %v2505 = vadd.f32 0.0, %v2504
    %v2506 = vpop.f32.mrf.mxu0
    %v2507 = vadd.f32 0.0, %v2506
    %2508 = vmatmul.bf16.gmra.mxu0 %v896
    %v2509 = vpop.f32.mrf.mxu0
    %v2510 = vadd.f32 0.0, %v2509
    %v2511 = vpop.f32.mrf.mxu0
    %v2512 = vadd.f32 0.0, %v2511
    %2513 = vmatmul.bf16.gmra.mxu0 %v899
    %v2514 = vpop.f32.mrf.mxu0
    %v2515 = vadd.f32 0.0, %v2514
    %v2516 = vpop.f32.mrf.mxu0
    %v2517 = vadd.f32 0.0, %v2516
    %2518 = vmatmul.bf16.gmra.mxu0 %v902
    %v2519 = vpop.f32.mrf.mxu0
    %v2520 = vadd.f32 0.0, %v2519
    %v2521 = vpop.f32.mrf.mxu0
    %v2522 = vadd.f32 0.0, %v2521
    %2523 = vmatmul.bf16.gmra.mxu0 %v905
    %v2524 = vpop.f32.mrf.mxu0
    %v2525 = vadd.f32 0.0, %v2524
    %v2526 = vpop.f32.mrf.mxu0
    %v2527 = vadd.f32 0.0, %v2526
    %2528 = vmatmul.bf16.gmra.mxu0 %v908
    %v2529 = vpop.f32.mrf.mxu0
    %v2530 = vadd.f32 0.0, %v2529
    %v2531 = vpop.f32.mrf.mxu0
    %v2532 = vadd.f32 0.0, %v2531
    %2533 = vmatmul.bf16.gmra.mxu0 %v911
    %v2534 = vpop.f32.mrf.mxu0
    %v2535 = vadd.f32 0.0, %v2534
    %v2536 = vpop.f32.mrf.mxu0
    %v2537 = vadd.f32 0.0, %v2536
    %2538 = vmatmul.bf16.gmra.mxu0 %v914
    %v2539 = vpop.f32.mrf.mxu0
    %v2540 = vadd.f32 0.0, %v2539
    %v2541 = vpop.f32.mrf.mxu0
    %v2542 = vadd.f32 0.0, %v2541
    %2543 = vmatmul.bf16.gmra.mxu0 %v1648
    %v2544 = vpop.f32.mrf.mxu0
    %v2545 = vadd.f32 0.0, %v2544
    %v2546 = vpop.f32.mrf.mxu0
    %v2547 = vadd.f32 0.0, %v2546
    %2548 = vmatmul.bf16.gmra.mxu0 %v920
    %v2549 = vpop.f32.mrf.mxu0
    %v2550 = vadd.f32 0.0, %v2549
    %v2551 = vpop.f32.mrf.mxu0
    %v2552 = vadd.f32 0.0, %v2551
    %2553 = vmatmul.bf16.gmra.mxu0 %v923
    %v2554 = vpop.f32.mrf.mxu0
    %v2555 = vadd.f32 0.0, %v2554
    %v2556 = vpop.f32.mrf.mxu0
    %v2557 = vadd.f32 0.0, %v2556
    %2558 = vmatmul.bf16.gmra.mxu0 %v926
    %v2559 = vpop.f32.mrf.mxu0
    %v2560 = vadd.f32 0.0, %v2559
    %v2561 = vpop.f32.mrf.mxu0
    %v2562 = vadd.f32 0.0, %v2561
    %2563 = vmatmul.bf16.gmra.mxu0 %v929
    %v2564 = vpop.f32.mrf.mxu0
    %v2565 = vadd.f32 0.0, %v2564
    %v2566 = vpop.f32.mrf.mxu0
    %v2567 = vadd.f32 0.0, %v2566
    %2568 = vmatmul.bf16.gmra.mxu0 %v932
    %v2569 = vpop.f32.mrf.mxu0
    %v2570 = vadd.f32 0.0, %v2569
    %v2571 = vpop.f32.mrf.mxu0
    %v2572 = vadd.f32 0.0, %v2571
    %2573 = vmatmul.bf16.gmra.mxu0 %v935
    %v2574 = vpop.f32.mrf.mxu0
    %v2575 = vadd.f32 0.0, %v2574
    %v2576 = vpop.f32.mrf.mxu0
    %v2577 = vadd.f32 0.0, %v2576
    %2578 = vmatmul.bf16.gmra.mxu0 %v938
    %v2579 = vpop.f32.mrf.mxu0
    %v2580 = vadd.f32 0.0, %v2579
    %v2581 = vpop.f32.mrf.mxu0
    %v2582 = vadd.f32 0.0, %v2581
    %2583 = vmatmul.bf16.gmra.mxu0 %v941
    %v2584 = vpop.f32.mrf.mxu0
    %v2585 = vadd.f32 0.0, %v2584
    %v2586 = vpop.f32.mrf.mxu0
    %v2587 = vadd.f32 0.0, %v2586
    %2588 = vmatmul.bf16.gmra.mxu0 %v944
    %v2589 = vpop.f32.mrf.mxu0
    %v2590 = vadd.f32 0.0, %v2589
    %v2591 = vpop.f32.mrf.mxu0
    %v2592 = vadd.f32 0.0, %v2591
    %2593 = vmatmul.bf16.gmra.mxu0 %v947
    %v2594 = vpop.f32.mrf.mxu0
    %v2595 = vadd.f32 0.0, %v2594
    %v2596 = vpop.f32.mrf.mxu0
    %v2597 = vadd.f32 0.0, %v2596
    %2598 = vmatmul.bf16.gmra.mxu0 %v950
    %v2599 = vpop.f32.mrf.mxu0
    %v2600 = vadd.f32 0.0, %v2599
    %v2601 = vpop.f32.mrf.mxu0
    %v2602 = vadd.f32 0.0, %v2601
    %2603 = vmatmul.bf16.gmra.mxu0 %v953
    %v2604 = vpop.f32.mrf.mxu0
    %v2605 = vadd.f32 0.0, %v2604
    %v2606 = vpop.f32.mrf.mxu0
    %v2607 = vadd.f32 0.0, %v2606
    %2608 = vmatmul.bf16.gmra.mxu0 %v956
    %v2609 = vpop.f32.mrf.mxu0
    %v2610 = vadd.f32 0.0, %v2609
    %v2611 = vpop.f32.mrf.mxu0
    %v2612 = vadd.f32 0.0, %v2611
    %2613 = vmatmul.bf16.gmra.mxu0 %v959
    %v2614 = vpop.f32.mrf.mxu0
    %v2615 = vadd.f32 0.0, %v2614
    %v2616 = vpop.f32.mrf.mxu0
    %v2617 = vadd.f32 0.0, %v2616
    %2618 = vmatmul.bf16.gmra.mxu0 %v962
    %v2619 = vpop.f32.mrf.mxu0
    %v2620 = vadd.f32 0.0, %v2619
    %v2621 = vpop.f32.mrf.mxu0
    %v2622 = vadd.f32 0.0, %v2621
    %2623 = vmatmul.bf16.gmra.mxu0 %v1651
    %v2624 = vpop.f32.mrf.mxu0
    %v2625 = vadd.f32 0.0, %v2624
    %v2626 = vpop.f32.mrf.mxu0
    %v2627 = vadd.f32 0.0, %v2626
    %2628 = vdwg.mxu0
    %v2629 = vadd.f32 %v2298, %v2470
    %v2630 = vadd.f32 %v2300, %v2472
    %v2631 = vadd.f32 %v2303, %v2475
    %v2632 = vadd.f32 %v2305, %v2477
    %v2633 = vadd.f32 %v2308, %v2480
    %v2634 = vadd.f32 %v2310, %v2482
    %v2635 = vadd.f32 %v2313, %v2485
    %v2636 = vadd.f32 %v2315, %v2487
    %v2637 = vadd.f32 %v2318, %v2490
    %v2638 = vadd.f32 %v2320, %v2492
    %v2639 = vadd.f32 %v2323, %v2495
    %v2640 = vadd.f32 %v2325, %v2497
    %v2641 = vadd.f32 %v2328, %v2500
    %v2642 = vadd.f32 %v2330, %v2502
    %v2643 = vadd.f32 %v2333, %v2505
    %v2644 = vadd.f32 %v2335, %v2507
    %v2645 = vadd.f32 %v2338, %v2510
    %v2646 = vadd.f32 %v2340, %v2512
    %v2647 = vadd.f32 %v2343, %v2515
    %v2648 = vadd.f32 %v2345, %v2517
    %v2649 = vadd.f32 %v2348, %v2520
    %v2650 = vadd.f32 %v2350, %v2522
    %v2651 = vadd.f32 %v2353, %v2525
    %v2652 = vadd.f32 %v2355, %v2527
    %v2653 = vadd.f32 %v2358, %v2530
    %v2654 = vadd.f32 %v2360, %v2532
    %v2655 = vadd.f32 %v2363, %v2535
    %v2656 = vadd.f32 %v2365, %v2537
    %v2657 = vadd.f32 %v2368, %v2540
    %v2658 = vadd.f32 %v2370, %v2542
    %v2659 = vadd.f32 %v2373, %v2545
    %v2660 = vadd.f32 %v2375, %v2547
    %v2661 = vadd.f32 %v2378, %v2550
    %v2662 = vadd.f32 %v2380, %v2552
    %v2663 = vadd.f32 %v2383, %v2555
    %v2664 = vadd.f32 %v2385, %v2557
    %v2665 = vadd.f32 %v2388, %v2560
    %v2666 = vadd.f32 %v2390, %v2562
    %v2667 = vadd.f32 %v2393, %v2565
    %v2668 = vadd.f32 %v2395, %v2567
    %v2669 = vadd.f32 %v2398, %v2570
    %v2670 = vadd.f32 %v2400, %v2572
    %v2671 = vadd.f32 %v2403, %v2575
    %v2672 = vadd.f32 %v2405, %v2577
    %v2673 = vadd.f32 %v2408, %v2580
    %v2674 = vadd.f32 %v2410, %v2582
    %v2675 = vadd.f32 %v2413, %v2585
    %v2676 = vadd.f32 %v2415, %v2587
    %v2677 = vadd.f32 %v2418, %v2590
    %v2678 = vadd.f32 %v2420, %v2592
    %v2679 = vadd.f32 %v2423, %v2595
    %v2680 = vadd.f32 %v2425, %v2597
    %v2681 = vadd.f32 %v2428, %v2600
    %v2682 = vadd.f32 %v2430, %v2602
    %v2683 = vadd.f32 %v2433, %v2605
    %v2684 = vadd.f32 %v2435, %v2607
    %v2685 = vadd.f32 %v2438, %v2610
    %v2686 = vadd.f32 %v2440, %v2612
    %v2687 = vadd.f32 %v2443, %v2615
    %v2688 = vadd.f32 %v2445, %v2617
    %v2689 = vadd.f32 %v2448, %v2620
    %v2690 = vadd.f32 %v2450, %v2622
    %v2691 = vadd.f32 %v2453, %v2625
    %v2692 = vadd.f32 %v2455, %v2627
    %v2694 = vsel %vm867, %v825, 0
    %v2697 = vsel %vm867, %v826, 0
    %v2700 = vsel %vm964, %v134, 0
    %2702 = vmatpush.bf16.msra.mxu0 0
    %2703 = vmatpush.bf16.msra.mxu0 0
    %2704 = vmatpush.bf16.msra.mxu0 0
    %2705 = vmatpush.bf16.msra.mxu0 0
    %2706 = vmatpush.bf16.msra.mxu0 0
    %2707 = vmatpush.bf16.msra.mxu0 0
    %2708 = vmatpush.bf16.msra.mxu0 0
    %2709 = vmatpush.bf16.msra.mxu0 %v2700
    %2710 = vmatmul.bf16.gmra.mxu0 %v2021
    %v2711 = vpop.f32.mrf.mxu0
    %v2712 = vadd.f32 0.0, %v2711
    %v2713 = vpop.f32.mrf.mxu0
    %v2714 = vadd.f32 0.0, %v2713
    %2715 = vmatmul.bf16.gmra.mxu0 %v2024
    %v2716 = vpop.f32.mrf.mxu0
    %v2717 = vadd.f32 0.0, %v2716
    %v2718 = vpop.f32.mrf.mxu0
    %v2719 = vadd.f32 0.0, %v2718
    %2720 = vmatmul.bf16.gmra.mxu0 %v2027
    %v2721 = vpop.f32.mrf.mxu0
    %v2722 = vadd.f32 0.0, %v2721
    %v2723 = vpop.f32.mrf.mxu0
    %v2724 = vadd.f32 0.0, %v2723
    %2725 = vmatmul.bf16.gmra.mxu0 %v2030
    %v2726 = vpop.f32.mrf.mxu0
    %v2727 = vadd.f32 0.0, %v2726
    %v2728 = vpop.f32.mrf.mxu0
    %v2729 = vadd.f32 0.0, %v2728
    %2730 = vmatmul.bf16.gmra.mxu0 %v2033
    %v2731 = vpop.f32.mrf.mxu0
    %v2732 = vadd.f32 0.0, %v2731
    %v2733 = vpop.f32.mrf.mxu0
    %v2734 = vadd.f32 0.0, %v2733
    %2735 = vmatmul.bf16.gmra.mxu0 %v2036
    %v2736 = vpop.f32.mrf.mxu0
    %v2737 = vadd.f32 0.0, %v2736
    %v2738 = vpop.f32.mrf.mxu0
    %v2739 = vadd.f32 0.0, %v2738
    %2740 = vmatmul.bf16.gmra.mxu0 %v2039
    %v2741 = vpop.f32.mrf.mxu0
    %v2742 = vadd.f32 0.0, %v2741
    %v2743 = vpop.f32.mrf.mxu0
    %v2744 = vadd.f32 0.0, %v2743
    %2745 = vmatmul.bf16.gmra.mxu0 %v2042
    %v2746 = vpop.f32.mrf.mxu0
    %v2747 = vadd.f32 0.0, %v2746
    %v2748 = vpop.f32.mrf.mxu0
    %v2749 = vadd.f32 0.0, %v2748
    %2750 = vmatmul.bf16.gmra.mxu0 %v2045
    %v2751 = vpop.f32.mrf.mxu0
    %v2752 = vadd.f32 0.0, %v2751
    %v2753 = vpop.f32.mrf.mxu0
    %v2754 = vadd.f32 0.0, %v2753
    %2755 = vmatmul.bf16.gmra.mxu0 %v2048
    %v2756 = vpop.f32.mrf.mxu0
    %v2757 = vadd.f32 0.0, %v2756
    %v2758 = vpop.f32.mrf.mxu0
    %v2759 = vadd.f32 0.0, %v2758
    %2760 = vmatmul.bf16.gmra.mxu0 %v2051
    %v2761 = vpop.f32.mrf.mxu0
    %v2762 = vadd.f32 0.0, %v2761
    %v2763 = vpop.f32.mrf.mxu0
    %v2764 = vadd.f32 0.0, %v2763
    %2765 = vmatmul.bf16.gmra.mxu0 %v2054
    %v2766 = vpop.f32.mrf.mxu0
    %v2767 = vadd.f32 0.0, %v2766
    %v2768 = vpop.f32.mrf.mxu0
    %v2769 = vadd.f32 0.0, %v2768
    %2770 = vmatmul.bf16.gmra.mxu0 %v2057
    %v2771 = vpop.f32.mrf.mxu0
    %v2772 = vadd.f32 0.0, %v2771
    %v2773 = vpop.f32.mrf.mxu0
    %v2774 = vadd.f32 0.0, %v2773
    %2775 = vmatmul.bf16.gmra.mxu0 %v2060
    %v2776 = vpop.f32.mrf.mxu0
    %v2777 = vadd.f32 0.0, %v2776
    %v2778 = vpop.f32.mrf.mxu0
    %v2779 = vadd.f32 0.0, %v2778
    %2780 = vmatmul.bf16.gmra.mxu0 %v2063
    %v2781 = vpop.f32.mrf.mxu0
    %v2782 = vadd.f32 0.0, %v2781
    %v2783 = vpop.f32.mrf.mxu0
    %v2784 = vadd.f32 0.0, %v2783
    %2785 = vmatmul.bf16.gmra.mxu0 %v2694
    %v2786 = vpop.f32.mrf.mxu0
    %v2787 = vadd.f32 0.0, %v2786
    %v2788 = vpop.f32.mrf.mxu0
    %v2789 = vadd.f32 0.0, %v2788
    %2790 = vmatmul.bf16.gmra.mxu0 %v2069
    %v2791 = vpop.f32.mrf.mxu0
    %v2792 = vadd.f32 0.0, %v2791
    %v2793 = vpop.f32.mrf.mxu0
    %v2794 = vadd.f32 0.0, %v2793
    %2795 = vmatmul.bf16.gmra.mxu0 %v2072
    %v2796 = vpop.f32.mrf.mxu0
    %v2797 = vadd.f32 0.0, %v2796
    %v2798 = vpop.f32.mrf.mxu0
    %v2799 = vadd.f32 0.0, %v2798
    %2800 = vmatmul.bf16.gmra.mxu0 %v2075
    %v2801 = vpop.f32.mrf.mxu0
    %v2802 = vadd.f32 0.0, %v2801
    %v2803 = vpop.f32.mrf.mxu0
    %v2804 = vadd.f32 0.0, %v2803
    %2805 = vmatmul.bf16.gmra.mxu0 %v2078
    %v2806 = vpop.f32.mrf.mxu0
    %v2807 = vadd.f32 0.0, %v2806
    %v2808 = vpop.f32.mrf.mxu0
    %v2809 = vadd.f32 0.0, %v2808
    %2810 = vmatmul.bf16.gmra.mxu0 %v2081
    %v2811 = vpop.f32.mrf.mxu0
    %v2812 = vadd.f32 0.0, %v2811
    %v2813 = vpop.f32.mrf.mxu0
    %v2814 = vadd.f32 0.0, %v2813
    %2815 = vmatmul.bf16.gmra.mxu0 %v2084
    %v2816 = vpop.f32.mrf.mxu0
    %v2817 = vadd.f32 0.0, %v2816
    %v2818 = vpop.f32.mrf.mxu0
    %v2819 = vadd.f32 0.0, %v2818
    %2820 = vmatmul.bf16.gmra.mxu0 %v2087
    %v2821 = vpop.f32.mrf.mxu0
    %v2822 = vadd.f32 0.0, %v2821
    %v2823 = vpop.f32.mrf.mxu0
    %v2824 = vadd.f32 0.0, %v2823
    %2825 = vmatmul.bf16.gmra.mxu0 %v2090
    %v2826 = vpop.f32.mrf.mxu0
    %v2827 = vadd.f32 0.0, %v2826
    %v2828 = vpop.f32.mrf.mxu0
    %v2829 = vadd.f32 0.0, %v2828
    %2830 = vmatmul.bf16.gmra.mxu0 %v2093
    %v2831 = vpop.f32.mrf.mxu0
    %v2832 = vadd.f32 0.0, %v2831
    %v2833 = vpop.f32.mrf.mxu0
    %v2834 = vadd.f32 0.0, %v2833
    %2835 = vmatmul.bf16.gmra.mxu0 %v2096
    %v2836 = vpop.f32.mrf.mxu0
    %v2837 = vadd.f32 0.0, %v2836
    %v2838 = vpop.f32.mrf.mxu0
    %v2839 = vadd.f32 0.0, %v2838
    %2840 = vmatmul.bf16.gmra.mxu0 %v2099
    %v2841 = vpop.f32.mrf.mxu0
    %v2842 = vadd.f32 0.0, %v2841
    %v2843 = vpop.f32.mrf.mxu0
    %v2844 = vadd.f32 0.0, %v2843
    %2845 = vmatmul.bf16.gmra.mxu0 %v2102
    %v2846 = vpop.f32.mrf.mxu0
    %v2847 = vadd.f32 0.0, %v2846
    %v2848 = vpop.f32.mrf.mxu0
    %v2849 = vadd.f32 0.0, %v2848
    %2850 = vmatmul.bf16.gmra.mxu0 %v2105
    %v2851 = vpop.f32.mrf.mxu0
    %v2852 = vadd.f32 0.0, %v2851
    %v2853 = vpop.f32.mrf.mxu0
    %v2854 = vadd.f32 0.0, %v2853
    %2855 = vmatmul.bf16.gmra.mxu0 %v2108
    %v2856 = vpop.f32.mrf.mxu0
    %v2857 = vadd.f32 0.0, %v2856
    %v2858 = vpop.f32.mrf.mxu0
    %v2859 = vadd.f32 0.0, %v2858
    %2860 = vmatmul.bf16.gmra.mxu0 %v2111
    %v2861 = vpop.f32.mrf.mxu0
    %v2862 = vadd.f32 0.0, %v2861
    %v2863 = vpop.f32.mrf.mxu0
    %v2864 = vadd.f32 0.0, %v2863
    %2865 = vmatmul.bf16.gmra.mxu0 %v2697
    %v2866 = vpop.f32.mrf.mxu0
    %v2867 = vadd.f32 0.0, %v2866
    %v2868 = vpop.f32.mrf.mxu0
    %v2869 = vadd.f32 0.0, %v2868
    %2870 = vdwg.mxu0
    %v2871 = vadd.f32 %v2629, %v2712
    %v2872 = vadd.f32 %v2630, %v2714
    %v2873 = vadd.f32 %v2631, %v2717
    %v2874 = vadd.f32 %v2632, %v2719
    %v2875 = vadd.f32 %v2633, %v2722
    %v2876 = vadd.f32 %v2634, %v2724
    %v2877 = vadd.f32 %v2635, %v2727
    %v2878 = vadd.f32 %v2636, %v2729
    %v2879 = vadd.f32 %v2637, %v2732
    %v2880 = vadd.f32 %v2638, %v2734
    %v2881 = vadd.f32 %v2639, %v2737
    %v2882 = vadd.f32 %v2640, %v2739
    %v2883 = vadd.f32 %v2641, %v2742
    %v2884 = vadd.f32 %v2642, %v2744
    %v2885 = vadd.f32 %v2643, %v2747
    %v2886 = vadd.f32 %v2644, %v2749
    %v2887 = vadd.f32 %v2645, %v2752
    %v2888 = vadd.f32 %v2646, %v2754
    %v2889 = vadd.f32 %v2647, %v2757
    %v2890 = vadd.f32 %v2648, %v2759
    %v2891 = vadd.f32 %v2649, %v2762
    %v2892 = vadd.f32 %v2650, %v2764
    %v2893 = vadd.f32 %v2651, %v2767
    %v2894 = vadd.f32 %v2652, %v2769
    %v2895 = vadd.f32 %v2653, %v2772
    %v2896 = vadd.f32 %v2654, %v2774
    %v2897 = vadd.f32 %v2655, %v2777
    %v2898 = vadd.f32 %v2656, %v2779
    %v2899 = vadd.f32 %v2657, %v2782
    %v2900 = vadd.f32 %v2658, %v2784
    %v2901 = vadd.f32 %v2659, %v2787
    %v2902 = vadd.f32 %v2660, %v2789
    %v2903 = vadd.f32 %v2661, %v2792
    %v2904 = vadd.f32 %v2662, %v2794
    %v2905 = vadd.f32 %v2663, %v2797
    %v2906 = vadd.f32 %v2664, %v2799
    %v2907 = vadd.f32 %v2665, %v2802
    %v2908 = vadd.f32 %v2666, %v2804
    %v2909 = vadd.f32 %v2667, %v2807
    %v2910 = vadd.f32 %v2668, %v2809
    %v2911 = vadd.f32 %v2669, %v2812
    %v2912 = vadd.f32 %v2670, %v2814
    %v2913 = vadd.f32 %v2671, %v2817
    %v2914 = vadd.f32 %v2672, %v2819
    %v2915 = vadd.f32 %v2673, %v2822
    %v2916 = vadd.f32 %v2674, %v2824
    %v2917 = vadd.f32 %v2675, %v2827
    %v2918 = vadd.f32 %v2676, %v2829
    %v2919 = vadd.f32 %v2677, %v2832
    %v2920 = vadd.f32 %v2678, %v2834
    %v2921 = vadd.f32 %v2679, %v2837
    %v2922 = vadd.f32 %v2680, %v2839
    %v2923 = vadd.f32 %v2681, %v2842
    %v2924 = vadd.f32 %v2682, %v2844
    %v2925 = vadd.f32 %v2683, %v2847
    %v2926 = vadd.f32 %v2684, %v2849
    %v2927 = vadd.f32 %v2685, %v2852
    %v2928 = vadd.f32 %v2686, %v2854
    %v2929 = vadd.f32 %v2687, %v2857
    %v2930 = vadd.f32 %v2688, %v2859
    %v2931 = vadd.f32 %v2689, %v2862
    %v2932 = vadd.f32 %v2690, %v2864
    %v2933 = vadd.f32 %v2691, %v2867
    %v2934 = vadd.f32 %v2692, %v2869
    %2935 = vxpose.xlu0.b32.start [1/16] %v2871, 128
    %2936 = vxpose.xlu0.b32.cont [2/16] %v2872, 128
    %2937 = vxpose.xlu0.b32.cont [3/16] %v2873, 128
    %2938 = vxpose.xlu0.b32.cont [4/16] %v2874, 128
    %2939 = vxpose.xlu0.b32.cont [5/16] %v2875, 128
    %2940 = vxpose.xlu0.b32.cont [6/16] %v2876, 128
    %2941 = vxpose.xlu0.b32.cont [7/16] %v2877, 128
    %2942 = vxpose.xlu0.b32.cont [8/16] %v2878, 128
    %2943 = vxpose.xlu0.b32.cont [9/16] %v2879, 128
    %2944 = vxpose.xlu0.b32.cont [10/16] %v2880, 128
    %2945 = vxpose.xlu0.b32.cont [11/16] %v2881, 128
    %2946 = vxpose.xlu0.b32.cont [12/16] %v2882, 128
    %2947 = vxpose.xlu0.b32.cont [13/16] %v2883, 128
    %2948 = vxpose.xlu0.b32.cont [14/16] %v2884, 128
    %2949 = vxpose.xlu0.b32.cont [15/16] %v2885, 128
    %2950 = vxpose.xlu0.b32.end [16/16] %v2886, 128
    %v2951 = vpop.trf.xlu0
    %v2952 = vpop.trf.xlu0
    %v2953 = vpop.trf.xlu0
    %v2954 = vpop.trf.xlu0
    %v2955 = vpop.trf.xlu0
    %v2956 = vpop.trf.xlu0
    %v2957 = vpop.trf.xlu0
    %v2958 = vpop.trf.xlu0
    %v2959 = vpop.trf.xlu0
    %v2960 = vpop.trf.xlu0
    %v2961 = vpop.trf.xlu0
    %v2962 = vpop.trf.xlu0
    %v2963 = vpop.trf.xlu0
    %v2964 = vpop.trf.xlu0
    %v2965 = vpop.trf.xlu0
    %v2966 = vpop.trf.xlu0
    %2967 = vxpose.xlu0.b32.start [1/16] %v2887, 128
    %2968 = vxpose.xlu0.b32.cont [2/16] %v2888, 128
    %2969 = vxpose.xlu0.b32.cont [3/16] %v2889, 128
    %2970 = vxpose.xlu0.b32.cont [4/16] %v2890, 128
    %2971 = vxpose.xlu0.b32.cont [5/16] %v2891, 128
    %2972 = vxpose.xlu0.b32.cont [6/16] %v2892, 128
    %2973 = vxpose.xlu0.b32.cont [7/16] %v2893, 128
    %2974 = vxpose.xlu0.b32.cont [8/16] %v2894, 128
    %2975 = vxpose.xlu0.b32.cont [9/16] %v2895, 128
    %2976 = vxpose.xlu0.b32.cont [10/16] %v2896, 128
    %2977 = vxpose.xlu0.b32.cont [11/16] %v2897, 128
    %2978 = vxpose.xlu0.b32.cont [12/16] %v2898, 128
    %2979 = vxpose.xlu0.b32.cont [13/16] %v2899, 128
    %2980 = vxpose.xlu0.b32.cont [14/16] %v2900, 128
    %2981 = vxpose.xlu0.b32.cont [15/16] %v2901, 128
    %2982 = vxpose.xlu0.b32.end [16/16] %v2902, 128
    %v2983 = vpop.trf.xlu0
    %v2984 = vpop.trf.xlu0
    %v2985 = vpop.trf.xlu0
    %v2986 = vpop.trf.xlu0
    %v2987 = vpop.trf.xlu0
    %v2988 = vpop.trf.xlu0
    %v2989 = vpop.trf.xlu0
    %v2990 = vpop.trf.xlu0
    %v2991 = vpop.trf.xlu0
    %v2992 = vpop.trf.xlu0
    %v2993 = vpop.trf.xlu0
    %v2994 = vpop.trf.xlu0
    %v2995 = vpop.trf.xlu0
    %v2996 = vpop.trf.xlu0
    %v2997 = vpop.trf.xlu0
    %v2998 = vpop.trf.xlu0
    %2999 = vxpose.xlu0.b32.start [1/16] %v2903, 128
    %3000 = vxpose.xlu0.b32.cont [2/16] %v2904, 128
    %3001 = vxpose.xlu0.b32.cont [3/16] %v2905, 128
    %3002 = vxpose.xlu0.b32.cont [4/16] %v2906, 128
    %3003 = vxpose.xlu0.b32.cont [5/16] %v2907, 128
    %3004 = vxpose.xlu0.b32.cont [6/16] %v2908, 128
    %3005 = vxpose.xlu0.b32.cont [7/16] %v2909, 128
    %3006 = vxpose.xlu0.b32.cont [8/16] %v2910, 128
    %3007 = vxpose.xlu0.b32.cont [9/16] %v2911, 128
    %3008 = vxpose.xlu0.b32.cont [10/16] %v2912, 128
    %3009 = vxpose.xlu0.b32.cont [11/16] %v2913, 128
    %3010 = vxpose.xlu0.b32.cont [12/16] %v2914, 128
    %3011 = vxpose.xlu0.b32.cont [13/16] %v2915, 128
    %3012 = vxpose.xlu0.b32.cont [14/16] %v2916, 128
    %3013 = vxpose.xlu0.b32.cont [15/16] %v2917, 128
    %3014 = vxpose.xlu0.b32.end [16/16] %v2918, 128
    %v3015 = vpop.trf.xlu0
    %v3016 = vpop.trf.xlu0
    %v3017 = vpop.trf.xlu0
    %v3018 = vpop.trf.xlu0
    %v3019 = vpop.trf.xlu0
    %v3020 = vpop.trf.xlu0
    %v3021 = vpop.trf.xlu0
    %v3022 = vpop.trf.xlu0
    %v3023 = vpop.trf.xlu0
    %v3024 = vpop.trf.xlu0
    %v3025 = vpop.trf.xlu0
    %v3026 = vpop.trf.xlu0
    %v3027 = vpop.trf.xlu0
    %v3028 = vpop.trf.xlu0
    %v3029 = vpop.trf.xlu0
    %v3030 = vpop.trf.xlu0
    %3031 = vxpose.xlu0.b32.start [1/16] %v2919, 128
    %3032 = vxpose.xlu0.b32.cont [2/16] %v2920, 128
    %3033 = vxpose.xlu0.b32.cont [3/16] %v2921, 128
    %3034 = vxpose.xlu0.b32.cont [4/16] %v2922, 128
    %3035 = vxpose.xlu0.b32.cont [5/16] %v2923, 128
    %3036 = vxpose.xlu0.b32.cont [6/16] %v2924, 128
    %3037 = vxpose.xlu0.b32.cont [7/16] %v2925, 128
    %3038 = vxpose.xlu0.b32.cont [8/16] %v2926, 128
    %3039 = vxpose.xlu0.b32.cont [9/16] %v2927, 128
    %3040 = vxpose.xlu0.b32.cont [10/16] %v2928, 128
    %3041 = vxpose.xlu0.b32.cont [11/16] %v2929, 128
    %3042 = vxpose.xlu0.b32.cont [12/16] %v2930, 128
    %3043 = vxpose.xlu0.b32.cont [13/16] %v2931, 128
    %3044 = vxpose.xlu0.b32.cont [14/16] %v2932, 128
    %3045 = vxpose.xlu0.b32.cont [15/16] %v2933, 128
    %3046 = vxpose.xlu0.b32.end [16/16] %v2934, 128
    %v3047 = vpop.trf.xlu0
    %v3048 = vpop.trf.xlu0
    %v3049 = vpop.trf.xlu0
    %v3050 = vpop.trf.xlu0
    %v3051 = vpop.trf.xlu0
    %v3052 = vpop.trf.xlu0
    %v3053 = vpop.trf.xlu0
    %v3054 = vpop.trf.xlu0
    %v3055 = vpop.trf.xlu0
    %v3056 = vpop.trf.xlu0
    %v3057 = vpop.trf.xlu0
    %v3058 = vpop.trf.xlu0
    %v3059 = vpop.trf.xlu0
    %v3060 = vpop.trf.xlu0
    %v3061 = vpop.trf.xlu0
    %v3062 = vpop.trf.xlu0
    %v3064 = vsel %vm964, %v136, 0
    %3066 = vmatpush.bf16.msra.mxu0 0
    %3067 = vmatpush.bf16.msra.mxu0 0
    %3068 = vmatpush.bf16.msra.mxu0 0
    %3069 = vmatpush.bf16.msra.mxu0 0
    %3070 = vmatpush.bf16.msra.mxu0 0
    %3071 = vmatpush.bf16.msra.mxu0 0
    %3072 = vmatpush.bf16.msra.mxu0 0
    %3073 = vmatpush.bf16.msra.mxu0 %v3064
    %3074 = vmatmul.bf16.gmra.mxu0 %v872
    %v3075 = vpop.f32.mrf.mxu0
    %v3076 = vadd.f32 0.0, %v3075
    %v3077 = vpop.f32.mrf.mxu0
    %v3078 = vadd.f32 0.0, %v3077
    %3079 = vmatmul.bf16.gmra.mxu0 %v875
    %v3080 = vpop.f32.mrf.mxu0
    %v3081 = vadd.f32 0.0, %v3080
    %v3082 = vpop.f32.mrf.mxu0
    %v3083 = vadd.f32 0.0, %v3082
    %3084 = vmatmul.bf16.gmra.mxu0 %v878
    %v3085 = vpop.f32.mrf.mxu0
    %v3086 = vadd.f32 0.0, %v3085
    %v3087 = vpop.f32.mrf.mxu0
    %v3088 = vadd.f32 0.0, %v3087
    %3089 = vmatmul.bf16.gmra.mxu0 %v881
    %v3090 = vpop.f32.mrf.mxu0
    %v3091 = vadd.f32 0.0, %v3090
    %v3092 = vpop.f32.mrf.mxu0
    %v3093 = vadd.f32 0.0, %v3092
    %3094 = vmatmul.bf16.gmra.mxu0 %v884
    %v3095 = vpop.f32.mrf.mxu0
    %v3096 = vadd.f32 0.0, %v3095
    %v3097 = vpop.f32.mrf.mxu0
    %v3098 = vadd.f32 0.0, %v3097
    %3099 = vmatmul.bf16.gmra.mxu0 %v887
    %v3100 = vpop.f32.mrf.mxu0
    %v3101 = vadd.f32 0.0, %v3100
    %v3102 = vpop.f32.mrf.mxu0
    %v3103 = vadd.f32 0.0, %v3102
    %3104 = vmatmul.bf16.gmra.mxu0 %v890
    %v3105 = vpop.f32.mrf.mxu0
    %v3106 = vadd.f32 0.0, %v3105
    %v3107 = vpop.f32.mrf.mxu0
    %v3108 = vadd.f32 0.0, %v3107
    %3109 = vmatmul.bf16.gmra.mxu0 %v893
    %v3110 = vpop.f32.mrf.mxu0
    %v3111 = vadd.f32 0.0, %v3110
    %v3112 = vpop.f32.mrf.mxu0
    %v3113 = vadd.f32 0.0, %v3112
    %3114 = vmatmul.bf16.gmra.mxu0 %v896
    %v3115 = vpop.f32.mrf.mxu0
    %v3116 = vadd.f32 0.0, %v3115
    %v3117 = vpop.f32.mrf.mxu0
    %v3118 = vadd.f32 0.0, %v3117
    %3119 = vmatmul.bf16.gmra.mxu0 %v899
    %v3120 = vpop.f32.mrf.mxu0
    %v3121 = vadd.f32 0.0, %v3120
    %v3122 = vpop.f32.mrf.mxu0
    %v3123 = vadd.f32 0.0, %v3122
    %3124 = vmatmul.bf16.gmra.mxu0 %v902
    %v3125 = vpop.f32.mrf.mxu0
    %v3126 = vadd.f32 0.0, %v3125
    %v3127 = vpop.f32.mrf.mxu0
    %v3128 = vadd.f32 0.0, %v3127
    %3129 = vmatmul.bf16.gmra.mxu0 %v905
    %v3130 = vpop.f32.mrf.mxu0
    %v3131 = vadd.f32 0.0, %v3130
    %v3132 = vpop.f32.mrf.mxu0
    %v3133 = vadd.f32 0.0, %v3132
    %3134 = vmatmul.bf16.gmra.mxu0 %v908
    %v3135 = vpop.f32.mrf.mxu0
    %v3136 = vadd.f32 0.0, %v3135
    %v3137 = vpop.f32.mrf.mxu0
    %v3138 = vadd.f32 0.0, %v3137
    %3139 = vmatmul.bf16.gmra.mxu0 %v911
    %v3140 = vpop.f32.mrf.mxu0
    %v3141 = vadd.f32 0.0, %v3140
    %v3142 = vpop.f32.mrf.mxu0
    %v3143 = vadd.f32 0.0, %v3142
    %3144 = vmatmul.bf16.gmra.mxu0 %v914
    %v3145 = vpop.f32.mrf.mxu0
    %v3146 = vadd.f32 0.0, %v3145
    %v3147 = vpop.f32.mrf.mxu0
    %v3148 = vadd.f32 0.0, %v3147
    %3149 = vmatmul.bf16.gmra.mxu0 %v1648
    %v3150 = vpop.f32.mrf.mxu0
    %v3151 = vadd.f32 0.0, %v3150
    %v3152 = vpop.f32.mrf.mxu0
    %v3153 = vadd.f32 0.0, %v3152
    %3154 = vmatmul.bf16.gmra.mxu0 %v920
    %v3155 = vpop.f32.mrf.mxu0
    %v3156 = vadd.f32 0.0, %v3155
    %v3157 = vpop.f32.mrf.mxu0
    %v3158 = vadd.f32 0.0, %v3157
    %3159 = vmatmul.bf16.gmra.mxu0 %v923
    %v3160 = vpop.f32.mrf.mxu0
    %v3161 = vadd.f32 0.0, %v3160
    %v3162 = vpop.f32.mrf.mxu0
    %v3163 = vadd.f32 0.0, %v3162
    %3164 = vmatmul.bf16.gmra.mxu0 %v926
    %v3165 = vpop.f32.mrf.mxu0
    %v3166 = vadd.f32 0.0, %v3165
    %v3167 = vpop.f32.mrf.mxu0
    %v3168 = vadd.f32 0.0, %v3167
    %3169 = vmatmul.bf16.gmra.mxu0 %v929
    %v3170 = vpop.f32.mrf.mxu0
    %v3171 = vadd.f32 0.0, %v3170
    %v3172 = vpop.f32.mrf.mxu0
    %v3173 = vadd.f32 0.0, %v3172
    %3174 = vmatmul.bf16.gmra.mxu0 %v932
    %v3175 = vpop.f32.mrf.mxu0
    %v3176 = vadd.f32 0.0, %v3175
    %v3177 = vpop.f32.mrf.mxu0
    %v3178 = vadd.f32 0.0, %v3177
    %3179 = vmatmul.bf16.gmra.mxu0 %v935
    %v3180 = vpop.f32.mrf.mxu0
    %v3181 = vadd.f32 0.0, %v3180
    %v3182 = vpop.f32.mrf.mxu0
    %v3183 = vadd.f32 0.0, %v3182
    %3184 = vmatmul.bf16.gmra.mxu0 %v938
    %v3185 = vpop.f32.mrf.mxu0
    %v3186 = vadd.f32 0.0, %v3185
    %v3187 = vpop.f32.mrf.mxu0
    %v3188 = vadd.f32 0.0, %v3187
    %3189 = vmatmul.bf16.gmra.mxu0 %v941
    %v3190 = vpop.f32.mrf.mxu0
    %v3191 = vadd.f32 0.0, %v3190
    %v3192 = vpop.f32.mrf.mxu0
    %v3193 = vadd.f32 0.0, %v3192
    %3194 = vmatmul.bf16.gmra.mxu0 %v944
    %v3195 = vpop.f32.mrf.mxu0
    %v3196 = vadd.f32 0.0, %v3195
    %v3197 = vpop.f32.mrf.mxu0
    %v3198 = vadd.f32 0.0, %v3197
    %3199 = vmatmul.bf16.gmra.mxu0 %v947
    %v3200 = vpop.f32.mrf.mxu0
    %v3201 = vadd.f32 0.0, %v3200
    %v3202 = vpop.f32.mrf.mxu0
    %v3203 = vadd.f32 0.0, %v3202
    %3204 = vmatmul.bf16.gmra.mxu0 %v950
    %v3205 = vpop.f32.mrf.mxu0
    %v3206 = vadd.f32 0.0, %v3205
    %v3207 = vpop.f32.mrf.mxu0
    %v3208 = vadd.f32 0.0, %v3207
    %3209 = vmatmul.bf16.gmra.mxu0 %v953
    %v3210 = vpop.f32.mrf.mxu0
    %v3211 = vadd.f32 0.0, %v3210
    %v3212 = vpop.f32.mrf.mxu0
    %v3213 = vadd.f32 0.0, %v3212
    %3214 = vmatmul.bf16.gmra.mxu0 %v956
    %v3215 = vpop.f32.mrf.mxu0
    %v3216 = vadd.f32 0.0, %v3215
    %v3217 = vpop.f32.mrf.mxu0
    %v3218 = vadd.f32 0.0, %v3217
    %3219 = vmatmul.bf16.gmra.mxu0 %v959
    %v3220 = vpop.f32.mrf.mxu0
    %v3221 = vadd.f32 0.0, %v3220
    %v3222 = vpop.f32.mrf.mxu0
    %v3223 = vadd.f32 0.0, %v3222
    %3224 = vmatmul.bf16.gmra.mxu0 %v962
    %v3225 = vpop.f32.mrf.mxu0
    %v3226 = vadd.f32 0.0, %v3225
    %v3227 = vpop.f32.mrf.mxu0
    %v3228 = vadd.f32 0.0, %v3227
    %3229 = vmatmul.bf16.gmra.mxu0 %v1651
    %v3230 = vpop.f32.mrf.mxu0
    %v3231 = vadd.f32 0.0, %v3230
    %v3232 = vpop.f32.mrf.mxu0
    %v3233 = vadd.f32 0.0, %v3232
    %3234 = vdwg.mxu0
    %v3236 = vsel %vm964, %v135, 0
    %3238 = vmatpush.bf16.msra.mxu0 0
    %3239 = vmatpush.bf16.msra.mxu0 0
    %3240 = vmatpush.bf16.msra.mxu0 0
    %3241 = vmatpush.bf16.msra.mxu0 0
    %3242 = vmatpush.bf16.msra.mxu0 0
    %3243 = vmatpush.bf16.msra.mxu0 0
    %3244 = vmatpush.bf16.msra.mxu0 0
    %3245 = vmatpush.bf16.msra.mxu0 %v3236
    %3246 = vmatmul.bf16.gmra.mxu0 %v1141
    %v3247 = vpop.f32.mrf.mxu0
    %v3248 = vadd.f32 %v3076, %v3247
    %v3249 = vpop.f32.mrf.mxu0
    %v3250 = vadd.f32 %v3078, %v3249
    %3251 = vmatmul.bf16.gmra.mxu0 %v1144
    %v3252 = vpop.f32.mrf.mxu0
    %v3253 = vadd.f32 %v3081, %v3252
    %v3254 = vpop.f32.mrf.mxu0
    %v3255 = vadd.f32 %v3083, %v3254
    %3256 = vmatmul.bf16.gmra.mxu0 %v1147
    %v3257 = vpop.f32.mrf.mxu0
    %v3258 = vadd.f32 %v3086, %v3257
    %v3259 = vpop.f32.mrf.mxu0
    %v3260 = vadd.f32 %v3088, %v3259
    %3261 = vmatmul.bf16.gmra.mxu0 %v1150
    %v3262 = vpop.f32.mrf.mxu0
    %v3263 = vadd.f32 %v3091, %v3262
    %v3264 = vpop.f32.mrf.mxu0
    %v3265 = vadd.f32 %v3093, %v3264
    %3266 = vmatmul.bf16.gmra.mxu0 %v1153
    %v3267 = vpop.f32.mrf.mxu0
    %v3268 = vadd.f32 %v3096, %v3267
    %v3269 = vpop.f32.mrf.mxu0
    %v3270 = vadd.f32 %v3098, %v3269
    %3271 = vmatmul.bf16.gmra.mxu0 %v1156
    %v3272 = vpop.f32.mrf.mxu0
    %v3273 = vadd.f32 %v3101, %v3272
    %v3274 = vpop.f32.mrf.mxu0
    %v3275 = vadd.f32 %v3103, %v3274
    %3276 = vmatmul.bf16.gmra.mxu0 %v1159
    %v3277 = vpop.f32.mrf.mxu0
    %v3278 = vadd.f32 %v3106, %v3277
    %v3279 = vpop.f32.mrf.mxu0
    %v3280 = vadd.f32 %v3108, %v3279
    %3281 = vmatmul.bf16.gmra.mxu0 %v1162
    %v3282 = vpop.f32.mrf.mxu0
    %v3283 = vadd.f32 %v3111, %v3282
    %v3284 = vpop.f32.mrf.mxu0
    %v3285 = vadd.f32 %v3113, %v3284
    %3286 = vmatmul.bf16.gmra.mxu0 %v1165
    %v3287 = vpop.f32.mrf.mxu0
    %v3288 = vadd.f32 %v3116, %v3287
    %v3289 = vpop.f32.mrf.mxu0
    %v3290 = vadd.f32 %v3118, %v3289
    %3291 = vmatmul.bf16.gmra.mxu0 %v1168
    %v3292 = vpop.f32.mrf.mxu0
    %v3293 = vadd.f32 %v3121, %v3292
    %v3294 = vpop.f32.mrf.mxu0
    %v3295 = vadd.f32 %v3123, %v3294
    %3296 = vmatmul.bf16.gmra.mxu0 %v1171
    %v3297 = vpop.f32.mrf.mxu0
    %v3298 = vadd.f32 %v3126, %v3297
    %v3299 = vpop.f32.mrf.mxu0
    %v3300 = vadd.f32 %v3128, %v3299
    %3301 = vmatmul.bf16.gmra.mxu0 %v1174
    %v3302 = vpop.f32.mrf.mxu0
    %v3303 = vadd.f32 %v3131, %v3302
    %v3304 = vpop.f32.mrf.mxu0
    %v3305 = vadd.f32 %v3133, %v3304
    %3306 = vmatmul.bf16.gmra.mxu0 %v1177
    %v3307 = vpop.f32.mrf.mxu0
    %v3308 = vadd.f32 %v3136, %v3307
    %v3309 = vpop.f32.mrf.mxu0
    %v3310 = vadd.f32 %v3138, %v3309
    %3311 = vmatmul.bf16.gmra.mxu0 %v1180
    %v3312 = vpop.f32.mrf.mxu0
    %v3313 = vadd.f32 %v3141, %v3312
    %v3314 = vpop.f32.mrf.mxu0
    %v3315 = vadd.f32 %v3143, %v3314
    %3316 = vmatmul.bf16.gmra.mxu0 %v1183
    %v3317 = vpop.f32.mrf.mxu0
    %v3318 = vadd.f32 %v3146, %v3317
    %v3319 = vpop.f32.mrf.mxu0
    %v3320 = vadd.f32 %v3148, %v3319
    %3321 = vmatmul.bf16.gmra.mxu0 %v1406
    %v3322 = vpop.f32.mrf.mxu0
    %v3323 = vadd.f32 %v3151, %v3322
    %v3324 = vpop.f32.mrf.mxu0
    %v3325 = vadd.f32 %v3153, %v3324
    %3326 = vmatmul.bf16.gmra.mxu0 %v1189
    %v3327 = vpop.f32.mrf.mxu0
    %v3328 = vadd.f32 %v3156, %v3327
    %v3329 = vpop.f32.mrf.mxu0
    %v3330 = vadd.f32 %v3158, %v3329
    %3331 = vmatmul.bf16.gmra.mxu0 %v1192
    %v3332 = vpop.f32.mrf.mxu0
    %v3333 = vadd.f32 %v3161, %v3332
    %v3334 = vpop.f32.mrf.mxu0
    %v3335 = vadd.f32 %v3163, %v3334
    %3336 = vmatmul.bf16.gmra.mxu0 %v1195
    %v3337 = vpop.f32.mrf.mxu0
    %v3338 = vadd.f32 %v3166, %v3337
    %v3339 = vpop.f32.mrf.mxu0
    %v3340 = vadd.f32 %v3168, %v3339
    %3341 = vmatmul.bf16.gmra.mxu0 %v1198
    %v3342 = vpop.f32.mrf.mxu0
    %v3343 = vadd.f32 %v3171, %v3342
    %v3344 = vpop.f32.mrf.mxu0
    %v3345 = vadd.f32 %v3173, %v3344
    %3346 = vmatmul.bf16.gmra.mxu0 %v1201
    %v3347 = vpop.f32.mrf.mxu0
    %v3348 = vadd.f32 %v3176, %v3347
    %v3349 = vpop.f32.mrf.mxu0
    %v3350 = vadd.f32 %v3178, %v3349
    %3351 = vmatmul.bf16.gmra.mxu0 %v1204
    %v3352 = vpop.f32.mrf.mxu0
    %v3353 = vadd.f32 %v3181, %v3352
    %v3354 = vpop.f32.mrf.mxu0
    %v3355 = vadd.f32 %v3183, %v3354
    %3356 = vmatmul.bf16.gmra.mxu0 %v1207
    %v3357 = vpop.f32.mrf.mxu0
    %v3358 = vadd.f32 %v3186, %v3357
    %v3359 = vpop.f32.mrf.mxu0
    %v3360 = vadd.f32 %v3188, %v3359
    %3361 = vmatmul.bf16.gmra.mxu0 %v1210
    %v3362 = vpop.f32.mrf.mxu0
    %v3363 = vadd.f32 %v3191, %v3362
    %v3364 = vpop.f32.mrf.mxu0
    %v3365 = vadd.f32 %v3193, %v3364
    %3366 = vmatmul.bf16.gmra.mxu0 %v1213
    %v3367 = vpop.f32.mrf.mxu0
    %v3368 = vadd.f32 %v3196, %v3367
    %v3369 = vpop.f32.mrf.mxu0
    %v3370 = vadd.f32 %v3198, %v3369
    %3371 = vmatmul.bf16.gmra.mxu0 %v1216
    %v3372 = vpop.f32.mrf.mxu0
    %v3373 = vadd.f32 %v3201, %v3372
    %v3374 = vpop.f32.mrf.mxu0
    %v3375 = vadd.f32 %v3203, %v3374
    %3376 = vmatmul.bf16.gmra.mxu0 %v1219
    %v3377 = vpop.f32.mrf.mxu0
    %v3378 = vadd.f32 %v3206, %v3377
    %v3379 = vpop.f32.mrf.mxu0
    %v3380 = vadd.f32 %v3208, %v3379
    %3381 = vmatmul.bf16.gmra.mxu0 %v1222
    %v3382 = vpop.f32.mrf.mxu0
    %v3383 = vadd.f32 %v3211, %v3382
    %v3384 = vpop.f32.mrf.mxu0
    %v3385 = vadd.f32 %v3213, %v3384
    %3386 = vmatmul.bf16.gmra.mxu0 %v1225
    %v3387 = vpop.f32.mrf.mxu0
    %v3388 = vadd.f32 %v3216, %v3387
    %v3389 = vpop.f32.mrf.mxu0
    %v3390 = vadd.f32 %v3218, %v3389
    %3391 = vmatmul.bf16.gmra.mxu0 %v1228
    %v3392 = vpop.f32.mrf.mxu0
    %v3393 = vadd.f32 %v3221, %v3392
    %v3394 = vpop.f32.mrf.mxu0
    %v3395 = vadd.f32 %v3223, %v3394
    %3396 = vmatmul.bf16.gmra.mxu0 %v1231
    %v3397 = vpop.f32.mrf.mxu0
    %v3398 = vadd.f32 %v3226, %v3397
    %v3399 = vpop.f32.mrf.mxu0
    %v3400 = vadd.f32 %v3228, %v3399
    %3401 = vmatmul.bf16.gmra.mxu0 %v1409
    %v3402 = vpop.f32.mrf.mxu0
    %v3403 = vadd.f32 %v3231, %v3402
    %v3404 = vpop.f32.mrf.mxu0
    %v3405 = vadd.f32 %v3233, %v3404
    %3406 = vdwg.mxu0
    %v3408 = vsel %vm867, %v827, 0
    %v3411 = vsel %vm867, %v828, 0
    %v3414 = vsel %vm964, %v137, 0
    %3416 = vmatpush.bf16.msra.mxu0 0
    %3417 = vmatpush.bf16.msra.mxu0 0
    %3418 = vmatpush.bf16.msra.mxu0 0
    %3419 = vmatpush.bf16.msra.mxu0 0
    %3420 = vmatpush.bf16.msra.mxu0 0
    %3421 = vmatpush.bf16.msra.mxu0 0
    %3422 = vmatpush.bf16.msra.mxu0 0
    %3423 = vmatpush.bf16.msra.mxu0 %v3414
    %3424 = vmatmul.bf16.gmra.mxu0 %v1144
    %v3425 = vpop.f32.mrf.mxu0
    %v3426 = vadd.f32 0.0, %v3425
    %v3427 = vpop.f32.mrf.mxu0
    %v3428 = vadd.f32 0.0, %v3427
    %3429 = vmatmul.bf16.gmra.mxu0 %v1147
    %v3430 = vpop.f32.mrf.mxu0
    %v3431 = vadd.f32 0.0, %v3430
    %v3432 = vpop.f32.mrf.mxu0
    %v3433 = vadd.f32 0.0, %v3432
    %3434 = vmatmul.bf16.gmra.mxu0 %v1150
    %v3435 = vpop.f32.mrf.mxu0
    %v3436 = vadd.f32 0.0, %v3435
    %v3437 = vpop.f32.mrf.mxu0
    %v3438 = vadd.f32 0.0, %v3437
    %3439 = vmatmul.bf16.gmra.mxu0 %v1153
    %v3440 = vpop.f32.mrf.mxu0
    %v3441 = vadd.f32 0.0, %v3440
    %v3442 = vpop.f32.mrf.mxu0
    %v3443 = vadd.f32 0.0, %v3442
    %3444 = vmatmul.bf16.gmra.mxu0 %v1156
    %v3445 = vpop.f32.mrf.mxu0
    %v3446 = vadd.f32 0.0, %v3445
    %v3447 = vpop.f32.mrf.mxu0
    %v3448 = vadd.f32 0.0, %v3447
    %3449 = vmatmul.bf16.gmra.mxu0 %v1159
    %v3450 = vpop.f32.mrf.mxu0
    %v3451 = vadd.f32 0.0, %v3450
    %v3452 = vpop.f32.mrf.mxu0
    %v3453 = vadd.f32 0.0, %v3452
    %3454 = vmatmul.bf16.gmra.mxu0 %v1162
    %v3455 = vpop.f32.mrf.mxu0
    %v3456 = vadd.f32 0.0, %v3455
    %v3457 = vpop.f32.mrf.mxu0
    %v3458 = vadd.f32 0.0, %v3457
    %3459 = vmatmul.bf16.gmra.mxu0 %v1165
    %v3460 = vpop.f32.mrf.mxu0
    %v3461 = vadd.f32 0.0, %v3460
    %v3462 = vpop.f32.mrf.mxu0
    %v3463 = vadd.f32 0.0, %v3462
    %3464 = vmatmul.bf16.gmra.mxu0 %v1168
    %v3465 = vpop.f32.mrf.mxu0
    %v3466 = vadd.f32 0.0, %v3465
    %v3467 = vpop.f32.mrf.mxu0
    %v3468 = vadd.f32 0.0, %v3467
    %3469 = vmatmul.bf16.gmra.mxu0 %v1171
    %v3470 = vpop.f32.mrf.mxu0
    %v3471 = vadd.f32 0.0, %v3470
    %v3472 = vpop.f32.mrf.mxu0
    %v3473 = vadd.f32 0.0, %v3472
    %3474 = vmatmul.bf16.gmra.mxu0 %v1174
    %v3475 = vpop.f32.mrf.mxu0
    %v3476 = vadd.f32 0.0, %v3475
    %v3477 = vpop.f32.mrf.mxu0
    %v3478 = vadd.f32 0.0, %v3477
    %3479 = vmatmul.bf16.gmra.mxu0 %v1177
    %v3480 = vpop.f32.mrf.mxu0
    %v3481 = vadd.f32 0.0, %v3480
    %v3482 = vpop.f32.mrf.mxu0
    %v3483 = vadd.f32 0.0, %v3482
    %3484 = vmatmul.bf16.gmra.mxu0 %v1180
    %v3485 = vpop.f32.mrf.mxu0
    %v3486 = vadd.f32 0.0, %v3485
    %v3487 = vpop.f32.mrf.mxu0
    %v3488 = vadd.f32 0.0, %v3487
    %3489 = vmatmul.bf16.gmra.mxu0 %v1183
    %v3490 = vpop.f32.mrf.mxu0
    %v3491 = vadd.f32 0.0, %v3490
    %v3492 = vpop.f32.mrf.mxu0
    %v3493 = vadd.f32 0.0, %v3492
    %3494 = vmatmul.bf16.gmra.mxu0 %v1406
    %v3495 = vpop.f32.mrf.mxu0
    %v3496 = vadd.f32 0.0, %v3495
    %v3497 = vpop.f32.mrf.mxu0
    %v3498 = vadd.f32 0.0, %v3497
    %3499 = vmatmul.bf16.gmra.mxu0 %v3408
    %v3500 = vpop.f32.mrf.mxu0
    %v3501 = vadd.f32 0.0, %v3500
    %v3502 = vpop.f32.mrf.mxu0
    %v3503 = vadd.f32 0.0, %v3502
    %3504 = vmatmul.bf16.gmra.mxu0 %v1192
    %v3505 = vpop.f32.mrf.mxu0
    %v3506 = vadd.f32 0.0, %v3505
    %v3507 = vpop.f32.mrf.mxu0
    %v3508 = vadd.f32 0.0, %v3507
    %3509 = vmatmul.bf16.gmra.mxu0 %v1195
    %v3510 = vpop.f32.mrf.mxu0
    %v3511 = vadd.f32 0.0, %v3510
    %v3512 = vpop.f32.mrf.mxu0
    %v3513 = vadd.f32 0.0, %v3512
    %3514 = vmatmul.bf16.gmra.mxu0 %v1198
    %v3515 = vpop.f32.mrf.mxu0
    %v3516 = vadd.f32 0.0, %v3515
    %v3517 = vpop.f32.mrf.mxu0
    %v3518 = vadd.f32 0.0, %v3517
    %3519 = vmatmul.bf16.gmra.mxu0 %v1201
    %v3520 = vpop.f32.mrf.mxu0
    %v3521 = vadd.f32 0.0, %v3520
    %v3522 = vpop.f32.mrf.mxu0
    %v3523 = vadd.f32 0.0, %v3522
    %3524 = vmatmul.bf16.gmra.mxu0 %v1204
    %v3525 = vpop.f32.mrf.mxu0
    %v3526 = vadd.f32 0.0, %v3525
    %v3527 = vpop.f32.mrf.mxu0
    %v3528 = vadd.f32 0.0, %v3527
    %3529 = vmatmul.bf16.gmra.mxu0 %v1207
    %v3530 = vpop.f32.mrf.mxu0
    %v3531 = vadd.f32 0.0, %v3530
    %v3532 = vpop.f32.mrf.mxu0
    %v3533 = vadd.f32 0.0, %v3532
    %3534 = vmatmul.bf16.gmra.mxu0 %v1210
    %v3535 = vpop.f32.mrf.mxu0
    %v3536 = vadd.f32 0.0, %v3535
    %v3537 = vpop.f32.mrf.mxu0
    %v3538 = vadd.f32 0.0, %v3537
    %3539 = vmatmul.bf16.gmra.mxu0 %v1213
    %v3540 = vpop.f32.mrf.mxu0
    %v3541 = vadd.f32 0.0, %v3540
    %v3542 = vpop.f32.mrf.mxu0
    %v3543 = vadd.f32 0.0, %v3542
    %3544 = vmatmul.bf16.gmra.mxu0 %v1216
    %v3545 = vpop.f32.mrf.mxu0
    %v3546 = vadd.f32 0.0, %v3545
    %v3547 = vpop.f32.mrf.mxu0
    %v3548 = vadd.f32 0.0, %v3547
    %3549 = vmatmul.bf16.gmra.mxu0 %v1219
    %v3550 = vpop.f32.mrf.mxu0
    %v3551 = vadd.f32 0.0, %v3550
    %v3552 = vpop.f32.mrf.mxu0
    %v3553 = vadd.f32 0.0, %v3552
    %3554 = vmatmul.bf16.gmra.mxu0 %v1222
    %v3555 = vpop.f32.mrf.mxu0
    %v3556 = vadd.f32 0.0, %v3555
    %v3557 = vpop.f32.mrf.mxu0
    %v3558 = vadd.f32 0.0, %v3557
    %3559 = vmatmul.bf16.gmra.mxu0 %v1225
    %v3560 = vpop.f32.mrf.mxu0
    %v3561 = vadd.f32 0.0, %v3560
    %v3562 = vpop.f32.mrf.mxu0
    %v3563 = vadd.f32 0.0, %v3562
    %3564 = vmatmul.bf16.gmra.mxu0 %v1228
    %v3565 = vpop.f32.mrf.mxu0
    %v3566 = vadd.f32 0.0, %v3565
    %v3567 = vpop.f32.mrf.mxu0
    %v3568 = vadd.f32 0.0, %v3567
    %3569 = vmatmul.bf16.gmra.mxu0 %v1231
    %v3570 = vpop.f32.mrf.mxu0
    %v3571 = vadd.f32 0.0, %v3570
    %v3572 = vpop.f32.mrf.mxu0
    %v3573 = vadd.f32 0.0, %v3572
    %3574 = vmatmul.bf16.gmra.mxu0 %v1409
    %v3575 = vpop.f32.mrf.mxu0
    %v3576 = vadd.f32 0.0, %v3575
    %v3577 = vpop.f32.mrf.mxu0
    %v3578 = vadd.f32 0.0, %v3577
    %3579 = vmatmul.bf16.gmra.mxu0 %v3411
    %v3580 = vpop.f32.mrf.mxu0
    %v3581 = vadd.f32 0.0, %v3580
    %v3582 = vpop.f32.mrf.mxu0
    %v3583 = vadd.f32 0.0, %v3582
    %3584 = vdwg.mxu0
    %v3585 = vadd.f32 %v3248, %v3426
    %v3586 = vadd.f32 %v3250, %v3428
    %v3587 = vadd.f32 %v3253, %v3431
    %v3588 = vadd.f32 %v3255, %v3433
    %v3589 = vadd.f32 %v3258, %v3436
    %v3590 = vadd.f32 %v3260, %v3438
    %v3591 = vadd.f32 %v3263, %v3441
    %v3592 = vadd.f32 %v3265, %v3443
    %v3593 = vadd.f32 %v3268, %v3446
    %v3594 = vadd.f32 %v3270, %v3448
    %v3595 = vadd.f32 %v3273, %v3451
    %v3596 = vadd.f32 %v3275, %v3453
    %v3597 = vadd.f32 %v3278, %v3456
    %v3598 = vadd.f32 %v3280, %v3458
    %v3599 = vadd.f32 %v3283, %v3461
    %v3600 = vadd.f32 %v3285, %v3463
    %v3601 = vadd.f32 %v3288, %v3466
    %v3602 = vadd.f32 %v3290, %v3468
    %v3603 = vadd.f32 %v3293, %v3471
    %v3604 = vadd.f32 %v3295, %v3473
    %v3605 = vadd.f32 %v3298, %v3476
    %v3606 = vadd.f32 %v3300, %v3478
    %v3607 = vadd.f32 %v3303, %v3481
    %v3608 = vadd.f32 %v3305, %v3483
    %v3609 = vadd.f32 %v3308, %v3486
    %v3610 = vadd.f32 %v3310, %v3488
    %v3611 = vadd.f32 %v3313, %v3491
    %v3612 = vadd.f32 %v3315, %v3493
    %v3613 = vadd.f32 %v3318, %v3496
    %v3614 = vadd.f32 %v3320, %v3498
    %v3615 = vadd.f32 %v3323, %v3501
    %v3616 = vadd.f32 %v3325, %v3503
    %v3617 = vadd.f32 %v3328, %v3506
    %v3618 = vadd.f32 %v3330, %v3508
    %v3619 = vadd.f32 %v3333, %v3511
    %v3620 = vadd.f32 %v3335, %v3513
    %v3621 = vadd.f32 %v3338, %v3516
    %v3622 = vadd.f32 %v3340, %v3518
    %v3623 = vadd.f32 %v3343, %v3521
    %v3624 = vadd.f32 %v3345, %v3523
    %v3625 = vadd.f32 %v3348, %v3526
    %v3626 = vadd.f32 %v3350, %v3528
    %v3627 = vadd.f32 %v3353, %v3531
    %v3628 = vadd.f32 %v3355, %v3533
    %v3629 = vadd.f32 %v3358, %v3536
    %v3630 = vadd.f32 %v3360, %v3538
    %v3631 = vadd.f32 %v3363, %v3541
    %v3632 = vadd.f32 %v3365, %v3543
    %v3633 = vadd.f32 %v3368, %v3546
    %v3634 = vadd.f32 %v3370, %v3548
    %v3635 = vadd.f32 %v3373, %v3551
    %v3636 = vadd.f32 %v3375, %v3553
    %v3637 = vadd.f32 %v3378, %v3556
    %v3638 = vadd.f32 %v3380, %v3558
    %v3639 = vadd.f32 %v3383, %v3561
    %v3640 = vadd.f32 %v3385, %v3563
    %v3641 = vadd.f32 %v3388, %v3566
    %v3642 = vadd.f32 %v3390, %v3568
    %v3643 = vadd.f32 %v3393, %v3571
    %v3644 = vadd.f32 %v3395, %v3573
    %v3645 = vadd.f32 %v3398, %v3576
    %v3646 = vadd.f32 %v3400, %v3578
    %v3647 = vadd.f32 %v3403, %v3581
    %v3648 = vadd.f32 %v3405, %v3583
    %v3650 = vsel %vm867, %v849, 0
    %v3653 = vsel %vm867, %v850, 0
    %v3656 = vsel %vm964, %v138, 0
    %3658 = vmatpush.bf16.msra.mxu0 0
    %3659 = vmatpush.bf16.msra.mxu0 0
    %3660 = vmatpush.bf16.msra.mxu0 0
    %3661 = vmatpush.bf16.msra.mxu0 0
    %3662 = vmatpush.bf16.msra.mxu0 0
    %3663 = vmatpush.bf16.msra.mxu0 0
    %3664 = vmatpush.bf16.msra.mxu0 0
    %3665 = vmatpush.bf16.msra.mxu0 %v3656
    %3666 = vmatmul.bf16.gmra.mxu0 %v875
    %v3667 = vpop.f32.mrf.mxu0
    %v3668 = vadd.f32 0.0, %v3667
    %v3669 = vpop.f32.mrf.mxu0
    %v3670 = vadd.f32 0.0, %v3669
    %3671 = vmatmul.bf16.gmra.mxu0 %v878
    %v3672 = vpop.f32.mrf.mxu0
    %v3673 = vadd.f32 0.0, %v3672
    %v3674 = vpop.f32.mrf.mxu0
    %v3675 = vadd.f32 0.0, %v3674
    %3676 = vmatmul.bf16.gmra.mxu0 %v881
    %v3677 = vpop.f32.mrf.mxu0
    %v3678 = vadd.f32 0.0, %v3677
    %v3679 = vpop.f32.mrf.mxu0
    %v3680 = vadd.f32 0.0, %v3679
    %3681 = vmatmul.bf16.gmra.mxu0 %v884
    %v3682 = vpop.f32.mrf.mxu0
    %v3683 = vadd.f32 0.0, %v3682
    %v3684 = vpop.f32.mrf.mxu0
    %v3685 = vadd.f32 0.0, %v3684
    %3686 = vmatmul.bf16.gmra.mxu0 %v887
    %v3687 = vpop.f32.mrf.mxu0
    %v3688 = vadd.f32 0.0, %v3687
    %v3689 = vpop.f32.mrf.mxu0
    %v3690 = vadd.f32 0.0, %v3689
    %3691 = vmatmul.bf16.gmra.mxu0 %v890
    %v3692 = vpop.f32.mrf.mxu0
    %v3693 = vadd.f32 0.0, %v3692
    %v3694 = vpop.f32.mrf.mxu0
    %v3695 = vadd.f32 0.0, %v3694
    %3696 = vmatmul.bf16.gmra.mxu0 %v893
    %v3697 = vpop.f32.mrf.mxu0
    %v3698 = vadd.f32 0.0, %v3697
    %v3699 = vpop.f32.mrf.mxu0
    %v3700 = vadd.f32 0.0, %v3699
    %3701 = vmatmul.bf16.gmra.mxu0 %v896
    %v3702 = vpop.f32.mrf.mxu0
    %v3703 = vadd.f32 0.0, %v3702
    %v3704 = vpop.f32.mrf.mxu0
    %v3705 = vadd.f32 0.0, %v3704
    %3706 = vmatmul.bf16.gmra.mxu0 %v899
    %v3707 = vpop.f32.mrf.mxu0
    %v3708 = vadd.f32 0.0, %v3707
    %v3709 = vpop.f32.mrf.mxu0
    %v3710 = vadd.f32 0.0, %v3709
    %3711 = vmatmul.bf16.gmra.mxu0 %v902
    %v3712 = vpop.f32.mrf.mxu0
    %v3713 = vadd.f32 0.0, %v3712
    %v3714 = vpop.f32.mrf.mxu0
    %v3715 = vadd.f32 0.0, %v3714
    %3716 = vmatmul.bf16.gmra.mxu0 %v905
    %v3717 = vpop.f32.mrf.mxu0
    %v3718 = vadd.f32 0.0, %v3717
    %v3719 = vpop.f32.mrf.mxu0
    %v3720 = vadd.f32 0.0, %v3719
    %3721 = vmatmul.bf16.gmra.mxu0 %v908
    %v3722 = vpop.f32.mrf.mxu0
    %v3723 = vadd.f32 0.0, %v3722
    %v3724 = vpop.f32.mrf.mxu0
    %v3725 = vadd.f32 0.0, %v3724
    %3726 = vmatmul.bf16.gmra.mxu0 %v911
    %v3727 = vpop.f32.mrf.mxu0
    %v3728 = vadd.f32 0.0, %v3727
    %v3729 = vpop.f32.mrf.mxu0
    %v3730 = vadd.f32 0.0, %v3729
    %3731 = vmatmul.bf16.gmra.mxu0 %v914
    %v3732 = vpop.f32.mrf.mxu0
    %v3733 = vadd.f32 0.0, %v3732
    %v3734 = vpop.f32.mrf.mxu0
    %v3735 = vadd.f32 0.0, %v3734
    %3736 = vmatmul.bf16.gmra.mxu0 %v1648
    %v3737 = vpop.f32.mrf.mxu0
    %v3738 = vadd.f32 0.0, %v3737
    %v3739 = vpop.f32.mrf.mxu0
    %v3740 = vadd.f32 0.0, %v3739
    %3741 = vmatmul.bf16.gmra.mxu0 %v3650
    %v3742 = vpop.f32.mrf.mxu0
    %v3743 = vadd.f32 0.0, %v3742
    %v3744 = vpop.f32.mrf.mxu0
    %v3745 = vadd.f32 0.0, %v3744
    %3746 = vmatmul.bf16.gmra.mxu0 %v923
    %v3747 = vpop.f32.mrf.mxu0
    %v3748 = vadd.f32 0.0, %v3747
    %v3749 = vpop.f32.mrf.mxu0
    %v3750 = vadd.f32 0.0, %v3749
    %3751 = vmatmul.bf16.gmra.mxu0 %v926
    %v3752 = vpop.f32.mrf.mxu0
    %v3753 = vadd.f32 0.0, %v3752
    %v3754 = vpop.f32.mrf.mxu0
    %v3755 = vadd.f32 0.0, %v3754
    %3756 = vmatmul.bf16.gmra.mxu0 %v929
    %v3757 = vpop.f32.mrf.mxu0
    %v3758 = vadd.f32 0.0, %v3757
    %v3759 = vpop.f32.mrf.mxu0
    %v3760 = vadd.f32 0.0, %v3759
    %3761 = vmatmul.bf16.gmra.mxu0 %v932
    %v3762 = vpop.f32.mrf.mxu0
    %v3763 = vadd.f32 0.0, %v3762
    %v3764 = vpop.f32.mrf.mxu0
    %v3765 = vadd.f32 0.0, %v3764
    %3766 = vmatmul.bf16.gmra.mxu0 %v935
    %v3767 = vpop.f32.mrf.mxu0
    %v3768 = vadd.f32 0.0, %v3767
    %v3769 = vpop.f32.mrf.mxu0
    %v3770 = vadd.f32 0.0, %v3769
    %3771 = vmatmul.bf16.gmra.mxu0 %v938
    %v3772 = vpop.f32.mrf.mxu0
    %v3773 = vadd.f32 0.0, %v3772
    %v3774 = vpop.f32.mrf.mxu0
    %v3775 = vadd.f32 0.0, %v3774
    %3776 = vmatmul.bf16.gmra.mxu0 %v941
    %v3777 = vpop.f32.mrf.mxu0
    %v3778 = vadd.f32 0.0, %v3777
    %v3779 = vpop.f32.mrf.mxu0
    %v3780 = vadd.f32 0.0, %v3779
    %3781 = vmatmul.bf16.gmra.mxu0 %v944
    %v3782 = vpop.f32.mrf.mxu0
    %v3783 = vadd.f32 0.0, %v3782
    %v3784 = vpop.f32.mrf.mxu0
    %v3785 = vadd.f32 0.0, %v3784
    %3786 = vmatmul.bf16.gmra.mxu0 %v947
    %v3787 = vpop.f32.mrf.mxu0
    %v3788 = vadd.f32 0.0, %v3787
    %v3789 = vpop.f32.mrf.mxu0
    %v3790 = vadd.f32 0.0, %v3789
    %3791 = vmatmul.bf16.gmra.mxu0 %v950
    %v3792 = vpop.f32.mrf.mxu0
    %v3793 = vadd.f32 0.0, %v3792
    %v3794 = vpop.f32.mrf.mxu0
    %v3795 = vadd.f32 0.0, %v3794
    %3796 = vmatmul.bf16.gmra.mxu0 %v953
    %v3797 = vpop.f32.mrf.mxu0
    %v3798 = vadd.f32 0.0, %v3797
    %v3799 = vpop.f32.mrf.mxu0
    %v3800 = vadd.f32 0.0, %v3799
    %3801 = vmatmul.bf16.gmra.mxu0 %v956
    %v3802 = vpop.f32.mrf.mxu0
    %v3803 = vadd.f32 0.0, %v3802
    %v3804 = vpop.f32.mrf.mxu0
    %v3805 = vadd.f32 0.0, %v3804
    %3806 = vmatmul.bf16.gmra.mxu0 %v959
    %v3807 = vpop.f32.mrf.mxu0
    %v3808 = vadd.f32 0.0, %v3807
    %v3809 = vpop.f32.mrf.mxu0
    %v3810 = vadd.f32 0.0, %v3809
    %3811 = vmatmul.bf16.gmra.mxu0 %v962
    %v3812 = vpop.f32.mrf.mxu0
    %v3813 = vadd.f32 0.0, %v3812
    %v3814 = vpop.f32.mrf.mxu0
    %v3815 = vadd.f32 0.0, %v3814
    %3816 = vmatmul.bf16.gmra.mxu0 %v1651
    %v3817 = vpop.f32.mrf.mxu0
    %v3818 = vadd.f32 0.0, %v3817
    %v3819 = vpop.f32.mrf.mxu0
    %v3820 = vadd.f32 0.0, %v3819
    %3821 = vmatmul.bf16.gmra.mxu0 %v3653
    %v3822 = vpop.f32.mrf.mxu0
    %v3823 = vadd.f32 0.0, %v3822
    %v3824 = vpop.f32.mrf.mxu0
    %v3825 = vadd.f32 0.0, %v3824
    %3826 = vdwg.mxu0
    %v3827 = vadd.f32 %v3585, %v3668
    %v3828 = vadd.f32 %v3586, %v3670
    %v3829 = vadd.f32 %v3587, %v3673
    %v3830 = vadd.f32 %v3588, %v3675
    %v3831 = vadd.f32 %v3589, %v3678
    %v3832 = vadd.f32 %v3590, %v3680
    %v3833 = vadd.f32 %v3591, %v3683
    %v3834 = vadd.f32 %v3592, %v3685
    %v3835 = vadd.f32 %v3593, %v3688
    %v3836 = vadd.f32 %v3594, %v3690
    %v3837 = vadd.f32 %v3595, %v3693
    %v3838 = vadd.f32 %v3596, %v3695
    %v3839 = vadd.f32 %v3597, %v3698
    %v3840 = vadd.f32 %v3598, %v3700
    %v3841 = vadd.f32 %v3599, %v3703
    %v3842 = vadd.f32 %v3600, %v3705
    %v3843 = vadd.f32 %v3601, %v3708
    %v3844 = vadd.f32 %v3602, %v3710
    %v3845 = vadd.f32 %v3603, %v3713
    %v3846 = vadd.f32 %v3604, %v3715
    %v3847 = vadd.f32 %v3605, %v3718
    %v3848 = vadd.f32 %v3606, %v3720
    %v3849 = vadd.f32 %v3607, %v3723
    %v3850 = vadd.f32 %v3608, %v3725
    %v3851 = vadd.f32 %v3609, %v3728
    %v3852 = vadd.f32 %v3610, %v3730
    %v3853 = vadd.f32 %v3611, %v3733
    %v3854 = vadd.f32 %v3612, %v3735
    %v3855 = vadd.f32 %v3613, %v3738
    %v3856 = vadd.f32 %v3614, %v3740
    %v3857 = vadd.f32 %v3615, %v3743
    %v3858 = vadd.f32 %v3616, %v3745
    %v3859 = vadd.f32 %v3617, %v3748
    %v3860 = vadd.f32 %v3618, %v3750
    %v3861 = vadd.f32 %v3619, %v3753
    %v3862 = vadd.f32 %v3620, %v3755
    %v3863 = vadd.f32 %v3621, %v3758
    %v3864 = vadd.f32 %v3622, %v3760
    %v3865 = vadd.f32 %v3623, %v3763
    %v3866 = vadd.f32 %v3624, %v3765
    %v3867 = vadd.f32 %v3625, %v3768
    %v3868 = vadd.f32 %v3626, %v3770
    %v3869 = vadd.f32 %v3627, %v3773
    %v3870 = vadd.f32 %v3628, %v3775
    %v3871 = vadd.f32 %v3629, %v3778
    %v3872 = vadd.f32 %v3630, %v3780
    %v3873 = vadd.f32 %v3631, %v3783
    %v3874 = vadd.f32 %v3632, %v3785
    %v3875 = vadd.f32 %v3633, %v3788
    %v3876 = vadd.f32 %v3634, %v3790
    %v3877 = vadd.f32 %v3635, %v3793
    %v3878 = vadd.f32 %v3636, %v3795
    %v3879 = vadd.f32 %v3637, %v3798
    %v3880 = vadd.f32 %v3638, %v3800
    %v3881 = vadd.f32 %v3639, %v3803
    %v3882 = vadd.f32 %v3640, %v3805
    %v3883 = vadd.f32 %v3641, %v3808
    %v3884 = vadd.f32 %v3642, %v3810
    %v3885 = vadd.f32 %v3643, %v3813
    %v3886 = vadd.f32 %v3644, %v3815
    %v3887 = vadd.f32 %v3645, %v3818
    %v3888 = vadd.f32 %v3646, %v3820
    %v3889 = vadd.f32 %v3647, %v3823
    %v3890 = vadd.f32 %v3648, %v3825
    %3891 = vxpose.xlu0.b32.start [1/16] %v3827, 128
    %3892 = vxpose.xlu0.b32.cont [2/16] %v3828, 128
    %3893 = vxpose.xlu0.b32.cont [3/16] %v3829, 128
    %3894 = vxpose.xlu0.b32.cont [4/16] %v3830, 128
    %3895 = vxpose.xlu0.b32.cont [5/16] %v3831, 128
    %3896 = vxpose.xlu0.b32.cont [6/16] %v3832, 128
    %3897 = vxpose.xlu0.b32.cont [7/16] %v3833, 128
    %3898 = vxpose.xlu0.b32.cont [8/16] %v3834, 128
    %3899 = vxpose.xlu0.b32.cont [9/16] %v3835, 128
    %3900 = vxpose.xlu0.b32.cont [10/16] %v3836, 128
    %3901 = vxpose.xlu0.b32.cont [11/16] %v3837, 128
    %3902 = vxpose.xlu0.b32.cont [12/16] %v3838, 128
    %3903 = vxpose.xlu0.b32.cont [13/16] %v3839, 128
    %3904 = vxpose.xlu0.b32.cont [14/16] %v3840, 128
    %3905 = vxpose.xlu0.b32.cont [15/16] %v3841, 128
    %3906 = vxpose.xlu0.b32.end [16/16] %v3842, 128
    %v3907 = vpop.trf.xlu0
    %v3908 = vpop.trf.xlu0
    %v3909 = vpop.trf.xlu0
    %v3910 = vpop.trf.xlu0
    %v3911 = vpop.trf.xlu0
    %v3912 = vpop.trf.xlu0
    %v3913 = vpop.trf.xlu0
    %v3914 = vpop.trf.xlu0
    %v3915 = vpop.trf.xlu0
    %v3916 = vpop.trf.xlu0
    %v3917 = vpop.trf.xlu0
    %v3918 = vpop.trf.xlu0
    %v3919 = vpop.trf.xlu0
    %v3920 = vpop.trf.xlu0
    %v3921 = vpop.trf.xlu0
    %v3922 = vpop.trf.xlu0
    %3923 = vxpose.xlu0.b32.start [1/16] %v3843, 128
    %3924 = vxpose.xlu0.b32.cont [2/16] %v3844, 128
    %3925 = vxpose.xlu0.b32.cont [3/16] %v3845, 128
    %3926 = vxpose.xlu0.b32.cont [4/16] %v3846, 128
    %3927 = vxpose.xlu0.b32.cont [5/16] %v3847, 128
    %3928 = vxpose.xlu0.b32.cont [6/16] %v3848, 128
    %3929 = vxpose.xlu0.b32.cont [7/16] %v3849, 128
    %3930 = vxpose.xlu0.b32.cont [8/16] %v3850, 128
    %3931 = vxpose.xlu0.b32.cont [9/16] %v3851, 128
    %3932 = vxpose.xlu0.b32.cont [10/16] %v3852, 128
    %3933 = vxpose.xlu0.b32.cont [11/16] %v3853, 128
    %3934 = vxpose.xlu0.b32.cont [12/16] %v3854, 128
    %3935 = vxpose.xlu0.b32.cont [13/16] %v3855, 128
    %3936 = vxpose.xlu0.b32.cont [14/16] %v3856, 128
    %3937 = vxpose.xlu0.b32.cont [15/16] %v3857, 128
    %3938 = vxpose.xlu0.b32.end [16/16] %v3858, 128
    %v3939 = vpop.trf.xlu0
    %v3940 = vpop.trf.xlu0
    %v3941 = vpop.trf.xlu0
    %v3942 = vpop.trf.xlu0
    %v3943 = vpop.trf.xlu0
    %v3944 = vpop.trf.xlu0
    %v3945 = vpop.trf.xlu0
    %v3946 = vpop.trf.xlu0
    %v3947 = vpop.trf.xlu0
    %v3948 = vpop.trf.xlu0
    %v3949 = vpop.trf.xlu0
    %v3950 = vpop.trf.xlu0
    %v3951 = vpop.trf.xlu0
    %v3952 = vpop.trf.xlu0
    %v3953 = vpop.trf.xlu0
    %v3954 = vpop.trf.xlu0
    %3955 = vxpose.xlu0.b32.start [1/16] %v3859, 128
    %3956 = vxpose.xlu0.b32.cont [2/16] %v3860, 128
    %3957 = vxpose.xlu0.b32.cont [3/16] %v3861, 128
    %3958 = vxpose.xlu0.b32.cont [4/16] %v3862, 128
    %3959 = vxpose.xlu0.b32.cont [5/16] %v3863, 128
    %3960 = vxpose.xlu0.b32.cont [6/16] %v3864, 128
    %3961 = vxpose.xlu0.b32.cont [7/16] %v3865, 128
    %3962 = vxpose.xlu0.b32.cont [8/16] %v3866, 128
    %3963 = vxpose.xlu0.b32.cont [9/16] %v3867, 128
    %3964 = vxpose.xlu0.b32.cont [10/16] %v3868, 128
    %3965 = vxpose.xlu0.b32.cont [11/16] %v3869, 128
    %3966 = vxpose.xlu0.b32.cont [12/16] %v3870, 128
    %3967 = vxpose.xlu0.b32.cont [13/16] %v3871, 128
    %3968 = vxpose.xlu0.b32.cont [14/16] %v3872, 128
    %3969 = vxpose.xlu0.b32.cont [15/16] %v3873, 128
    %3970 = vxpose.xlu0.b32.end [16/16] %v3874, 128
    %v3971 = vpop.trf.xlu0
    %v3972 = vpop.trf.xlu0
    %v3973 = vpop.trf.xlu0
    %v3974 = vpop.trf.xlu0
    %v3975 = vpop.trf.xlu0
    %v3976 = vpop.trf.xlu0
    %v3977 = vpop.trf.xlu0
    %v3978 = vpop.trf.xlu0
    %v3979 = vpop.trf.xlu0
    %v3980 = vpop.trf.xlu0
    %v3981 = vpop.trf.xlu0
    %v3982 = vpop.trf.xlu0
    %v3983 = vpop.trf.xlu0
    %v3984 = vpop.trf.xlu0
    %v3985 = vpop.trf.xlu0
    %v3986 = vpop.trf.xlu0
    %3987 = vxpose.xlu0.b32.start [1/16] %v3875, 128
    %3988 = vxpose.xlu0.b32.cont [2/16] %v3876, 128
    %3989 = vxpose.xlu0.b32.cont [3/16] %v3877, 128
    %3990 = vxpose.xlu0.b32.cont [4/16] %v3878, 128
    %3991 = vxpose.xlu0.b32.cont [5/16] %v3879, 128
    %3992 = vxpose.xlu0.b32.cont [6/16] %v3880, 128
    %3993 = vxpose.xlu0.b32.cont [7/16] %v3881, 128
    %3994 = vxpose.xlu0.b32.cont [8/16] %v3882, 128
    %3995 = vxpose.xlu0.b32.cont [9/16] %v3883, 128
    %3996 = vxpose.xlu0.b32.cont [10/16] %v3884, 128
    %3997 = vxpose.xlu0.b32.cont [11/16] %v3885, 128
    %3998 = vxpose.xlu0.b32.cont [12/16] %v3886, 128
    %3999 = vxpose.xlu0.b32.cont [13/16] %v3887, 128
    %4000 = vxpose.xlu0.b32.cont [14/16] %v3888, 128
    %4001 = vxpose.xlu0.b32.cont [15/16] %v3889, 128
    %4002 = vxpose.xlu0.b32.end [16/16] %v3890, 128
    %v4003 = vpop.trf.xlu0
    %v4004 = vpop.trf.xlu0
    %v4005 = vpop.trf.xlu0
    %v4006 = vpop.trf.xlu0
    %v4007 = vpop.trf.xlu0
    %v4008 = vpop.trf.xlu0
    %v4009 = vpop.trf.xlu0
    %v4010 = vpop.trf.xlu0
    %v4011 = vpop.trf.xlu0
    %v4012 = vpop.trf.xlu0
    %v4013 = vpop.trf.xlu0
    %v4014 = vpop.trf.xlu0
    %v4015 = vpop.trf.xlu0
    %v4016 = vpop.trf.xlu0
    %v4017 = vpop.trf.xlu0
    %v4018 = vpop.trf.xlu0
    %v4020 = vsel %vm964, %v140, 0
    %4022 = vmatpush.bf16.msra.mxu0 0
    %4023 = vmatpush.bf16.msra.mxu0 0
    %4024 = vmatpush.bf16.msra.mxu0 0
    %4025 = vmatpush.bf16.msra.mxu0 0
    %4026 = vmatpush.bf16.msra.mxu0 0
    %4027 = vmatpush.bf16.msra.mxu0 0
    %4028 = vmatpush.bf16.msra.mxu0 0
    %4029 = vmatpush.bf16.msra.mxu0 %v4020
    %4030 = vmatmul.bf16.gmra.mxu0 %v2021
    %v4031 = vpop.f32.mrf.mxu0
    %v4032 = vadd.f32 0.0, %v4031
    %v4033 = vpop.f32.mrf.mxu0
    %v4034 = vadd.f32 0.0, %v4033
    %4035 = vmatmul.bf16.gmra.mxu0 %v2024
    %v4036 = vpop.f32.mrf.mxu0
    %v4037 = vadd.f32 0.0, %v4036
    %v4038 = vpop.f32.mrf.mxu0
    %v4039 = vadd.f32 0.0, %v4038
    %4040 = vmatmul.bf16.gmra.mxu0 %v2027
    %v4041 = vpop.f32.mrf.mxu0
    %v4042 = vadd.f32 0.0, %v4041
    %v4043 = vpop.f32.mrf.mxu0
    %v4044 = vadd.f32 0.0, %v4043
    %4045 = vmatmul.bf16.gmra.mxu0 %v2030
    %v4046 = vpop.f32.mrf.mxu0
    %v4047 = vadd.f32 0.0, %v4046
    %v4048 = vpop.f32.mrf.mxu0
    %v4049 = vadd.f32 0.0, %v4048
    %4050 = vmatmul.bf16.gmra.mxu0 %v2033
    %v4051 = vpop.f32.mrf.mxu0
    %v4052 = vadd.f32 0.0, %v4051
    %v4053 = vpop.f32.mrf.mxu0
    %v4054 = vadd.f32 0.0, %v4053
    %4055 = vmatmul.bf16.gmra.mxu0 %v2036
    %v4056 = vpop.f32.mrf.mxu0
    %v4057 = vadd.f32 0.0, %v4056
    %v4058 = vpop.f32.mrf.mxu0
    %v4059 = vadd.f32 0.0, %v4058
    %4060 = vmatmul.bf16.gmra.mxu0 %v2039
    %v4061 = vpop.f32.mrf.mxu0
    %v4062 = vadd.f32 0.0, %v4061
    %v4063 = vpop.f32.mrf.mxu0
    %v4064 = vadd.f32 0.0, %v4063
    %4065 = vmatmul.bf16.gmra.mxu0 %v2042
    %v4066 = vpop.f32.mrf.mxu0
    %v4067 = vadd.f32 0.0, %v4066
    %v4068 = vpop.f32.mrf.mxu0
    %v4069 = vadd.f32 0.0, %v4068
    %4070 = vmatmul.bf16.gmra.mxu0 %v2045
    %v4071 = vpop.f32.mrf.mxu0
    %v4072 = vadd.f32 0.0, %v4071
    %v4073 = vpop.f32.mrf.mxu0
    %v4074 = vadd.f32 0.0, %v4073
    %4075 = vmatmul.bf16.gmra.mxu0 %v2048
    %v4076 = vpop.f32.mrf.mxu0
    %v4077 = vadd.f32 0.0, %v4076
    %v4078 = vpop.f32.mrf.mxu0
    %v4079 = vadd.f32 0.0, %v4078
    %4080 = vmatmul.bf16.gmra.mxu0 %v2051
    %v4081 = vpop.f32.mrf.mxu0
    %v4082 = vadd.f32 0.0, %v4081
    %v4083 = vpop.f32.mrf.mxu0
    %v4084 = vadd.f32 0.0, %v4083
    %4085 = vmatmul.bf16.gmra.mxu0 %v2054
    %v4086 = vpop.f32.mrf.mxu0
    %v4087 = vadd.f32 0.0, %v4086
    %v4088 = vpop.f32.mrf.mxu0
    %v4089 = vadd.f32 0.0, %v4088
    %4090 = vmatmul.bf16.gmra.mxu0 %v2057
    %v4091 = vpop.f32.mrf.mxu0
    %v4092 = vadd.f32 0.0, %v4091
    %v4093 = vpop.f32.mrf.mxu0
    %v4094 = vadd.f32 0.0, %v4093
    %4095 = vmatmul.bf16.gmra.mxu0 %v2060
    %v4096 = vpop.f32.mrf.mxu0
    %v4097 = vadd.f32 0.0, %v4096
    %v4098 = vpop.f32.mrf.mxu0
    %v4099 = vadd.f32 0.0, %v4098
    %4100 = vmatmul.bf16.gmra.mxu0 %v2063
    %v4101 = vpop.f32.mrf.mxu0
    %v4102 = vadd.f32 0.0, %v4101
    %v4103 = vpop.f32.mrf.mxu0
    %v4104 = vadd.f32 0.0, %v4103
    %4105 = vmatmul.bf16.gmra.mxu0 %v2694
    %v4106 = vpop.f32.mrf.mxu0
    %v4107 = vadd.f32 0.0, %v4106
    %v4108 = vpop.f32.mrf.mxu0
    %v4109 = vadd.f32 0.0, %v4108
    %4110 = vmatmul.bf16.gmra.mxu0 %v2069
    %v4111 = vpop.f32.mrf.mxu0
    %v4112 = vadd.f32 0.0, %v4111
    %v4113 = vpop.f32.mrf.mxu0
    %v4114 = vadd.f32 0.0, %v4113
    %4115 = vmatmul.bf16.gmra.mxu0 %v2072
    %v4116 = vpop.f32.mrf.mxu0
    %v4117 = vadd.f32 0.0, %v4116
    %v4118 = vpop.f32.mrf.mxu0
    %v4119 = vadd.f32 0.0, %v4118
    %4120 = vmatmul.bf16.gmra.mxu0 %v2075
    %v4121 = vpop.f32.mrf.mxu0
    %v4122 = vadd.f32 0.0, %v4121
    %v4123 = vpop.f32.mrf.mxu0
    %v4124 = vadd.f32 0.0, %v4123
    %4125 = vmatmul.bf16.gmra.mxu0 %v2078
    %v4126 = vpop.f32.mrf.mxu0
    %v4127 = vadd.f32 0.0, %v4126
    %v4128 = vpop.f32.mrf.mxu0
    %v4129 = vadd.f32 0.0, %v4128
    %4130 = vmatmul.bf16.gmra.mxu0 %v2081
    %v4131 = vpop.f32.mrf.mxu0
    %v4132 = vadd.f32 0.0, %v4131
    %v4133 = vpop.f32.mrf.mxu0
    %v4134 = vadd.f32 0.0, %v4133
    %4135 = vmatmul.bf16.gmra.mxu0 %v2084
    %v4136 = vpop.f32.mrf.mxu0
    %v4137 = vadd.f32 0.0, %v4136
    %v4138 = vpop.f32.mrf.mxu0
    %v4139 = vadd.f32 0.0, %v4138
    %4140 = vmatmul.bf16.gmra.mxu0 %v2087
    %v4141 = vpop.f32.mrf.mxu0
    %v4142 = vadd.f32 0.0, %v4141
    %v4143 = vpop.f32.mrf.mxu0
    %v4144 = vadd.f32 0.0, %v4143
    %4145 = vmatmul.bf16.gmra.mxu0 %v2090
    %v4146 = vpop.f32.mrf.mxu0
    %v4147 = vadd.f32 0.0, %v4146
    %v4148 = vpop.f32.mrf.mxu0
    %v4149 = vadd.f32 0.0, %v4148
    %4150 = vmatmul.bf16.gmra.mxu0 %v2093
    %v4151 = vpop.f32.mrf.mxu0
    %v4152 = vadd.f32 0.0, %v4151
    %v4153 = vpop.f32.mrf.mxu0
    %v4154 = vadd.f32 0.0, %v4153
    %4155 = vmatmul.bf16.gmra.mxu0 %v2096
    %v4156 = vpop.f32.mrf.mxu0
    %v4157 = vadd.f32 0.0, %v4156
    %v4158 = vpop.f32.mrf.mxu0
    %v4159 = vadd.f32 0.0, %v4158
    %4160 = vmatmul.bf16.gmra.mxu0 %v2099
    %v4161 = vpop.f32.mrf.mxu0
    %v4162 = vadd.f32 0.0, %v4161
    %v4163 = vpop.f32.mrf.mxu0
    %v4164 = vadd.f32 0.0, %v4163
    %4165 = vmatmul.bf16.gmra.mxu0 %v2102
    %v4166 = vpop.f32.mrf.mxu0
    %v4167 = vadd.f32 0.0, %v4166
    %v4168 = vpop.f32.mrf.mxu0
    %v4169 = vadd.f32 0.0, %v4168
    %4170 = vmatmul.bf16.gmra.mxu0 %v2105
    %v4171 = vpop.f32.mrf.mxu0
    %v4172 = vadd.f32 0.0, %v4171
    %v4173 = vpop.f32.mrf.mxu0
    %v4174 = vadd.f32 0.0, %v4173
    %4175 = vmatmul.bf16.gmra.mxu0 %v2108
    %v4176 = vpop.f32.mrf.mxu0
    %v4177 = vadd.f32 0.0, %v4176
    %v4178 = vpop.f32.mrf.mxu0
    %v4179 = vadd.f32 0.0, %v4178
    %4180 = vmatmul.bf16.gmra.mxu0 %v2111
    %v4181 = vpop.f32.mrf.mxu0
    %v4182 = vadd.f32 0.0, %v4181
    %v4183 = vpop.f32.mrf.mxu0
    %v4184 = vadd.f32 0.0, %v4183
    %4185 = vmatmul.bf16.gmra.mxu0 %v2697
    %v4186 = vpop.f32.mrf.mxu0
    %v4187 = vadd.f32 0.0, %v4186
    %v4188 = vpop.f32.mrf.mxu0
    %v4189 = vadd.f32 0.0, %v4188
    %4190 = vdwg.mxu0
    %v4192 = vsel %vm964, %v139, 0
    %4194 = vmatpush.bf16.msra.mxu0 0
    %4195 = vmatpush.bf16.msra.mxu0 0
    %4196 = vmatpush.bf16.msra.mxu0 0
    %4197 = vmatpush.bf16.msra.mxu0 0
    %4198 = vmatpush.bf16.msra.mxu0 0
    %4199 = vmatpush.bf16.msra.mxu0 0
    %4200 = vmatpush.bf16.msra.mxu0 0
    %4201 = vmatpush.bf16.msra.mxu0 %v4192
    %4202 = vmatmul.bf16.gmra.mxu0 %v872
    %v4203 = vpop.f32.mrf.mxu0
    %v4204 = vadd.f32 %v4032, %v4203
    %v4205 = vpop.f32.mrf.mxu0
    %v4206 = vadd.f32 %v4034, %v4205
    %4207 = vmatmul.bf16.gmra.mxu0 %v875
    %v4208 = vpop.f32.mrf.mxu0
    %v4209 = vadd.f32 %v4037, %v4208
    %v4210 = vpop.f32.mrf.mxu0
    %v4211 = vadd.f32 %v4039, %v4210
    %4212 = vmatmul.bf16.gmra.mxu0 %v878
    %v4213 = vpop.f32.mrf.mxu0
    %v4214 = vadd.f32 %v4042, %v4213
    %v4215 = vpop.f32.mrf.mxu0
    %v4216 = vadd.f32 %v4044, %v4215
    %4217 = vmatmul.bf16.gmra.mxu0 %v881
    %v4218 = vpop.f32.mrf.mxu0
    %v4219 = vadd.f32 %v4047, %v4218
    %v4220 = vpop.f32.mrf.mxu0
    %v4221 = vadd.f32 %v4049, %v4220
    %4222 = vmatmul.bf16.gmra.mxu0 %v884
    %v4223 = vpop.f32.mrf.mxu0
    %v4224 = vadd.f32 %v4052, %v4223
    %v4225 = vpop.f32.mrf.mxu0
    %v4226 = vadd.f32 %v4054, %v4225
    %4227 = vmatmul.bf16.gmra.mxu0 %v887
    %v4228 = vpop.f32.mrf.mxu0
    %v4229 = vadd.f32 %v4057, %v4228
    %v4230 = vpop.f32.mrf.mxu0
    %v4231 = vadd.f32 %v4059, %v4230
    %4232 = vmatmul.bf16.gmra.mxu0 %v890
    %v4233 = vpop.f32.mrf.mxu0
    %v4234 = vadd.f32 %v4062, %v4233
    %v4235 = vpop.f32.mrf.mxu0
    %v4236 = vadd.f32 %v4064, %v4235
    %4237 = vmatmul.bf16.gmra.mxu0 %v893
    %v4238 = vpop.f32.mrf.mxu0
    %v4239 = vadd.f32 %v4067, %v4238
    %v4240 = vpop.f32.mrf.mxu0
    %v4241 = vadd.f32 %v4069, %v4240
    %4242 = vmatmul.bf16.gmra.mxu0 %v896
    %v4243 = vpop.f32.mrf.mxu0
    %v4244 = vadd.f32 %v4072, %v4243
    %v4245 = vpop.f32.mrf.mxu0
    %v4246 = vadd.f32 %v4074, %v4245
    %4247 = vmatmul.bf16.gmra.mxu0 %v899
    %v4248 = vpop.f32.mrf.mxu0
    %v4249 = vadd.f32 %v4077, %v4248
    %v4250 = vpop.f32.mrf.mxu0
    %v4251 = vadd.f32 %v4079, %v4250
    %4252 = vmatmul.bf16.gmra.mxu0 %v902
    %v4253 = vpop.f32.mrf.mxu0
    %v4254 = vadd.f32 %v4082, %v4253
    %v4255 = vpop.f32.mrf.mxu0
    %v4256 = vadd.f32 %v4084, %v4255
    %4257 = vmatmul.bf16.gmra.mxu0 %v905
    %v4258 = vpop.f32.mrf.mxu0
    %v4259 = vadd.f32 %v4087, %v4258
    %v4260 = vpop.f32.mrf.mxu0
    %v4261 = vadd.f32 %v4089, %v4260
    %4262 = vmatmul.bf16.gmra.mxu0 %v908
    %v4263 = vpop.f32.mrf.mxu0
    %v4264 = vadd.f32 %v4092, %v4263
    %v4265 = vpop.f32.mrf.mxu0
    %v4266 = vadd.f32 %v4094, %v4265
    %4267 = vmatmul.bf16.gmra.mxu0 %v911
    %v4268 = vpop.f32.mrf.mxu0
    %v4269 = vadd.f32 %v4097, %v4268
    %v4270 = vpop.f32.mrf.mxu0
    %v4271 = vadd.f32 %v4099, %v4270
    %4272 = vmatmul.bf16.gmra.mxu0 %v914
    %v4273 = vpop.f32.mrf.mxu0
    %v4274 = vadd.f32 %v4102, %v4273
    %v4275 = vpop.f32.mrf.mxu0
    %v4276 = vadd.f32 %v4104, %v4275
    %4277 = vmatmul.bf16.gmra.mxu0 %v1648
    %v4278 = vpop.f32.mrf.mxu0
    %v4279 = vadd.f32 %v4107, %v4278
    %v4280 = vpop.f32.mrf.mxu0
    %v4281 = vadd.f32 %v4109, %v4280
    %4282 = vmatmul.bf16.gmra.mxu0 %v920
    %v4283 = vpop.f32.mrf.mxu0
    %v4284 = vadd.f32 %v4112, %v4283
    %v4285 = vpop.f32.mrf.mxu0
    %v4286 = vadd.f32 %v4114, %v4285
    %4287 = vmatmul.bf16.gmra.mxu0 %v923
    %v4288 = vpop.f32.mrf.mxu0
    %v4289 = vadd.f32 %v4117, %v4288
    %v4290 = vpop.f32.mrf.mxu0
    %v4291 = vadd.f32 %v4119, %v4290
    %4292 = vmatmul.bf16.gmra.mxu0 %v926
    %v4293 = vpop.f32.mrf.mxu0
    %v4294 = vadd.f32 %v4122, %v4293
    %v4295 = vpop.f32.mrf.mxu0
    %v4296 = vadd.f32 %v4124, %v4295
    %4297 = vmatmul.bf16.gmra.mxu0 %v929
    %v4298 = vpop.f32.mrf.mxu0
    %v4299 = vadd.f32 %v4127, %v4298
    %v4300 = vpop.f32.mrf.mxu0
    %v4301 = vadd.f32 %v4129, %v4300
    %4302 = vmatmul.bf16.gmra.mxu0 %v932
    %v4303 = vpop.f32.mrf.mxu0
    %v4304 = vadd.f32 %v4132, %v4303
    %v4305 = vpop.f32.mrf.mxu0
    %v4306 = vadd.f32 %v4134, %v4305
    %4307 = vmatmul.bf16.gmra.mxu0 %v935
    %v4308 = vpop.f32.mrf.mxu0
    %v4309 = vadd.f32 %v4137, %v4308
    %v4310 = vpop.f32.mrf.mxu0
    %v4311 = vadd.f32 %v4139, %v4310
    %4312 = vmatmul.bf16.gmra.mxu0 %v938
    %v4313 = vpop.f32.mrf.mxu0
    %v4314 = vadd.f32 %v4142, %v4313
    %v4315 = vpop.f32.mrf.mxu0
    %v4316 = vadd.f32 %v4144, %v4315
    %4317 = vmatmul.bf16.gmra.mxu0 %v941
    %v4318 = vpop.f32.mrf.mxu0
    %v4319 = vadd.f32 %v4147, %v4318
    %v4320 = vpop.f32.mrf.mxu0
    %v4321 = vadd.f32 %v4149, %v4320
    %4322 = vmatmul.bf16.gmra.mxu0 %v944
    %v4323 = vpop.f32.mrf.mxu0
    %v4324 = vadd.f32 %v4152, %v4323
    %v4325 = vpop.f32.mrf.mxu0
    %v4326 = vadd.f32 %v4154, %v4325
    %4327 = vmatmul.bf16.gmra.mxu0 %v947
    %v4328 = vpop.f32.mrf.mxu0
    %v4329 = vadd.f32 %v4157, %v4328
    %v4330 = vpop.f32.mrf.mxu0
    %v4331 = vadd.f32 %v4159, %v4330
    %4332 = vmatmul.bf16.gmra.mxu0 %v950
    %v4333 = vpop.f32.mrf.mxu0
    %v4334 = vadd.f32 %v4162, %v4333
    %v4335 = vpop.f32.mrf.mxu0
    %v4336 = vadd.f32 %v4164, %v4335
    %4337 = vmatmul.bf16.gmra.mxu0 %v953
    %v4338 = vpop.f32.mrf.mxu0
    %v4339 = vadd.f32 %v4167, %v4338
    %v4340 = vpop.f32.mrf.mxu0
    %v4341 = vadd.f32 %v4169, %v4340
    %4342 = vmatmul.bf16.gmra.mxu0 %v956
    %v4343 = vpop.f32.mrf.mxu0
    %v4344 = vadd.f32 %v4172, %v4343
    %v4345 = vpop.f32.mrf.mxu0
    %v4346 = vadd.f32 %v4174, %v4345
    %4347 = vmatmul.bf16.gmra.mxu0 %v959
    %v4348 = vpop.f32.mrf.mxu0
    %v4349 = vadd.f32 %v4177, %v4348
    %v4350 = vpop.f32.mrf.mxu0
    %v4351 = vadd.f32 %v4179, %v4350
    %4352 = vmatmul.bf16.gmra.mxu0 %v962
    %v4353 = vpop.f32.mrf.mxu0
    %v4354 = vadd.f32 %v4182, %v4353
    %v4355 = vpop.f32.mrf.mxu0
    %v4356 = vadd.f32 %v4184, %v4355
    %4357 = vmatmul.bf16.gmra.mxu0 %v1651
    %v4358 = vpop.f32.mrf.mxu0
    %v4359 = vadd.f32 %v4187, %v4358
    %v4360 = vpop.f32.mrf.mxu0
    %v4361 = vadd.f32 %v4189, %v4360
    %4362 = vdwg.mxu0
    %v4364 = vsel %vm964, %v141, 0
    %4366 = vmatpush.bf16.msra.mxu0 0
    %4367 = vmatpush.bf16.msra.mxu0 0
    %4368 = vmatpush.bf16.msra.mxu0 0
    %4369 = vmatpush.bf16.msra.mxu0 0
    %4370 = vmatpush.bf16.msra.mxu0 0
    %4371 = vmatpush.bf16.msra.mxu0 0
    %4372 = vmatpush.bf16.msra.mxu0 0
    %4373 = vmatpush.bf16.msra.mxu0 %v4364
    %4374 = vmatmul.bf16.gmra.mxu0 %v875
    %v4375 = vpop.f32.mrf.mxu0
    %v4376 = vadd.f32 0.0, %v4375
    %v4377 = vpop.f32.mrf.mxu0
    %v4378 = vadd.f32 0.0, %v4377
    %4379 = vmatmul.bf16.gmra.mxu0 %v878
    %v4380 = vpop.f32.mrf.mxu0
    %v4381 = vadd.f32 0.0, %v4380
    %v4382 = vpop.f32.mrf.mxu0
    %v4383 = vadd.f32 0.0, %v4382
    %4384 = vmatmul.bf16.gmra.mxu0 %v881
    %v4385 = vpop.f32.mrf.mxu0
    %v4386 = vadd.f32 0.0, %v4385
    %v4387 = vpop.f32.mrf.mxu0
    %v4388 = vadd.f32 0.0, %v4387
    %4389 = vmatmul.bf16.gmra.mxu0 %v884
    %v4390 = vpop.f32.mrf.mxu0
    %v4391 = vadd.f32 0.0, %v4390
    %v4392 = vpop.f32.mrf.mxu0
    %v4393 = vadd.f32 0.0, %v4392
    %4394 = vmatmul.bf16.gmra.mxu0 %v887
    %v4395 = vpop.f32.mrf.mxu0
    %v4396 = vadd.f32 0.0, %v4395
    %v4397 = vpop.f32.mrf.mxu0
    %v4398 = vadd.f32 0.0, %v4397
    %4399 = vmatmul.bf16.gmra.mxu0 %v890
    %v4400 = vpop.f32.mrf.mxu0
    %v4401 = vadd.f32 0.0, %v4400
    %v4402 = vpop.f32.mrf.mxu0
    %v4403 = vadd.f32 0.0, %v4402
    %4404 = vmatmul.bf16.gmra.mxu0 %v893
    %v4405 = vpop.f32.mrf.mxu0
    %v4406 = vadd.f32 0.0, %v4405
    %v4407 = vpop.f32.mrf.mxu0
    %v4408 = vadd.f32 0.0, %v4407
    %4409 = vmatmul.bf16.gmra.mxu0 %v896
    %v4410 = vpop.f32.mrf.mxu0
    %v4411 = vadd.f32 0.0, %v4410
    %v4412 = vpop.f32.mrf.mxu0
    %v4413 = vadd.f32 0.0, %v4412
    %4414 = vmatmul.bf16.gmra.mxu0 %v899
    %v4415 = vpop.f32.mrf.mxu0
    %v4416 = vadd.f32 0.0, %v4415
    %v4417 = vpop.f32.mrf.mxu0
    %v4418 = vadd.f32 0.0, %v4417
    %4419 = vmatmul.bf16.gmra.mxu0 %v902
    %v4420 = vpop.f32.mrf.mxu0
    %v4421 = vadd.f32 0.0, %v4420
    %v4422 = vpop.f32.mrf.mxu0
    %v4423 = vadd.f32 0.0, %v4422
    %4424 = vmatmul.bf16.gmra.mxu0 %v905
    %v4425 = vpop.f32.mrf.mxu0
    %v4426 = vadd.f32 0.0, %v4425
    %v4427 = vpop.f32.mrf.mxu0
    %v4428 = vadd.f32 0.0, %v4427
    %4429 = vmatmul.bf16.gmra.mxu0 %v908
    %v4430 = vpop.f32.mrf.mxu0
    %v4431 = vadd.f32 0.0, %v4430
    %v4432 = vpop.f32.mrf.mxu0
    %v4433 = vadd.f32 0.0, %v4432
    %4434 = vmatmul.bf16.gmra.mxu0 %v911
    %v4435 = vpop.f32.mrf.mxu0
    %v4436 = vadd.f32 0.0, %v4435
    %v4437 = vpop.f32.mrf.mxu0
    %v4438 = vadd.f32 0.0, %v4437
    %4439 = vmatmul.bf16.gmra.mxu0 %v914
    %v4440 = vpop.f32.mrf.mxu0
    %v4441 = vadd.f32 0.0, %v4440
    %v4442 = vpop.f32.mrf.mxu0
    %v4443 = vadd.f32 0.0, %v4442
    %4444 = vmatmul.bf16.gmra.mxu0 %v1648
    %v4445 = vpop.f32.mrf.mxu0
    %v4446 = vadd.f32 0.0, %v4445
    %v4447 = vpop.f32.mrf.mxu0
    %v4448 = vadd.f32 0.0, %v4447
    %4449 = vmatmul.bf16.gmra.mxu0 %v3650
    %v4450 = vpop.f32.mrf.mxu0
    %v4451 = vadd.f32 0.0, %v4450
    %v4452 = vpop.f32.mrf.mxu0
    %v4453 = vadd.f32 0.0, %v4452
    %4454 = vmatmul.bf16.gmra.mxu0 %v923
    %v4455 = vpop.f32.mrf.mxu0
    %v4456 = vadd.f32 0.0, %v4455
    %v4457 = vpop.f32.mrf.mxu0
    %v4458 = vadd.f32 0.0, %v4457
    %4459 = vmatmul.bf16.gmra.mxu0 %v926
    %v4460 = vpop.f32.mrf.mxu0
    %v4461 = vadd.f32 0.0, %v4460
    %v4462 = vpop.f32.mrf.mxu0
    %v4463 = vadd.f32 0.0, %v4462
    %4464 = vmatmul.bf16.gmra.mxu0 %v929
    %v4465 = vpop.f32.mrf.mxu0
    %v4466 = vadd.f32 0.0, %v4465
    %v4467 = vpop.f32.mrf.mxu0
    %v4468 = vadd.f32 0.0, %v4467
    %4469 = vmatmul.bf16.gmra.mxu0 %v932
    %v4470 = vpop.f32.mrf.mxu0
    %v4471 = vadd.f32 0.0, %v4470
    %v4472 = vpop.f32.mrf.mxu0
    %v4473 = vadd.f32 0.0, %v4472
    %4474 = vmatmul.bf16.gmra.mxu0 %v935
    %v4475 = vpop.f32.mrf.mxu0
    %v4476 = vadd.f32 0.0, %v4475
    %v4477 = vpop.f32.mrf.mxu0
    %v4478 = vadd.f32 0.0, %v4477
    %4479 = vmatmul.bf16.gmra.mxu0 %v938
    %v4480 = vpop.f32.mrf.mxu0
    %v4481 = vadd.f32 0.0, %v4480
    %v4482 = vpop.f32.mrf.mxu0
    %v4483 = vadd.f32 0.0, %v4482
    %4484 = vmatmul.bf16.gmra.mxu0 %v941
    %v4485 = vpop.f32.mrf.mxu0
    %v4486 = vadd.f32 0.0, %v4485
    %v4487 = vpop.f32.mrf.mxu0
    %v4488 = vadd.f32 0.0, %v4487
    %4489 = vmatmul.bf16.gmra.mxu0 %v944
    %v4490 = vpop.f32.mrf.mxu0
    %v4491 = vadd.f32 0.0, %v4490
    %v4492 = vpop.f32.mrf.mxu0
    %v4493 = vadd.f32 0.0, %v4492
    %4494 = vmatmul.bf16.gmra.mxu0 %v947
    %v4495 = vpop.f32.mrf.mxu0
    %v4496 = vadd.f32 0.0, %v4495
    %v4497 = vpop.f32.mrf.mxu0
    %v4498 = vadd.f32 0.0, %v4497
    %4499 = vmatmul.bf16.gmra.mxu0 %v950
    %v4500 = vpop.f32.mrf.mxu0
    %v4501 = vadd.f32 0.0, %v4500
    %v4502 = vpop.f32.mrf.mxu0
    %v4503 = vadd.f32 0.0, %v4502
    %4504 = vmatmul.bf16.gmra.mxu0 %v953
    %v4505 = vpop.f32.mrf.mxu0
    %v4506 = vadd.f32 0.0, %v4505
    %v4507 = vpop.f32.mrf.mxu0
    %v4508 = vadd.f32 0.0, %v4507
    %4509 = vmatmul.bf16.gmra.mxu0 %v956
    %v4510 = vpop.f32.mrf.mxu0
    %v4511 = vadd.f32 0.0, %v4510
    %v4512 = vpop.f32.mrf.mxu0
    %v4513 = vadd.f32 0.0, %v4512
    %4514 = vmatmul.bf16.gmra.mxu0 %v959
    %v4515 = vpop.f32.mrf.mxu0
    %v4516 = vadd.f32 0.0, %v4515
    %v4517 = vpop.f32.mrf.mxu0
    %v4518 = vadd.f32 0.0, %v4517
    %4519 = vmatmul.bf16.gmra.mxu0 %v962
    %v4520 = vpop.f32.mrf.mxu0
    %v4521 = vadd.f32 0.0, %v4520
    %v4522 = vpop.f32.mrf.mxu0
    %v4523 = vadd.f32 0.0, %v4522
    %4524 = vmatmul.bf16.gmra.mxu0 %v1651
    %v4525 = vpop.f32.mrf.mxu0
    %v4526 = vadd.f32 0.0, %v4525
    %v4527 = vpop.f32.mrf.mxu0
    %v4528 = vadd.f32 0.0, %v4527
    %4529 = vmatmul.bf16.gmra.mxu0 %v3653
    %v4530 = vpop.f32.mrf.mxu0
    %v4531 = vadd.f32 0.0, %v4530
    %v4532 = vpop.f32.mrf.mxu0
    %v4533 = vadd.f32 0.0, %v4532
    %4534 = vdwg.mxu0
    %v4535 = vadd.f32 %v4204, %v4376
    %v4536 = vadd.f32 %v4206, %v4378
    %v4537 = vadd.f32 %v4209, %v4381
    %v4538 = vadd.f32 %v4211, %v4383
    %v4539 = vadd.f32 %v4214, %v4386
    %v4540 = vadd.f32 %v4216, %v4388
    %v4541 = vadd.f32 %v4219, %v4391
    %v4542 = vadd.f32 %v4221, %v4393
    %v4543 = vadd.f32 %v4224, %v4396
    %v4544 = vadd.f32 %v4226, %v4398
    %v4545 = vadd.f32 %v4229, %v4401
    %v4546 = vadd.f32 %v4231, %v4403
    %v4547 = vadd.f32 %v4234, %v4406
    %v4548 = vadd.f32 %v4236, %v4408
    %v4549 = vadd.f32 %v4239, %v4411
    %v4550 = vadd.f32 %v4241, %v4413
    %v4551 = vadd.f32 %v4244, %v4416
    %v4552 = vadd.f32 %v4246, %v4418
    %v4553 = vadd.f32 %v4249, %v4421
    %v4554 = vadd.f32 %v4251, %v4423
    %v4555 = vadd.f32 %v4254, %v4426
    %v4556 = vadd.f32 %v4256, %v4428
    %v4557 = vadd.f32 %v4259, %v4431
    %v4558 = vadd.f32 %v4261, %v4433
    %v4559 = vadd.f32 %v4264, %v4436
    %v4560 = vadd.f32 %v4266, %v4438
    %v4561 = vadd.f32 %v4269, %v4441
    %v4562 = vadd.f32 %v4271, %v4443
    %v4563 = vadd.f32 %v4274, %v4446
    %v4564 = vadd.f32 %v4276, %v4448
    %v4565 = vadd.f32 %v4279, %v4451
    %v4566 = vadd.f32 %v4281, %v4453
    %v4567 = vadd.f32 %v4284, %v4456
    %v4568 = vadd.f32 %v4286, %v4458
    %v4569 = vadd.f32 %v4289, %v4461
    %v4570 = vadd.f32 %v4291, %v4463
    %v4571 = vadd.f32 %v4294, %v4466
    %v4572 = vadd.f32 %v4296, %v4468
    %v4573 = vadd.f32 %v4299, %v4471
    %v4574 = vadd.f32 %v4301, %v4473
    %v4575 = vadd.f32 %v4304, %v4476
    %v4576 = vadd.f32 %v4306, %v4478
    %v4577 = vadd.f32 %v4309, %v4481
    %v4578 = vadd.f32 %v4311, %v4483
    %v4579 = vadd.f32 %v4314, %v4486
    %v4580 = vadd.f32 %v4316, %v4488
    %v4581 = vadd.f32 %v4319, %v4491
    %v4582 = vadd.f32 %v4321, %v4493
    %v4583 = vadd.f32 %v4324, %v4496
    %v4584 = vadd.f32 %v4326, %v4498
    %v4585 = vadd.f32 %v4329, %v4501
    %v4586 = vadd.f32 %v4331, %v4503
    %v4587 = vadd.f32 %v4334, %v4506
    %v4588 = vadd.f32 %v4336, %v4508
    %v4589 = vadd.f32 %v4339, %v4511
    %v4590 = vadd.f32 %v4341, %v4513
    %v4591 = vadd.f32 %v4344, %v4516
    %v4592 = vadd.f32 %v4346, %v4518
    %v4593 = vadd.f32 %v4349, %v4521
    %v4594 = vadd.f32 %v4351, %v4523
    %v4595 = vadd.f32 %v4354, %v4526
    %v4596 = vadd.f32 %v4356, %v4528
    %v4597 = vadd.f32 %v4359, %v4531
    %v4598 = vadd.f32 %v4361, %v4533
    %v4600 = vsel %vm867, %v865, 0
    %v4603 = vsel %vm867, %v866, 0
    %v4606 = vsel %vm964, %v142, 0
    %4608 = vmatpush.bf16.msra.mxu0 0
    %4609 = vmatpush.bf16.msra.mxu0 0
    %4610 = vmatpush.bf16.msra.mxu0 0
    %4611 = vmatpush.bf16.msra.mxu0 0
    %4612 = vmatpush.bf16.msra.mxu0 0
    %4613 = vmatpush.bf16.msra.mxu0 0
    %4614 = vmatpush.bf16.msra.mxu0 0
    %4615 = vmatpush.bf16.msra.mxu0 %v4606
    %4616 = vmatmul.bf16.gmra.mxu0 %v2024
    %v4617 = vpop.f32.mrf.mxu0
    %v4618 = vadd.f32 0.0, %v4617
    %v4619 = vpop.f32.mrf.mxu0
    %v4620 = vadd.f32 0.0, %v4619
    %4621 = vmatmul.bf16.gmra.mxu0 %v2027
    %v4622 = vpop.f32.mrf.mxu0
    %v4623 = vadd.f32 0.0, %v4622
    %v4624 = vpop.f32.mrf.mxu0
    %v4625 = vadd.f32 0.0, %v4624
    %4626 = vmatmul.bf16.gmra.mxu0 %v2030
    %v4627 = vpop.f32.mrf.mxu0
    %v4628 = vadd.f32 0.0, %v4627
    %v4629 = vpop.f32.mrf.mxu0
    %v4630 = vadd.f32 0.0, %v4629
    %4631 = vmatmul.bf16.gmra.mxu0 %v2033
    %v4632 = vpop.f32.mrf.mxu0
    %v4633 = vadd.f32 0.0, %v4632
    %v4634 = vpop.f32.mrf.mxu0
    %v4635 = vadd.f32 0.0, %v4634
    %4636 = vmatmul.bf16.gmra.mxu0 %v2036
    %v4637 = vpop.f32.mrf.mxu0
    %v4638 = vadd.f32 0.0, %v4637
    %v4639 = vpop.f32.mrf.mxu0
    %v4640 = vadd.f32 0.0, %v4639
    %4641 = vmatmul.bf16.gmra.mxu0 %v2039
    %v4642 = vpop.f32.mrf.mxu0
    %v4643 = vadd.f32 0.0, %v4642
    %v4644 = vpop.f32.mrf.mxu0
    %v4645 = vadd.f32 0.0, %v4644
    %4646 = vmatmul.bf16.gmra.mxu0 %v2042
    %v4647 = vpop.f32.mrf.mxu0
    %v4648 = vadd.f32 0.0, %v4647
    %v4649 = vpop.f32.mrf.mxu0
    %v4650 = vadd.f32 0.0, %v4649
    %4651 = vmatmul.bf16.gmra.mxu0 %v2045
    %v4652 = vpop.f32.mrf.mxu0
    %v4653 = vadd.f32 0.0, %v4652
    %v4654 = vpop.f32.mrf.mxu0
    %v4655 = vadd.f32 0.0, %v4654
    %4656 = vmatmul.bf16.gmra.mxu0 %v2048
    %v4657 = vpop.f32.mrf.mxu0
    %v4658 = vadd.f32 0.0, %v4657
    %v4659 = vpop.f32.mrf.mxu0
    %v4660 = vadd.f32 0.0, %v4659
    %4661 = vmatmul.bf16.gmra.mxu0 %v2051
    %v4662 = vpop.f32.mrf.mxu0
    %v4663 = vadd.f32 0.0, %v4662
    %v4664 = vpop.f32.mrf.mxu0
    %v4665 = vadd.f32 0.0, %v4664
    %4666 = vmatmul.bf16.gmra.mxu0 %v2054
    %v4667 = vpop.f32.mrf.mxu0
    %v4668 = vadd.f32 0.0, %v4667
    %v4669 = vpop.f32.mrf.mxu0
    %v4670 = vadd.f32 0.0, %v4669
    %4671 = vmatmul.bf16.gmra.mxu0 %v2057
    %v4672 = vpop.f32.mrf.mxu0
    %v4673 = vadd.f32 0.0, %v4672
    %v4674 = vpop.f32.mrf.mxu0
    %v4675 = vadd.f32 0.0, %v4674
    %4676 = vmatmul.bf16.gmra.mxu0 %v2060
    %v4677 = vpop.f32.mrf.mxu0
    %v4678 = vadd.f32 0.0, %v4677
    %v4679 = vpop.f32.mrf.mxu0
    %v4680 = vadd.f32 0.0, %v4679
    %4681 = vmatmul.bf16.gmra.mxu0 %v2063
    %v4682 = vpop.f32.mrf.mxu0
    %v4683 = vadd.f32 0.0, %v4682
    %v4684 = vpop.f32.mrf.mxu0
    %v4685 = vadd.f32 0.0, %v4684
    %4686 = vmatmul.bf16.gmra.mxu0 %v2694
    %v4687 = vpop.f32.mrf.mxu0
    %v4688 = vadd.f32 0.0, %v4687
    %v4689 = vpop.f32.mrf.mxu0
    %v4690 = vadd.f32 0.0, %v4689
    %4691 = vmatmul.bf16.gmra.mxu0 %v4600
    %v4692 = vpop.f32.mrf.mxu0
    %v4693 = vadd.f32 0.0, %v4692
    %v4694 = vpop.f32.mrf.mxu0
    %v4695 = vadd.f32 0.0, %v4694
    %4696 = vmatmul.bf16.gmra.mxu0 %v2072
    %v4697 = vpop.f32.mrf.mxu0
    %v4698 = vadd.f32 0.0, %v4697
    %v4699 = vpop.f32.mrf.mxu0
    %v4700 = vadd.f32 0.0, %v4699
    %4701 = vmatmul.bf16.gmra.mxu0 %v2075
    %v4702 = vpop.f32.mrf.mxu0
    %v4703 = vadd.f32 0.0, %v4702
    %v4704 = vpop.f32.mrf.mxu0
    %v4705 = vadd.f32 0.0, %v4704
    %4706 = vmatmul.bf16.gmra.mxu0 %v2078
    %v4707 = vpop.f32.mrf.mxu0
    %v4708 = vadd.f32 0.0, %v4707
    %v4709 = vpop.f32.mrf.mxu0
    %v4710 = vadd.f32 0.0, %v4709
    %4711 = vmatmul.bf16.gmra.mxu0 %v2081
    %v4712 = vpop.f32.mrf.mxu0
    %v4713 = vadd.f32 0.0, %v4712
    %v4714 = vpop.f32.mrf.mxu0
    %v4715 = vadd.f32 0.0, %v4714
    %4716 = vmatmul.bf16.gmra.mxu0 %v2084
    %v4717 = vpop.f32.mrf.mxu0
    %v4718 = vadd.f32 0.0, %v4717
    %v4719 = vpop.f32.mrf.mxu0
    %v4720 = vadd.f32 0.0, %v4719
    %4721 = vmatmul.bf16.gmra.mxu0 %v2087
    %v4722 = vpop.f32.mrf.mxu0
    %v4723 = vadd.f32 0.0, %v4722
    %v4724 = vpop.f32.mrf.mxu0
    %v4725 = vadd.f32 0.0, %v4724
    %4726 = vmatmul.bf16.gmra.mxu0 %v2090
    %v4727 = vpop.f32.mrf.mxu0
    %v4728 = vadd.f32 0.0, %v4727
    %v4729 = vpop.f32.mrf.mxu0
    %v4730 = vadd.f32 0.0, %v4729
    %4731 = vmatmul.bf16.gmra.mxu0 %v2093
    %v4732 = vpop.f32.mrf.mxu0
    %v4733 = vadd.f32 0.0, %v4732
    %v4734 = vpop.f32.mrf.mxu0
    %v4735 = vadd.f32 0.0, %v4734
    %4736 = vmatmul.bf16.gmra.mxu0 %v2096
    %v4737 = vpop.f32.mrf.mxu0
    %v4738 = vadd.f32 0.0, %v4737
    %v4739 = vpop.f32.mrf.mxu0
    %v4740 = vadd.f32 0.0, %v4739
    %4741 = vmatmul.bf16.gmra.mxu0 %v2099
    %v4742 = vpop.f32.mrf.mxu0
    %v4743 = vadd.f32 0.0, %v4742
    %v4744 = vpop.f32.mrf.mxu0
    %v4745 = vadd.f32 0.0, %v4744
    %4746 = vmatmul.bf16.gmra.mxu0 %v2102
    %v4747 = vpop.f32.mrf.mxu0
    %v4748 = vadd.f32 0.0, %v4747
    %v4749 = vpop.f32.mrf.mxu0
    %v4750 = vadd.f32 0.0, %v4749
    %4751 = vmatmul.bf16.gmra.mxu0 %v2105
    %v4752 = vpop.f32.mrf.mxu0
    %v4753 = vadd.f32 0.0, %v4752
    %v4754 = vpop.f32.mrf.mxu0
    %v4755 = vadd.f32 0.0, %v4754
    %4756 = vmatmul.bf16.gmra.mxu0 %v2108
    %v4757 = vpop.f32.mrf.mxu0
    %v4758 = vadd.f32 0.0, %v4757
    %v4759 = vpop.f32.mrf.mxu0
    %v4760 = vadd.f32 0.0, %v4759
    %4761 = vmatmul.bf16.gmra.mxu0 %v2111
    %v4762 = vpop.f32.mrf.mxu0
    %v4763 = vadd.f32 0.0, %v4762
    %v4764 = vpop.f32.mrf.mxu0
    %v4765 = vadd.f32 0.0, %v4764
    %4766 = vmatmul.bf16.gmra.mxu0 %v2697
    %v4767 = vpop.f32.mrf.mxu0
    %v4768 = vadd.f32 0.0, %v4767
    %v4769 = vpop.f32.mrf.mxu0
    %v4770 = vadd.f32 0.0, %v4769
    %4771 = vmatmul.bf16.gmra.mxu0 %v4603
    %v4772 = vpop.f32.mrf.mxu0
    %v4773 = vadd.f32 0.0, %v4772
    %v4774 = vpop.f32.mrf.mxu0
    %v4775 = vadd.f32 0.0, %v4774
    %4776 = vdwg.mxu0
    %v4777 = vadd.f32 %v4535, %v4618
    %v4778 = vadd.f32 %v4536, %v4620
    %v4779 = vadd.f32 %v4537, %v4623
    %v4780 = vadd.f32 %v4538, %v4625
    %v4781 = vadd.f32 %v4539, %v4628
    %v4782 = vadd.f32 %v4540, %v4630
    %v4783 = vadd.f32 %v4541, %v4633
    %v4784 = vadd.f32 %v4542, %v4635
    %v4785 = vadd.f32 %v4543, %v4638
    %v4786 = vadd.f32 %v4544, %v4640
    %v4787 = vadd.f32 %v4545, %v4643
    %v4788 = vadd.f32 %v4546, %v4645
    %v4789 = vadd.f32 %v4547, %v4648
    %v4790 = vadd.f32 %v4548, %v4650
    %v4791 = vadd.f32 %v4549, %v4653
    %v4792 = vadd.f32 %v4550, %v4655
    %v4793 = vadd.f32 %v4551, %v4658
    %v4794 = vadd.f32 %v4552, %v4660
    %v4795 = vadd.f32 %v4553, %v4663
    %v4796 = vadd.f32 %v4554, %v4665
    %v4797 = vadd.f32 %v4555, %v4668
    %v4798 = vadd.f32 %v4556, %v4670
    %v4799 = vadd.f32 %v4557, %v4673
    %v4800 = vadd.f32 %v4558, %v4675
    %v4801 = vadd.f32 %v4559, %v4678
    %v4802 = vadd.f32 %v4560, %v4680
    %v4803 = vadd.f32 %v4561, %v4683
    %v4804 = vadd.f32 %v4562, %v4685
    %v4805 = vadd.f32 %v4563, %v4688
    %v4806 = vadd.f32 %v4564, %v4690
    %v4807 = vadd.f32 %v4565, %v4693
    %v4808 = vadd.f32 %v4566, %v4695
    %v4809 = vadd.f32 %v4567, %v4698
    %v4810 = vadd.f32 %v4568, %v4700
    %v4811 = vadd.f32 %v4569, %v4703
    %v4812 = vadd.f32 %v4570, %v4705
    %v4813 = vadd.f32 %v4571, %v4708
    %v4814 = vadd.f32 %v4572, %v4710
    %v4815 = vadd.f32 %v4573, %v4713
    %v4816 = vadd.f32 %v4574, %v4715
    %v4817 = vadd.f32 %v4575, %v4718
    %v4818 = vadd.f32 %v4576, %v4720
    %v4819 = vadd.f32 %v4577, %v4723
    %v4820 = vadd.f32 %v4578, %v4725
    %v4821 = vadd.f32 %v4579, %v4728
    %v4822 = vadd.f32 %v4580, %v4730
    %v4823 = vadd.f32 %v4581, %v4733
    %v4824 = vadd.f32 %v4582, %v4735
    %v4825 = vadd.f32 %v4583, %v4738
    %v4826 = vadd.f32 %v4584, %v4740
    %v4827 = vadd.f32 %v4585, %v4743
    %v4828 = vadd.f32 %v4586, %v4745
    %v4829 = vadd.f32 %v4587, %v4748
    %v4830 = vadd.f32 %v4588, %v4750
    %v4831 = vadd.f32 %v4589, %v4753
    %v4832 = vadd.f32 %v4590, %v4755
    %v4833 = vadd.f32 %v4591, %v4758
    %v4834 = vadd.f32 %v4592, %v4760
    %v4835 = vadd.f32 %v4593, %v4763
    %v4836 = vadd.f32 %v4594, %v4765
    %v4837 = vadd.f32 %v4595, %v4768
    %v4838 = vadd.f32 %v4596, %v4770
    %v4839 = vadd.f32 %v4597, %v4773
    %v4840 = vadd.f32 %v4598, %v4775
    %4841 = vxpose.xlu0.b32.start [1/16] %v4777, 128
    %4842 = vxpose.xlu0.b32.cont [2/16] %v4778, 128
    %4843 = vxpose.xlu0.b32.cont [3/16] %v4779, 128
    %4844 = vxpose.xlu0.b32.cont [4/16] %v4780, 128
    %4845 = vxpose.xlu0.b32.cont [5/16] %v4781, 128
    %4846 = vxpose.xlu0.b32.cont [6/16] %v4782, 128
    %4847 = vxpose.xlu0.b32.cont [7/16] %v4783, 128
    %4848 = vxpose.xlu0.b32.cont [8/16] %v4784, 128
    %4849 = vxpose.xlu0.b32.cont [9/16] %v4785, 128
    %4850 = vxpose.xlu0.b32.cont [10/16] %v4786, 128
    %4851 = vxpose.xlu0.b32.cont [11/16] %v4787, 128
    %4852 = vxpose.xlu0.b32.cont [12/16] %v4788, 128
    %4853 = vxpose.xlu0.b32.cont [13/16] %v4789, 128
    %4854 = vxpose.xlu0.b32.cont [14/16] %v4790, 128
    %4855 = vxpose.xlu0.b32.cont [15/16] %v4791, 128
    %4856 = vxpose.xlu0.b32.end [16/16] %v4792, 128
    %v4857 = vpop.trf.xlu0
    %v4858 = vpop.trf.xlu0
    %v4859 = vpop.trf.xlu0
    %v4860 = vpop.trf.xlu0
    %v4861 = vpop.trf.xlu0
    %v4862 = vpop.trf.xlu0
    %v4863 = vpop.trf.xlu0
    %v4864 = vpop.trf.xlu0
    %v4865 = vpop.trf.xlu0
    %v4866 = vpop.trf.xlu0
    %v4867 = vpop.trf.xlu0
    %v4868 = vpop.trf.xlu0
    %v4869 = vpop.trf.xlu0
    %v4870 = vpop.trf.xlu0
    %v4871 = vpop.trf.xlu0
    %v4872 = vpop.trf.xlu0
    %4873 = vxpose.xlu0.b32.start [1/16] %v4793, 128
    %4874 = vxpose.xlu0.b32.cont [2/16] %v4794, 128
    %4875 = vxpose.xlu0.b32.cont [3/16] %v4795, 128
    %4876 = vxpose.xlu0.b32.cont [4/16] %v4796, 128
    %4877 = vxpose.xlu0.b32.cont [5/16] %v4797, 128
    %4878 = vxpose.xlu0.b32.cont [6/16] %v4798, 128
    %4879 = vxpose.xlu0.b32.cont [7/16] %v4799, 128
    %4880 = vxpose.xlu0.b32.cont [8/16] %v4800, 128
    %4881 = vxpose.xlu0.b32.cont [9/16] %v4801, 128
    %4882 = vxpose.xlu0.b32.cont [10/16] %v4802, 128
    %4883 = vxpose.xlu0.b32.cont [11/16] %v4803, 128
    %4884 = vxpose.xlu0.b32.cont [12/16] %v4804, 128
    %4885 = vxpose.xlu0.b32.cont [13/16] %v4805, 128
    %4886 = vxpose.xlu0.b32.cont [14/16] %v4806, 128
    %4887 = vxpose.xlu0.b32.cont [15/16] %v4807, 128
    %4888 = vxpose.xlu0.b32.end [16/16] %v4808, 128
    %v4889 = vpop.trf.xlu0
    %v4890 = vpop.trf.xlu0
    %v4891 = vpop.trf.xlu0
    %v4892 = vpop.trf.xlu0
    %v4893 = vpop.trf.xlu0
    %v4894 = vpop.trf.xlu0
    %v4895 = vpop.trf.xlu0
    %v4896 = vpop.trf.xlu0
    %v4897 = vpop.trf.xlu0
    %v4898 = vpop.trf.xlu0
    %v4899 = vpop.trf.xlu0
    %v4900 = vpop.trf.xlu0
    %v4901 = vpop.trf.xlu0
    %v4902 = vpop.trf.xlu0
    %v4903 = vpop.trf.xlu0
    %v4904 = vpop.trf.xlu0
    %4905 = vxpose.xlu0.b32.start [1/16] %v4809, 128
    %4906 = vxpose.xlu0.b32.cont [2/16] %v4810, 128
    %4907 = vxpose.xlu0.b32.cont [3/16] %v4811, 128
    %4908 = vxpose.xlu0.b32.cont [4/16] %v4812, 128
    %4909 = vxpose.xlu0.b32.cont [5/16] %v4813, 128
    %4910 = vxpose.xlu0.b32.cont [6/16] %v4814, 128
    %4911 = vxpose.xlu0.b32.cont [7/16] %v4815, 128
    %4912 = vxpose.xlu0.b32.cont [8/16] %v4816, 128
    %4913 = vxpose.xlu0.b32.cont [9/16] %v4817, 128
    %4914 = vxpose.xlu0.b32.cont [10/16] %v4818, 128
    %4915 = vxpose.xlu0.b32.cont [11/16] %v4819, 128
    %4916 = vxpose.xlu0.b32.cont [12/16] %v4820, 128
    %4917 = vxpose.xlu0.b32.cont [13/16] %v4821, 128
    %4918 = vxpose.xlu0.b32.cont [14/16] %v4822, 128
    %4919 = vxpose.xlu0.b32.cont [15/16] %v4823, 128
    %4920 = vxpose.xlu0.b32.end [16/16] %v4824, 128
    %v4921 = vpop.trf.xlu0
    %v4922 = vpop.trf.xlu0
    %v4923 = vpop.trf.xlu0
    %v4924 = vpop.trf.xlu0
    %v4925 = vpop.trf.xlu0
    %v4926 = vpop.trf.xlu0
    %v4927 = vpop.trf.xlu0
    %v4928 = vpop.trf.xlu0
    %v4929 = vpop.trf.xlu0
    %v4930 = vpop.trf.xlu0
    %v4931 = vpop.trf.xlu0
    %v4932 = vpop.trf.xlu0
    %v4933 = vpop.trf.xlu0
    %v4934 = vpop.trf.xlu0
    %v4935 = vpop.trf.xlu0
    %v4936 = vpop.trf.xlu0
    %4937 = vxpose.xlu0.b32.start [1/16] %v4825, 128
    %4938 = vxpose.xlu0.b32.cont [2/16] %v4826, 128
    %4939 = vxpose.xlu0.b32.cont [3/16] %v4827, 128
    %4940 = vxpose.xlu0.b32.cont [4/16] %v4828, 128
    %4941 = vxpose.xlu0.b32.cont [5/16] %v4829, 128
    %4942 = vxpose.xlu0.b32.cont [6/16] %v4830, 128
    %4943 = vxpose.xlu0.b32.cont [7/16] %v4831, 128
    %4944 = vxpose.xlu0.b32.cont [8/16] %v4832, 128
    %4945 = vxpose.xlu0.b32.cont [9/16] %v4833, 128
    %4946 = vxpose.xlu0.b32.cont [10/16] %v4834, 128
    %4947 = vxpose.xlu0.b32.cont [11/16] %v4835, 128
    %4948 = vxpose.xlu0.b32.cont [12/16] %v4836, 128
    %4949 = vxpose.xlu0.b32.cont [13/16] %v4837, 128
    %4950 = vxpose.xlu0.b32.cont [14/16] %v4838, 128
    %4951 = vxpose.xlu0.b32.cont [15/16] %v4839, 128
    %4952 = vxpose.xlu0.b32.end [16/16] %v4840, 128
    %v4953 = vpop.trf.xlu0
    %v4954 = vpop.trf.xlu0
    %v4955 = vpop.trf.xlu0
    %v4956 = vpop.trf.xlu0
    %v4957 = vpop.trf.xlu0
    %v4958 = vpop.trf.xlu0
    %v4959 = vpop.trf.xlu0
    %v4960 = vpop.trf.xlu0
    %v4961 = vpop.trf.xlu0
    %v4962 = vpop.trf.xlu0
    %v4963 = vpop.trf.xlu0
    %v4964 = vpop.trf.xlu0
    %v4965 = vpop.trf.xlu0
    %v4966 = vpop.trf.xlu0
    %v4967 = vpop.trf.xlu0
    %v4968 = vpop.trf.xlu0
    %v4969 = vsel %vm964, %v1905, 0.0
    %v4970 = vsel %vm964, %v1937, 0.0
    %v4971 = vadd.f32 %v4969, %v4970
    %v4972 = vsel %vm964, %v1969, 0.0
    %v4973 = vadd.f32 %v4971, %v4972
    %v4974 = vsel %vm964, %v2001, 0.0
    %v4975 = vadd.f32 %v4973, %v4974
    %4976 = vadd.xlane.f32.xlu0 %v4975
    %v4977 = vpop.xlane.xlu0 %4976
    %v4978 = vadd.f32 %v4977, 0.0
    %v4979 = vsel %vm964, %v2951, 0.0
    %v4980 = vsel %vm964, %v2983, 0.0
    %v4981 = vadd.f32 %v4979, %v4980
    %v4982 = vsel %vm964, %v3015, 0.0
    %v4983 = vadd.f32 %v4981, %v4982
    %v4984 = vsel %vm964, %v3047, 0.0
    %v4985 = vadd.f32 %v4983, %v4984
    %4986 = vadd.xlane.f32.xlu0 %v4985
    %v4987 = vpop.xlane.xlu0 %4986
    %v4988 = vadd.f32 %v4978, %v4987
    %v4989 = vsel %vm964, %v3907, 0.0
    %v4990 = vsel %vm964, %v3939, 0.0
    %v4991 = vadd.f32 %v4989, %v4990
    %v4992 = vsel %vm964, %v3971, 0.0
    %v4993 = vadd.f32 %v4991, %v4992
    %v4994 = vsel %vm964, %v4003, 0.0
    %v4995 = vadd.f32 %v4993, %v4994
    %4996 = vadd.xlane.f32.xlu0 %v4995
    %v4997 = vpop.xlane.xlu0 %4996
    %v4998 = vadd.f32 %v4988, %v4997
    %v4999 = vsel %vm964, %v4857, 0.0
    %v5000 = vsel %vm964, %v4889, 0.0
    %v5001 = vadd.f32 %v4999, %v5000
    %v5002 = vsel %vm964, %v4921, 0.0
    %v5003 = vadd.f32 %v5001, %v5002
    %v5004 = vsel %vm964, %v4953, 0.0
    %v5005 = vadd.f32 %v5003, %v5004
    %5006 = vadd.xlane.f32.xlu0 %v5005
    %v5007 = vpop.xlane.xlu0 %5006
    %v5008 = vadd.f32 %v4998, %v5007
    %v5009 = vmul.f32 %v5008, 0.00048828125
    %v5010 = vsub.f32 %v1905, %v5009
    %v5011 = vsub.f32 %v1937, %v5009
    %v5012 = vsub.f32 %v1969, %v5009
    %v5013 = vsub.f32 %v2001, %v5009
    %v5014 = vmul.f32 %v5010, %v5010
    %v5015 = vmul.f32 %v5011, %v5011
    %v5016 = vmul.f32 %v5012, %v5012
    %v5017 = vmul.f32 %v5013, %v5013
    %v5018 = vsel %vm964, %v5014, 0.0
    %v5019 = vsel %vm964, %v5015, 0.0
    %v5020 = vadd.f32 %v5018, %v5019
    %v5021 = vsel %vm964, %v5016, 0.0
    %v5022 = vadd.f32 %v5020, %v5021
    %v5023 = vsel %vm964, %v5017, 0.0
    %v5024 = vadd.f32 %v5022, %v5023
    %5025 = vadd.xlane.f32.xlu0 %v5024
    %v5026 = vpop.xlane.xlu0 %5025
    %v5027 = vadd.f32 %v5026, 0.0
    %v5028 = vsub.f32 %v2951, %v5009
    %v5029 = vsub.f32 %v2983, %v5009
    %v5030 = vsub.f32 %v3015, %v5009
    %v5031 = vsub.f32 %v3047, %v5009
    %v5032 = vmul.f32 %v5028, %v5028
    %v5033 = vmul.f32 %v5029, %v5029
    %v5034 = vmul.f32 %v5030, %v5030
    %v5035 = vmul.f32 %v5031, %v5031
    %v5036 = vsel %vm964, %v5032, 0.0
    %v5037 = vsel %vm964, %v5033, 0.0
    %v5038 = vadd.f32 %v5036, %v5037
    %v5039 = vsel %vm964, %v5034, 0.0
    %v5040 = vadd.f32 %v5038, %v5039
    %v5041 = vsel %vm964, %v5035, 0.0
    %v5042 = vadd.f32 %v5040, %v5041
    %5043 = vadd.xlane.f32.xlu0 %v5042
    %v5044 = vpop.xlane.xlu0 %5043
    %v5045 = vadd.f32 %v5027, %v5044
    %v5046 = vsub.f32 %v3907, %v5009
    %v5047 = vsub.f32 %v3939, %v5009
    %v5048 = vsub.f32 %v3971, %v5009
    %v5049 = vsub.f32 %v4003, %v5009
    %v5050 = vmul.f32 %v5046, %v5046
    %v5051 = vmul.f32 %v5047, %v5047
    %v5052 = vmul.f32 %v5048, %v5048
    %v5053 = vmul.f32 %v5049, %v5049
    %v5054 = vsel %vm964, %v5050, 0.0
    %v5055 = vsel %vm964, %v5051, 0.0
    %v5056 = vadd.f32 %v5054, %v5055
    %v5057 = vsel %vm964, %v5052, 0.0
    %v5058 = vadd.f32 %v5056, %v5057
    %v5059 = vsel %vm964, %v5053, 0.0
    %v5060 = vadd.f32 %v5058, %v5059
    %5061 = vadd.xlane.f32.xlu0 %v5060
    %v5062 = vpop.xlane.xlu0 %5061
    %v5063 = vadd.f32 %v5045, %v5062
    %v5064 = vsub.f32 %v4857, %v5009
    %v5065 = vsub.f32 %v4889, %v5009
    %v5066 = vsub.f32 %v4921, %v5009
    %v5067 = vsub.f32 %v4953, %v5009
    %v5068 = vmul.f32 %v5064, %v5064
    %v5069 = vmul.f32 %v5065, %v5065
    %v5070 = vmul.f32 %v5066, %v5066
    %v5071 = vmul.f32 %v5067, %v5067
    %v5072 = vsel %vm964, %v5068, 0.0
    %v5073 = vsel %vm964, %v5069, 0.0
    %v5074 = vadd.f32 %v5072, %v5073
    %v5075 = vsel %vm964, %v5070, 0.0
    %v5076 = vadd.f32 %v5074, %v5075
    %v5077 = vsel %vm964, %v5071, 0.0
    %v5078 = vadd.f32 %v5076, %v5077
    %5079 = vadd.xlane.f32.xlu0 %v5078
    %v5080 = vpop.xlane.xlu0 %5079
    %v5081 = vadd.f32 %v5063, %v5080
    %v5082 = vmul.f32 %v5081, 0.00048828125
    %v5083 = vadd.f32 %v5082, 1e-05
    %v5084 = vrsqrt.pop %v5083
    %v5085 = vmul.f32 %v5084, %v5083
    %v5086 = vmul.f32 %v5085, %v5084
    %v5087 = vmul.f32 0.5, %v5086
    %v5088 = vsub.f32 1.5, %v5087
    %v5089 = vmul.f32 %v5084, %v5088
    %vm5090 = vweird.f32 %v5083
    %vm5091 = vweird.f32 %v5084
    %vm5092 = vmor %vm5090, %vm5091
    %v5093 = vsel %vm5092, %v5084, %v5089
    %v5094 = vmul.f32 %v143, %v5093
    %v5095 = vmul.f32 %v5009, %v5094
    %v5096 = vsub.f32 %v144, %v5095
    %5098 = vset.pattern.permute.xlu0 0
    %5099 = vperm.xlu0 %5098, %v5094
    %v5100 = vpop.permute.xlu0 %5099
    %v5102 = vmul.f32 %v1905, %v5100
    %v5103 = vmul.f32 %v1937, %v5100
    %v5104 = vmul.f32 %v1969, %v5100
    %v5105 = vmul.f32 %v2001, %v5100
    %5107 = vset.pattern.permute.xlu0 0
    %5108 = vperm.xlu0 %5107, %v5096
    %v5109 = vpop.permute.xlu0 %5108
    %v5111 = vadd.f32 %v5102, %v5109
    %v5112 = vadd.f32 %v5103, %v5109
    %v5113 = vadd.f32 %v5104, %v5109
    %v5114 = vadd.f32 %v5105, %v5109
    %v5115 = vmax.f32 %v5111, 0.0
    %v5116 = vmax.f32 %v5112, 0.0
    %v5117 = vmax.f32 %v5113, 0.0
    %v5118 = vmax.f32 %v5114, 0.0
    %v5123 = vrot.slane %v5116, 4
    %v5124 = vrot.slane %v5118, 4
    %v5125 = vsel %vm964, %v5115, %v5123
    %v5126 = vsel %vm964, %v5117, %v5124
    %5129 = vst [vmem:[#allocation2] sm:$0xff] %v5125
    %5130 = vst [vmem:[#allocation2 + $0x8] sm:$0xff] %v5126
    %v5131 = vmul.f32 %v2951, %v5100
    %v5132 = vmul.f32 %v2983, %v5100
    %v5133 = vmul.f32 %v3015, %v5100
    %v5134 = vmul.f32 %v3047, %v5100
    %v5135 = vadd.f32 %v5131, %v5109
    %v5136 = vadd.f32 %v5132, %v5109
    %v5137 = vadd.f32 %v5133, %v5109
    %v5138 = vadd.f32 %v5134, %v5109
    %v5139 = vmax.f32 %v5135, 0.0
    %v5140 = vmax.f32 %v5136, 0.0
    %v5141 = vmax.f32 %v5137, 0.0
    %v5142 = vmax.f32 %v5138, 0.0
    %v5147 = vrot.slane %v5140, 4
    %v5148 = vrot.slane %v5142, 4
    %v5149 = vsel %vm964, %v5139, %v5147
    %v5150 = vsel %vm964, %v5141, %v5148
    %s5153 = scalar_lea.vmem [#allocation2], 16
    %5154 = vst [vmem:[%s5153] sm:$0xff] %v5149
    %5155 = vst [vmem:[%s5153 + $0x8] sm:$0xff] %v5150
    %v5156 = vmul.f32 %v3907, %v5100
    %v5157 = vmul.f32 %v3939, %v5100
    %v5158 = vmul.f32 %v3971, %v5100
    %v5159 = vmul.f32 %v4003, %v5100
    %v5160 = vadd.f32 %v5156, %v5109
    %v5161 = vadd.f32 %v5157, %v5109
    %v5162 = vadd.f32 %v5158, %v5109
    %v5163 = vadd.f32 %v5159, %v5109
    %v5164 = vmax.f32 %v5160, 0.0
    %v5165 = vmax.f32 %v5161, 0.0
    %v5166 = vmax.f32 %v5162, 0.0
    %v5167 = vmax.f32 %v5163, 0.0
    %v5172 = vrot.slane %v5165, 4
    %v5173 = vrot.slane %v5167, 4
    %v5174 = vsel %vm964, %v5164, %v5172
    %v5175 = vsel %vm964, %v5166, %v5173
    %s5178 = scalar_lea.vmem [#allocation2], 32
    %5179 = vst [vmem:[%s5178] sm:$0xff] %v5174
    %5180 = vst [vmem:[%s5178 + $0x8] sm:$0xff] %v5175
    %v5181 = vmul.f32 %v4857, %v5100
    %v5182 = vmul.f32 %v4889, %v5100
    %v5183 = vmul.f32 %v4921, %v5100
    %v5184 = vmul.f32 %v4953, %v5100
    %v5185 = vadd.f32 %v5181, %v5109
    %v5186 = vadd.f32 %v5182, %v5109
    %v5187 = vadd.f32 %v5183, %v5109
    %v5188 = vadd.f32 %v5184, %v5109
    %v5189 = vmax.f32 %v5185, 0.0
    %v5190 = vmax.f32 %v5186, 0.0
    %v5191 = vmax.f32 %v5187, 0.0
    %v5192 = vmax.f32 %v5188, 0.0
    %v5197 = vrot.slane %v5190, 4
    %v5198 = vrot.slane %v5192, 4
    %v5199 = vsel %vm964, %v5189, %v5197
    %v5200 = vsel %vm964, %v5191, %v5198
    %s5203 = scalar_lea.vmem [#allocation2], 48
    %5204 = vst [vmem:[%s5203] sm:$0xff] %v5199
    %5205 = vst [vmem:[%s5203 + $0x8] sm:$0xff] %v5200
    // Predicated region
    $region18: #{tpu_custom_call.1} parent=1 // pred_check
      _
    $region19: #{tpu_custom_call.1} parent=1 // pred_check_branch
      %5207 = sbr.rel (0) target = $region21
    $region20: #{tpu_custom_call.1} parent=1 // pred_region
      %5209 = vsyncadd [#allocation3], 0
      %s5210 = sshll.u32 [#allocation2], 4
      %s5211 = int_to_ptr.vmem [resolvable:$true] %s5210
      %s5212 = sshll.u32 %s4, 4
      %s5213 = int_to_ptr.hbm [resolvable:$true] %s5212
      %5218 = dma.vmem_to_hbm [thread:$0]  %s5211, 1024, %s5213, [#allocation3], 256, 256, 16
    $region21: #{tpu_custom_call.1} parent=1 // pred_fallthru
      _
    // Predicated region
    $region22: #{tpu_custom_call.1} parent=1 // pred_check
      _
    $region23: #{tpu_custom_call.1} parent=1 // pred_check_branch
      %5220 = sbr.rel (0) target = $region25
    $region24: #{tpu_custom_call.1} parent=1 // pred_region
      %5222 = dma.done [#allocation3], 1024
    $region25: #{tpu_custom_call.1} parent=1 // pred_fallthru
      _
    %5223 = vsyncpa [#allocation3], 1

</llo_original>
